<compile_context>
chip_gen: v7x
topology: tpu7x:2x2x1
jax: 0.10.0
libtpu: 0.0.40
codegen_flags: <defaults>
</compile_context>

<pallas_src>
import functools

import jax
import jax.numpy as jnp
from jax import lax
from jax.experimental import pallas as pl
from jax.experimental.pallas import tpu as pltpu


def _pair(v):
    return (v, v) if isinstance(v, int) else tuple(v)


# ----------------------------- Pallas kernel ---------------------------------
def _conv_relu_kernel(x_ref, w_ref, b_ref, o_ref, acc_ref, *,
                      kh, kw, sh, sw, h_out, w_out):
    """Direct conv + bias + ReLU for one (C_out-tile, image) grid point.

    x_ref  : (1, Hp, Wp, Cin)       spatially pre-padded activations (bf16)
    w_ref  : (kh*kw, Cin, Ct)       per-tap weight matrices (bf16)
    b_ref  : (1, Ct)                bias (f32, zero-padded channels)
    o_ref  : (1, h_out, w_out, Ct)  output tile
    acc_ref: (M, Ct) f32            VMEM scratch accumulator
    """
    cin = x_ref.shape[3]
    wp = x_ref.shape[2]
    tc = o_ref.shape[3]

    if sh == 1 and sw == 1:
        # Fast path: taps slice only along H; kw shift realized with an XLU
        # roll of the f32 product along the merged (h, w) sublane axis.
        m = h_out * wp
        first = True
        for i in range(kh):
            # (h_out, Wp, cin) -> (h_out*Wp, cin): layout-free since Wp % 8 == 0.
            xs2 = x_ref[0, i:i + h_out, :, :].reshape(m, cin)
            for j in range(kw):
                p = jnp.dot(xs2, w_ref[i * kw + j],
                            preferred_element_type=jnp.float32)
                if j:
                    # new[r] = p[r + j]; wrapped rows only land in columns
                    # >= Wp - j >= w_out, which are sliced off below.
                    p = pltpu.roll(p, shift=m - j, axis=0)
                if first:
                    acc_ref[...] = p
                    first = False
                else:
                    acc_ref[...] += p
        out = acc_ref[...].reshape(h_out, wp, tc)[:, :w_out, :]
    else:
        # Strided path: only the strided h_out x w_out output is ever computed
        # and written (no stride-1 over-compute / writeback).
        first = True
        for i in range(kh):
            for j in range(kw):
                xs = x_ref[0, pl.ds(i, h_out, stride=sh),
                           pl.ds(j, w_out, stride=sw), :]
                p = jnp.dot(xs.reshape(h_out * w_out, cin), w_ref[i * kw + j],
                            preferred_element_type=jnp.float32)
                if first:
                    acc_ref[...] = p
                    first = False
                else:
                    acc_ref[...] += p
        out = acc_ref[...].reshape(h_out, w_out, tc)

    out = jnp.maximum(out + b_ref[...], 0.0)
    o_ref[...] = out.reshape(1, h_out, w_out, tc).astype(o_ref.dtype)


# ----------------------------- pallas_call wrapper ----------------------------
def _vmem_limit_bytes():
    # Generation-aware VMEM budget: ~3/4 of physical, capped at 96 MiB
    # (v5e/v6e: 128 MiB phys -> 96 MiB; v7x: 64 MiB phys -> 48 MiB).
    try:
        phys = getattr(pltpu.get_tpu_info(), "vmem_capacity_bytes", None)
    except Exception:
        phys = None
    if not phys:
        return 48 << 20
    return int(min(phys * 3 // 4, 96 << 20))


def _conv_relu_nhwc(x_pad, w_taps, bias2d, *, kh, kw, sh, sw, h_out, w_out,
                    out_dtype):
    """Conv over spatially padded NHWC input + bias + ReLU (stride in-kernel).

    x_pad : (N, Hp, Wp, Cin) bf16   (Wp right-padded to a multiple of 8)
    w_taps: (kh*kw, Cin, Cout_p) bf16
    bias2d: (1, Cout_p) f32
    """
    n, hp, wp, cin = x_pad.shape
    cout_p = w_taps.shape[-1]

    # C_out tile: full when narrow, else 256 (fills the v6e/v7x 256-wide MXU)
    # when divisible, else 128.  cout_p is always a multiple of 128.
    if cout_p <= 256:
        tc = cout_p
    elif cout_p % 256 == 0:
        tc = 256
    else:
        tc = 128
    n_co = cout_p // tc

    m_acc = h_out * (wp if (sh == 1 and sw == 1) else w_out)

    kernel = functools.partial(_conv_relu_kernel, kh=kh, kw=kw, sh=sh, sw=sw,
                               h_out=h_out, w_out=w_out)

    flops = 2 * n * h_out * w_out * kh * kw * cin * cout_p
    bytes_accessed = (n_co * x_pad.size * x_pad.dtype.itemsize       # acts re-read per co tile
                      + w_taps.size * w_taps.dtype.itemsize          # weights DMA'd once per co
                      + bias2d.size * bias2d.dtype.itemsize
                      + n * h_out * w_out * cout_p * jnp.dtype(out_dtype).itemsize)

    return pl.pallas_call(
        kernel,
        out_shape=jax.ShapeDtypeStruct((n, h_out, w_out, cout_p), out_dtype),
        grid_spec=pltpu.PrefetchScalarGridSpec(
            num_scalar_prefetch=0,
            # C_out tile outermost / batch innermost: the weight block index is
            # constant across the inner axis, so the weight tile stays resident
            # and is DMA'd only n_co times per call (not n * n_co).
            grid=(n_co, n),
            in_specs=[
                pl.BlockSpec((1, hp, wp, cin), lambda co, b: (b, 0, 0, 0)),
                # TODO(synk): pipeline_mode=pl.Buffered(1) here would halve the
                # weight VMEM footprint on v7x now that residency holds.
                pl.BlockSpec((kh * kw, cin, tc), lambda co, b: (0, 0, co)),
                pl.BlockSpec((1, tc), lambda co, b: (0, co)),
            ],
            out_specs=pl.BlockSpec((1, h_out, w_out, tc),
                                   lambda co, b: (b, 0, 0, co)),
            scratch_shapes=[pltpu.VMEM((m_acc, tc), jnp.float32)],
        ),
        compiler_params=pltpu.CompilerParams(
            dimension_semantics=("parallel", "parallel"),
            vmem_limit_bytes=_vmem_limit_bytes(),
        ),
        cost_estimate=pl.CostEstimate(flops=flops, transcendentals=0,
                                      bytes_accessed=bytes_accessed),
    )(x_pad, w_taps, bias2d)


# ------------------------------ module wrapper ---------------------------------
class BasicConv2dPallas:
    """Pallas equivalent of GoogLeNet's BasicConv2d (Conv2d + ReLU(inplace))."""

    def __init__(self, in_channels, out_channels, kernel_size=3, stride=1,
                 padding=1, key=None):
        if key is None:
            key = jax.random.PRNGKey(0)
        kh, kw = _pair(kernel_size)
        self.kh, self.kw = kh, kw
        self.stride = _pair(stride)
        self.padding = _pair(padding)
        self.in_channels = in_channels
        self.out_channels = out_channels
        # Lane-dense output: pad C_out to a multiple of 128 (zero weights/bias);
        # the padded channels are sliced off outside the kernel.
        self.cout_padded = max(128, ((out_channels + 127) // 128) * 128)

        wkey, bkey = jax.random.split(key)
        fan_in = in_channels * kh * kw
        bound = 1.0 / float(fan_in) ** 0.5
        # f32 master params (same shapes as nn.Conv2d: OIHW weight, (O,) bias).
        self.weight = jax.random.uniform(
            wkey, (out_channels, in_channels, kh, kw), jnp.float32, -bound, bound)
        self.bias = jax.random.uniform(
            bkey, (out_channels,), jnp.float32, -bound, bound)

        # One-time prep: OIHW -> (kh*kw, Cin, Cout_p) bf16 taps, (1, Cout_p) f32 bias.
        pad_c = self.cout_padded - out_channels
        w_taps = jnp.transpose(self.weight, (2, 3, 1, 0)).reshape(
            kh * kw, in_channels, out_channels)
        self.w_taps = jnp.pad(w_taps, ((0, 0), (0, 0), (0, pad_c))).astype(jnp.bfloat16)
        self.bias2d = jnp.pad(self.bias, (0, pad_c)).reshape(1, self.cout_padded)

    def forward_nhwc(self, x_nhwc, out_dtype=jnp.bfloat16):
        """NHWC in / NHWC out.  bf16 output by default for transpose-free chaining."""
        n, h, w, _ = x_nhwc.shape
        ph, pw = self.padding
        sh, sw = self.stride
        h_out = (h + 2 * ph - self.kh) // sh + 1
        w_out = (w + 2 * pw - self.kw) // sw + 1
        # Spatial zero-pad (W right-padded to a multiple of 8 so in-kernel merged
        # reshapes stay layout-free); bf16 cast fused into this glue pass.
        extra_w = (-(w + 2 * pw)) % 8
        x_pad = jnp.pad(x_nhwc.astype(jnp.bfloat16),
                        ((0, 0), (ph, ph), (pw, pw + extra_w), (0, 0)))
        y = _conv_relu_nhwc(x_pad, self.w_taps, self.bias2d,
                            kh=self.kh, kw=self.kw, sh=sh, sw=sw,
                            h_out=h_out, w_out=w_out, out_dtype=out_dtype)
        if self.cout_padded != self.out_channels:
            y = y[..., :self.out_channels]
        return y

    def __call__(self, x):
        # x: (N, C, H, W) float32 -> (N, C_out, H_out, W_out), PyTorch layout/dtype.
        x_nhwc = jnp.transpose(x, (0, 2, 3, 1))
        y = self.forward_nhwc(x_nhwc, out_dtype=jnp.float32)
        return jnp.transpose(y, (0, 3, 1, 2))


# ---------------------------------- main ---------------------------------------
if __name__ == "__main__":
    key = jax.random.PRNGKey(0)
    xkey, pkey = jax.random.split(key)

    N, C_in, H, W = 2, 4, 16, 16
    C_out = 8
    x = jax.random.normal(xkey, (N, C_in, H, W), jnp.float32)

    mod = BasicConv2dPallas(C_in, C_out, kernel_size=3, stride=1, padding=1, key=pkey)
    y = jax.block_until_ready(mod(x))

    # Reference: XLA conv with matching numerics (bf16-rounded inputs, f32 accum).
    xb = x.astype(jnp.bfloat16).astype(jnp.float32)
    wb = mod.weight.astype(jnp.bfloat16).astype(jnp.float32)
    ref = lax.conv_general_dilated(
        xb, wb, window_strides=(1, 1), padding=((1, 1), (1, 1)),
        dimension_numbers=("NCHW", "OIHW", "NCHW"),
        precision=lax.Precision.HIGHEST,
    ) + mod.bias[None, :, None, None]
    ref = jnp.maximum(ref, 0.0)

    assert y.shape == (N, C_out, H, W), y.shape
    max_err = float(jnp.max(jnp.abs(y - ref)))
    assert jnp.allclose(y, ref, atol=1e-3, rtol=1e-3), max_err

    print("KERNEL_OK")
</pallas_src>

<mosaic_0001>
module attributes {stable_mosaic.version = 11 : i64} {
  func.func @_conv_relu_kernel(%arg0: i32, %arg1: i32, %arg2: memref<1x18x24x4xbf16, #tpu.memory_space<vmem>>, %arg3: memref<9x4x128xbf16, #tpu.memory_space<vmem>>, %arg4: memref<1x128xf32, #tpu.memory_space<vmem>>, %arg5: memref<1x16x16x128xf32, #tpu.memory_space<vmem>>, %arg6: memref<384x128xf32, #tpu.memory_space<vmem>>) attributes {dimension_semantics = [#tpu.dimension_semantics<parallel>, #tpu.dimension_semantics<parallel>], iteration_bounds = array<i64: 1, 2>, scalar_prefetch = 0 : i64, scratch_operands = 1 : i64, tpu.core_type = #tpu.core_type<tc>, window_params = [{transform_indices = @transform_0, window_bounds = array<i64: 1, 18, 24, 4>}, {transform_indices = @transform_1, window_bounds = array<i64: 9, 4, 128>}, {transform_indices = @transform_2, window_bounds = array<i64: 1, 128>}, {transform_indices = @transform_3, window_bounds = array<i64: 1, 16, 16, 128>}]} {
    %c0 = arith.constant 0 : index
    %c0_0 = arith.constant 0 : index
    %c0_1 = arith.constant 0 : index
    %c0_2 = arith.constant 0 : index
    %0 = vector.load %arg2[%c0, %c0_0, %c0_1, %c0_2] : memref<1x18x24x4xbf16, #tpu.memory_space<vmem>>, vector<1x16x24x4xbf16>
    %1 = vector.shape_cast %0 : vector<1x16x24x4xbf16> to vector<16x24x4xbf16>
    %2 = vector.shape_cast %1 : vector<16x24x4xbf16> to vector<384x4xbf16>
    %c0_3 = arith.constant 0 : index
    %c0_4 = arith.constant 0 : index
    %c0_5 = arith.constant 0 : index
    %3 = vector.load %arg3[%c0_3, %c0_4, %c0_5] : memref<9x4x128xbf16, #tpu.memory_space<vmem>>, vector<1x4x128xbf16>
    %4 = vector.shape_cast %3 : vector<1x4x128xbf16> to vector<4x128xbf16>
    %cst = arith.constant dense<0.000000e+00> : vector<384x128xf32>
    %5 = tpu.matmul %2, %4, %cst {dimension_numbers = #tpu.dot_dimension_numbers<[1], [0], [0], [1], [0, 0, 1, 1], [], []>} : vector<384x4xbf16>, vector<4x128xbf16>, vector<384x128xf32> -> vector<384x128xf32>
    %c0_6 = arith.constant 0 : index
    %c0_7 = arith.constant 0 : index
    %6 = vector.load %arg6[%c0_6, %c0_7] : memref<384x128xf32, #tpu.memory_space<vmem>>, vector<384x128xf32>
    tpu.vector_store %arg6[%c0_6, %c0_7], %5 {strides = array<i32>} : memref<384x128xf32, #tpu.memory_space<vmem>>, vector<384x128xf32>,
    %c1 = arith.constant 1 : index
    %c0_8 = arith.constant 0 : index
    %c0_9 = arith.constant 0 : index
    %7 = vector.load %arg3[%c1, %c0_8, %c0_9] : memref<9x4x128xbf16, #tpu.memory_space<vmem>>, vector<1x4x128xbf16>
    %8 = vector.shape_cast %7 : vector<1x4x128xbf16> to vector<4x128xbf16>
    %cst_10 = arith.constant dense<0.000000e+00> : vector<384x128xf32>
    %9 = tpu.matmul %2, %8, %cst_10 {dimension_numbers = #tpu.dot_dimension_numbers<[1], [0], [0], [1], [0, 0, 1, 1], [], []>} : vector<384x4xbf16>, vector<4x128xbf16>, vector<384x128xf32> -> vector<384x128xf32>
    %c383_i32 = arith.constant 383 : i32
    %10 = tpu.dynamic_rotate %9 by %c383_i32 dim 0 : vector<384x128xf32>, i32 -> vector<384x128xf32>
    %c0_11 = arith.constant 0 : index
    %c0_12 = arith.constant 0 : index
    %11 = vector.load %arg6[%c0_11, %c0_12] : memref<384x128xf32, #tpu.memory_space<vmem>>, vector<384x128xf32>
    %12 = arith.addf %11, %10 : vector<384x128xf32>
    %c0_13 = arith.constant 0 : index
    %c0_14 = arith.constant 0 : index
    %13 = vector.load %arg6[%c0_13, %c0_14] : memref<384x128xf32, #tpu.memory_space<vmem>>, vector<384x128xf32>
    tpu.vector_store %arg6[%c0_13, %c0_14], %12 {strides = array<i32>} : memref<384x128xf32, #tpu.memory_space<vmem>>, vector<384x128xf32>,
    %c2 = arith.constant 2 : index
    %c0_15 = arith.constant 0 : index
    %c0_16 = arith.constant 0 : index
    %14 = vector.load %arg3[%c2, %c0_15, %c0_16] : memref<9x4x128xbf16, #tpu.memory_space<vmem>>, vector<1x4x128xbf16>
    %15 = vector.shape_cast %14 : vector<1x4x128xbf16> to vector<4x128xbf16>
    %cst_17 = arith.constant dense<0.000000e+00> : vector<384x128xf32>
    %16 = tpu.matmul %2, %15, %cst_17 {dimension_numbers = #tpu.dot_dimension_numbers<[1], [0], [0], [1], [0, 0, 1, 1], [], []>} : vector<384x4xbf16>, vector<4x128xbf16>, vector<384x128xf32> -> vector<384x128xf32>
    %c382_i32 = arith.constant 382 : i32
    %17 = tpu.dynamic_rotate %16 by %c382_i32 dim 0 : vector<384x128xf32>, i32 -> vector<384x128xf32>
    %c0_18 = arith.constant 0 : index
    %c0_19 = arith.constant 0 : index
    %18 = vector.load %arg6[%c0_18, %c0_19] : memref<384x128xf32, #tpu.memory_space<vmem>>, vector<384x128xf32>
    %19 = arith.addf %18, %17 : vector<384x128xf32>
    %c0_20 = arith.constant 0 : index
    %c0_21 = arith.constant 0 : index
    %20 = vector.load %arg6[%c0_20, %c0_21] : memref<384x128xf32, #tpu.memory_space<vmem>>, vector<384x128xf32>
    tpu.vector_store %arg6[%c0_20, %c0_21], %19 {strides = array<i32>} : memref<384x128xf32, #tpu.memory_space<vmem>>, vector<384x128xf32>,
    %c0_22 = arith.constant 0 : index
    %c1_23 = arith.constant 1 : index
    %c0_24 = arith.constant 0 : index
    %c0_25 = arith.constant 0 : index
    %21 = vector.load %arg2[%c0_22, %c1_23, %c0_24, %c0_25] : memref<1x18x24x4xbf16, #tpu.memory_space<vmem>>, vector<1x16x24x4xbf16>
    %22 = vector.shape_cast %21 : vector<1x16x24x4xbf16> to vector<16x24x4xbf16>
    %23 = vector.shape_cast %22 : vector<16x24x4xbf16> to vector<384x4xbf16>
    %c3 = arith.constant 3 : index
    %c0_26 = arith.constant 0 : index
    %c0_27 = arith.constant 0 : index
    %24 = vector.load %arg3[%c3, %c0_26, %c0_27] : memref<9x4x128xbf16, #tpu.memory_space<vmem>>, vector<1x4x128xbf16>
    %25 = vector.shape_cast %24 : vector<1x4x128xbf16> to vector<4x128xbf16>
    %cst_28 = arith.constant dense<0.000000e+00> : vector<384x128xf32>
    %26 = tpu.matmul %23, %25, %cst_28 {dimension_numbers = #tpu.dot_dimension_numbers<[1], [0], [0], [1], [0, 0, 1, 1], [], []>} : vector<384x4xbf16>, vector<4x128xbf16>, vector<384x128xf32> -> vector<384x128xf32>
    %c0_29 = arith.constant 0 : index
    %c0_30 = arith.constant 0 : index
    %27 = vector.load %arg6[%c0_29, %c0_30] : memref<384x128xf32, #tpu.memory_space<vmem>>, vector<384x128xf32>
    %28 = arith.addf %27, %26 : vector<384x128xf32>
    %c0_31 = arith.constant 0 : index
    %c0_32 = arith.constant 0 : index
    %29 = vector.load %arg6[%c0_31, %c0_32] : memref<384x128xf32, #tpu.memory_space<vmem>>, vector<384x128xf32>
    tpu.vector_store %arg6[%c0_31, %c0_32], %28 {strides = array<i32>} : memref<384x128xf32, #tpu.memory_space<vmem>>, vector<384x128xf32>,
    %c4 = arith.constant 4 : index
    %c0_33 = arith.constant 0 : index
    %c0_34 = arith.constant 0 : index
    %30 = vector.load %arg3[%c4, %c0_33, %c0_34] : memref<9x4x128xbf16, #tpu.memory_space<vmem>>, vector<1x4x128xbf16>
    %31 = vector.shape_cast %30 : vector<1x4x128xbf16> to vector<4x128xbf16>
    %cst_35 = arith.constant dense<0.000000e+00> : vector<384x128xf32>
    %32 = tpu.matmul %23, %31, %cst_35 {dimension_numbers = #tpu.dot_dimension_numbers<[1], [0], [0], [1], [0, 0, 1, 1], [], []>} : vector<384x4xbf16>, vector<4x128xbf16>, vector<384x128xf32> -> vector<384x128xf32>
    %c383_i32_36 = arith.constant 383 : i32
    %33 = tpu.dynamic_rotate %32 by %c383_i32_36 dim 0 : vector<384x128xf32>, i32 -> vector<384x128xf32>
    %c0_37 = arith.constant 0 : index
    %c0_38 = arith.constant 0 : index
    %34 = vector.load %arg6[%c0_37, %c0_38] : memref<384x128xf32, #tpu.memory_space<vmem>>, vector<384x128xf32>
    %35 = arith.addf %34, %33 : vector<384x128xf32>
    %c0_39 = arith.constant 0 : index
    %c0_40 = arith.constant 0 : index
    %36 = vector.load %arg6[%c0_39, %c0_40] : memref<384x128xf32, #tpu.memory_space<vmem>>, vector<384x128xf32>
    tpu.vector_store %arg6[%c0_39, %c0_40], %35 {strides = array<i32>} : memref<384x128xf32, #tpu.memory_space<vmem>>, vector<384x128xf32>,
    %c5 = arith.constant 5 : index
    %c0_41 = arith.constant 0 : index
    %c0_42 = arith.constant 0 : index
    %37 = vector.load %arg3[%c5, %c0_41, %c0_42] : memref<9x4x128xbf16, #tpu.memory_space<vmem>>, vector<1x4x128xbf16>
    %38 = vector.shape_cast %37 : vector<1x4x128xbf16> to vector<4x128xbf16>
    %cst_43 = arith.constant dense<0.000000e+00> : vector<384x128xf32>
    %39 = tpu.matmul %23, %38, %cst_43 {dimension_numbers = #tpu.dot_dimension_numbers<[1], [0], [0], [1], [0, 0, 1, 1], [], []>} : vector<384x4xbf16>, vector<4x128xbf16>, vector<384x128xf32> -> vector<384x128xf32>
    %c382_i32_44 = arith.constant 382 : i32
    %40 = tpu.dynamic_rotate %39 by %c382_i32_44 dim 0 : vector<384x128xf32>, i32 -> vector<384x128xf32>
    %c0_45 = arith.constant 0 : index
    %c0_46 = arith.constant 0 : index
    %41 = vector.load %arg6[%c0_45, %c0_46] : memref<384x128xf32, #tpu.memory_space<vmem>>, vector<384x128xf32>
    %42 = arith.addf %41, %40 : vector<384x128xf32>
    %c0_47 = arith.constant 0 : index
    %c0_48 = arith.constant 0 : index
    %43 = vector.load %arg6[%c0_47, %c0_48] : memref<384x128xf32, #tpu.memory_space<vmem>>, vector<384x128xf32>
    tpu.vector_store %arg6[%c0_47, %c0_48], %42 {strides = array<i32>} : memref<384x128xf32, #tpu.memory_space<vmem>>, vector<384x128xf32>,
    %c0_49 = arith.constant 0 : index
    %c2_50 = arith.constant 2 : index
    %c0_51 = arith.constant 0 : index
    %c0_52 = arith.constant 0 : index
    %44 = vector.load %arg2[%c0_49, %c2_50, %c0_51, %c0_52] : memref<1x18x24x4xbf16, #tpu.memory_space<vmem>>, vector<1x16x24x4xbf16>
    %45 = vector.shape_cast %44 : vector<1x16x24x4xbf16> to vector<16x24x4xbf16>
    %46 = vector.shape_cast %45 : vector<16x24x4xbf16> to vector<384x4xbf16>
    %c6 = arith.constant 6 : index
    %c0_53 = arith.constant 0 : index
    %c0_54 = arith.constant 0 : index
    %47 = vector.load %arg3[%c6, %c0_53, %c0_54] : memref<9x4x128xbf16, #tpu.memory_space<vmem>>, vector<1x4x128xbf16>
    %48 = vector.shape_cast %47 : vector<1x4x128xbf16> to vector<4x128xbf16>
    %cst_55 = arith.constant dense<0.000000e+00> : vector<384x128xf32>
    %49 = tpu.matmul %46, %48, %cst_55 {dimension_numbers = #tpu.dot_dimension_numbers<[1], [0], [0], [1], [0, 0, 1, 1], [], []>} : vector<384x4xbf16>, vector<4x128xbf16>, vector<384x128xf32> -> vector<384x128xf32>
    %c0_56 = arith.constant 0 : index
    %c0_57 = arith.constant 0 : index
    %50 = vector.load %arg6[%c0_56, %c0_57] : memref<384x128xf32, #tpu.memory_space<vmem>>, vector<384x128xf32>
    %51 = arith.addf %50, %49 : vector<384x128xf32>
    %c0_58 = arith.constant 0 : index
    %c0_59 = arith.constant 0 : index
    %52 = vector.load %arg6[%c0_58, %c0_59] : memref<384x128xf32, #tpu.memory_space<vmem>>, vector<384x128xf32>
    tpu.vector_store %arg6[%c0_58, %c0_59], %51 {strides = array<i32>} : memref<384x128xf32, #tpu.memory_space<vmem>>, vector<384x128xf32>,
    %c7 = arith.constant 7 : index
    %c0_60 = arith.constant 0 : index
    %c0_61 = arith.constant 0 : index
    %53 = vector.load %arg3[%c7, %c0_60, %c0_61] : memref<9x4x128xbf16, #tpu.memory_space<vmem>>, vector<1x4x128xbf16>
    %54 = vector.shape_cast %53 : vector<1x4x128xbf16> to vector<4x128xbf16>
    %cst_62 = arith.constant dense<0.000000e+00> : vector<384x128xf32>
    %55 = tpu.matmul %46, %54, %cst_62 {dimension_numbers = #tpu.dot_dimension_numbers<[1], [0], [0], [1], [0, 0, 1, 1], [], []>} : vector<384x4xbf16>, vector<4x128xbf16>, vector<384x128xf32> -> vector<384x128xf32>
    %c383_i32_63 = arith.constant 383 : i32
    %56 = tpu.dynamic_rotate %55 by %c383_i32_63 dim 0 : vector<384x128xf32>, i32 -> vector<384x128xf32>
    %c0_64 = arith.constant 0 : index
    %c0_65 = arith.constant 0 : index
    %57 = vector.load %arg6[%c0_64, %c0_65] : memref<384x128xf32, #tpu.memory_space<vmem>>, vector<384x128xf32>
    %58 = arith.addf %57, %56 : vector<384x128xf32>
    %c0_66 = arith.constant 0 : index
    %c0_67 = arith.constant 0 : index
    %59 = vector.load %arg6[%c0_66, %c0_67] : memref<384x128xf32, #tpu.memory_space<vmem>>, vector<384x128xf32>
    tpu.vector_store %arg6[%c0_66, %c0_67], %58 {strides = array<i32>} : memref<384x128xf32, #tpu.memory_space<vmem>>, vector<384x128xf32>,
    %c8 = arith.constant 8 : index
    %c0_68 = arith.constant 0 : index
    %c0_69 = arith.constant 0 : index
    %60 = vector.load %arg3[%c8, %c0_68, %c0_69] : memref<9x4x128xbf16, #tpu.memory_space<vmem>>, vector<1x4x128xbf16>
    %61 = vector.shape_cast %60 : vector<1x4x128xbf16> to vector<4x128xbf16>
    %cst_70 = arith.constant dense<0.000000e+00> : vector<384x128xf32>
    %62 = tpu.matmul %46, %61, %cst_70 {dimension_numbers = #tpu.dot_dimension_numbers<[1], [0], [0], [1], [0, 0, 1, 1], [], []>} : vector<384x4xbf16>, vector<4x128xbf16>, vector<384x128xf32> -> vector<384x128xf32>
    %c382_i32_71 = arith.constant 382 : i32
    %63 = tpu.dynamic_rotate %62 by %c382_i32_71 dim 0 : vector<384x128xf32>, i32 -> vector<384x128xf32>
    %c0_72 = arith.constant 0 : index
    %c0_73 = arith.constant 0 : index
    %64 = vector.load %arg6[%c0_72, %c0_73] : memref<384x128xf32, #tpu.memory_space<vmem>>, vector<384x128xf32>
    %65 = arith.addf %64, %63 : vector<384x128xf32>
    %c0_74 = arith.constant 0 : index
    %c0_75 = arith.constant 0 : index
    %66 = vector.load %arg6[%c0_74, %c0_75] : memref<384x128xf32, #tpu.memory_space<vmem>>, vector<384x128xf32>
    tpu.vector_store %arg6[%c0_74, %c0_75], %65 {strides = array<i32>} : memref<384x128xf32, #tpu.memory_space<vmem>>, vector<384x128xf32>,
    %c0_76 = arith.constant 0 : index
    %c0_77 = arith.constant 0 : index
    %67 = vector.load %arg6[%c0_76, %c0_77] : memref<384x128xf32, #tpu.memory_space<vmem>>, vector<384x128xf32>
    %68 = vector.shape_cast %67 : vector<384x128xf32> to vector<16x24x128xf32>
    %69 = vector.extract_strided_slice %68 {offsets = [0, 0, 0], sizes = [16, 16, 128], strides = [1, 1, 1]} : vector<16x24x128xf32> to vector<16x16x128xf32>
    %c0_78 = arith.constant 0 : index
    %c0_79 = arith.constant 0 : index
    %70 = vector.load %arg4[%c0_78, %c0_79] : memref<1x128xf32, #tpu.memory_space<vmem>>, vector<1x128xf32>
    %71 = vector.shape_cast %70 : vector<1x128xf32> to vector<1x1x128xf32>
    %72 = vector.broadcast %71 : vector<1x1x128xf32> to vector<16x16x128xf32>
    %73 = arith.addf %69, %72 : vector<16x16x128xf32>
    %cst_80 = arith.constant 0.000000e+00 : f32
    %74 = vector.broadcast %cst_80 : f32 to vector<16x16x128xf32>
    %75 = arith.maximumf %73, %74 : vector<16x16x128xf32>
    %76 = vector.shape_cast %75 : vector<16x16x128xf32> to vector<1x16x16x128xf32>
    %c0_81 = arith.constant 0 : index
    %c0_82 = arith.constant 0 : index
    %c0_83 = arith.constant 0 : index
    %c0_84 = arith.constant 0 : index
    %77 = vector.load %arg5[%c0_81, %c0_82, %c0_83, %c0_84] : memref<1x16x16x128xf32, #tpu.memory_space<vmem>>, vector<1x16x16x128xf32>
    tpu.vector_store %arg5[%c0_81, %c0_82, %c0_83, %c0_84], %76 {strides = array<i32>} : memref<1x16x16x128xf32, #tpu.memory_space<vmem>>, vector<1x16x16x128xf32>,
    return
  }
  func.func @transform_0(%arg0: i32, %arg1: i32) -> (i32, i32, i32, i32) {
    %c0_i32 = arith.constant 0 : i32
    %c0_i32_0 = arith.constant 0 : i32
    %c0_i32_1 = arith.constant 0 : i32
    %c0_i32_2 = arith.constant 0 : i32
    return %arg1, %c0_i32, %c0_i32_0, %c0_i32_1 : i32, i32, i32, i32
  }
  func.func @transform_1(%arg0: i32, %arg1: i32) -> (i32, i32, i32) {
    %c0_i32 = arith.constant 0 : i32
    %c0_i32_0 = arith.constant 0 : i32
    %c0_i32_1 = arith.constant 0 : i32
    return %c0_i32, %c0_i32_0, %arg0 : i32, i32, i32
  }
  func.func @transform_2(%arg0: i32, %arg1: i32) -> (i32, i32) {
    %c0_i32 = arith.constant 0 : i32
    %c0_i32_0 = arith.constant 0 : i32
    return %c0_i32, %arg0 : i32, i32
  }
  func.func @transform_3(%arg0: i32, %arg1: i32) -> (i32, i32, i32, i32) {
    %c0_i32 = arith.constant 0 : i32
    %c0_i32_0 = arith.constant 0 : i32
    %c0_i32_1 = arith.constant 0 : i32
    return %arg1, %c0_i32, %c0_i32_0, %arg0 : i32, i32, i32, i32
  }
}

</mosaic_0001>

<llo_original>
// kernel: tpu_custom_call.1
$region0: #{tpu_custom_call.1}
  #allocation0 [shape = 'u32[]', space=smem, size = 0x4, offset = 0x4, fixed_abs, tag = 'smem constant byte address 0x4 - core index']
  #allocation1 [shape = 'u32[144,128]{1,0:T(1,128)}', space=vmem, size = 0x12000, scoped, tag = 'internal scratch']
  #allocation2 [shape = 'f32[384,128]{1,0:T(8,128)}', space=vmem, size = 0x30000, scoped, tag = 'scratch operand']
  %s0 = inlined_call_operand.vmem [shape: bf16[2,18,24,4], index: 0, kind: input, shape index: {}]
  %s1 = inlined_call_operand.vmem [shape: bf16[9,4,128], index: 1, kind: input, shape index: {}]
  %s2 = inlined_call_operand.vmem [shape: f32[1,128], index: 2, kind: input, shape index: {}]
  %s3 = inlined_call_operand.hbm [shape: f32[2,16,16,128], index: 3, kind: output, shape index: {}]
  %s4 = sld [smem:[#allocation0]]
  $region45: #{tpu_custom_call.1} parent=0
    _
  %s6 = ssub.s32 1, %s4
  %s7 = scalar_select 0, %s6, %s4
  $region1: #{tpu_custom_call.1} parent=0
    #allocation3 [shape = 'u8[262144]{0}', space=vmem, size = 0x40000, scoped, tag = 'output window, operand 0']
    #allocation4 [shape = 's32[2]{0}', space=sflag, size = 0x8, scoped, tag = 'scoped memory for tpu_custom_call.1']
    %8 = vsyncpa [#allocation4], 0
    %s9 = scalar_lea.sflag [#allocation4], 1
    %10 = vsyncpa %s9, 0
    loop: start=0, step=1, limit=4
    $region2: #{tpu_custom_call.1} parent=1 // loop_pre_header
      _
    $region3: #{tpu_custom_call.1} parent=1 // loop_header
      %s12 = sphi 0, %s16
      %p13 = scmp.ge.s32.totalorder %s12, 4
      %s19 = sphi 0, %s31
      %s20 = sphi 0, %s27
      %s21 = sphi 0, %s19
      %s22 = sphi 0, %s20
      %s23 = sphi 0, %s21
      %s24 = sphi 0, %s22
      %s34 = sphi 0, %s36
      %s37 = sphi 0, %s34
      %s38 = sphi 0, %s37
      %s54 = sphi 0, %s38
      %s60 = sphi 0, %s62
      %s63 = sphi 0, %s60
      %s64 = sphi 0, %s63
      %s80 = sphi 0, %s64
      %s86 = sphi 0, %s88
      %s89 = sphi 0, %s86
      %s90 = sphi 0, %s89
      %s106 = sphi 0, %s90
      %s114 = sphi 0, %s116
      %s117 = sphi 0, %s114
      %s118 = sphi 0, %s117
      %s134 = sphi 0, %s118
    $region4: #{tpu_custom_call.1} parent=1 // loop_header_branch
      %15 = sbr.rel (%p13) target = $region8
    $region5: #{tpu_custom_call.1} parent=1 // loop_body
      %s17 = ssub.s32 %s12, 1
      %s18 = ssub.s32 %s12, 2
      %s25 = sadd.s32 1, %s20
      %p26 = scmp.ge.s32.totalorder %s25, 2
      %s27 = scalar_select %p26, 0, %s25
      %s28 = sadd.s32 1, %s19
      %s29 = scalar_select %p26, %s28, %s19
      %p30 = scmp.ge.s32.totalorder %s29, 1
      %s31 = scalar_select %p30, 0, %s29
      %s32 = ssub.s32 %s20, %s27
      %p33 = scmp.eq.s32.totalorder %s32, 0
      %s35 = sadd.s32 %s34, 1
      %s36 = scalar_select %p33, %s34, %s35
      %p39 = pneg %p33
      %p40 = scmp.eq.s32.totalorder %s12, 1
      %p41 = por %p39, %p40
      %p42 = scmp.ne.s32.totalorder %s34, %s37
      %p43 = scmp.eq.s32.totalorder %s12, 0
      %p44 = por %p42, %p43
      %p45 = scmp.ne.s32.totalorder %s34, %s37
      %p46 = scmp.eq.s32.totalorder %s17, 1
      %p47 = por %p45, %p46
      %p48 = scmp.ne.s32.totalorder %s37, %s38
      %p49 = scmp.eq.s32.totalorder %s17, 0
      %p50 = por %p48, %p49
      %p51 = scmp.ne.s32.totalorder %s37, %s38
      %p52 = scmp.eq.s32.totalorder %s18, 1
      %p53 = por %p51, %p52
      %p55 = scmp.ne.s32.totalorder %s38, %s54
      %p56 = scmp.eq.s32.totalorder %s18, 0
      %p57 = por %p55, %p56
      %s58 = ssub.s32 %s19, %s31
      %p59 = scmp.eq.s32.totalorder %s58, 0
      %s61 = sadd.s32 %s60, 1
      %s62 = scalar_select %p59, %s60, %s61
      %p65 = pneg %p59
      %p66 = scmp.eq.s32.totalorder %s12, 1
      %p67 = por %p65, %p66
      %p68 = scmp.ne.s32.totalorder %s60, %s63
      %p69 = scmp.eq.s32.totalorder %s12, 0
      %p70 = por %p68, %p69
      %p71 = scmp.ne.s32.totalorder %s60, %s63
      %p72 = scmp.eq.s32.totalorder %s17, 1
      %p73 = por %p71, %p72
      %p74 = scmp.ne.s32.totalorder %s63, %s64
      %p75 = scmp.eq.s32.totalorder %s17, 0
      %p76 = por %p74, %p75
      %p77 = scmp.ne.s32.totalorder %s63, %s64
      %p78 = scmp.eq.s32.totalorder %s18, 1
      %p79 = por %p77, %p78
      %p81 = scmp.ne.s32.totalorder %s64, %s80
      %p82 = scmp.eq.s32.totalorder %s18, 0
      %p83 = por %p81, %p82
      %s84 = ssub.s32 %s19, %s31
      %p85 = scmp.eq.s32.totalorder %s84, 0
      %s87 = sadd.s32 %s86, 1
      %s88 = scalar_select %p85, %s86, %s87
      %p91 = pneg %p85
      %p92 = scmp.eq.s32.totalorder %s12, 1
      %p93 = por %p91, %p92
      %p94 = scmp.ne.s32.totalorder %s86, %s89
      %p95 = scmp.eq.s32.totalorder %s12, 0
      %p96 = por %p94, %p95
      %p97 = scmp.ne.s32.totalorder %s86, %s89
      %p98 = scmp.eq.s32.totalorder %s17, 1
      %p99 = por %p97, %p98
      %p100 = scmp.ne.s32.totalorder %s89, %s90
      %p101 = scmp.eq.s32.totalorder %s17, 0
      %p102 = por %p100, %p101
      %p103 = scmp.ne.s32.totalorder %s89, %s90
      %p104 = scmp.eq.s32.totalorder %s18, 1
      %p105 = por %p103, %p104
      %p107 = scmp.ne.s32.totalorder %s90, %s106
      %p108 = scmp.eq.s32.totalorder %s18, 0
      %p109 = por %p107, %p108
      %s110 = ssub.s32 %s20, %s27
      %s111 = ssub.s32 %s19, %s31
      %s112 = sor.u32 %s110, %s111
      %p113 = scmp.eq.s32.totalorder %s112, 0
      %s115 = sadd.s32 %s114, 1
      %s116 = scalar_select %p113, %s114, %s115
      %p119 = pneg %p113
      %p120 = scmp.eq.s32.totalorder %s12, 1
      %p121 = por %p119, %p120
      %p122 = scmp.ne.s32.totalorder %s114, %s117
      %p123 = scmp.eq.s32.totalorder %s12, 0
      %p124 = por %p122, %p123
      %p125 = scmp.ne.s32.totalorder %s114, %s117
      %p126 = scmp.eq.s32.totalorder %s17, 1
      %p127 = por %p125, %p126
      %p128 = scmp.ne.s32.totalorder %s117, %s118
      %p129 = scmp.eq.s32.totalorder %s17, 0
      %p130 = por %p128, %p129
      %p131 = scmp.ne.s32.totalorder %s117, %s118
      %p132 = scmp.eq.s32.totalorder %s18, 1
      %p133 = por %p131, %p132
      %p135 = scmp.ne.s32.totalorder %s118, %s134
      %p136 = scmp.eq.s32.totalorder %s18, 0
      %p137 = por %p135, %p136
      %p138 = scmp.le.s32.totalorder 1, %s12
      %p139 = scmp.lt.s32.totalorder %s12, 3
      %p140 = pnand %p138, %p139
      %p141 = pneg %p140
      // Predicated region
      $region9: #{tpu_custom_call.1} parent=5 // pred_check
        _
      $region10: #{tpu_custom_call.1} parent=5 // pred_check_branch
        %143 = sbr.rel (%p140) target = $region12
      $region11: #{tpu_custom_call.1} parent=5 // pred_region
        %s144 = ssub.s32 %s12, 1
        // Predicated region
        $region13: #{tpu_custom_call.1} parent=11 // pred_check
          %p145 = pneg %p76
        $region14: #{tpu_custom_call.1} parent=11 // pred_check_branch
          %147 = sbr.rel (%p145) target = $region16
        $region15: #{tpu_custom_call.1} parent=11 // pred_region
          %p148 = scmp.lt.s32.totalorder %s21, 0
          %s149 = scalar_select %p148, %s21, 0
          %s150 = smul.addr %s149, 2
          %s151 = scalar_lea.vmem %s1, %s150
        $region16: #{tpu_custom_call.1} parent=11 // pred_fallthru
          _
        // Predicated region
        $region17: #{tpu_custom_call.1} parent=11 // pred_check
          %p152 = pneg %p102
        $region18: #{tpu_custom_call.1} parent=11 // pred_check_branch
          %154 = sbr.rel (%p152) target = $region20
        $region19: #{tpu_custom_call.1} parent=11 // pred_region
          %p155 = scmp.lt.s32.totalorder %s21, 0
          %s156 = scalar_select %p155, %s21, 0
          %s157 = scalar_lea.vmem %s2, %s156
        $region20: #{tpu_custom_call.1} parent=11 // pred_fallthru
          _
      $region12: #{tpu_custom_call.1} parent=5 // pred_fallthru
        _
      %p158 = scmp.lt.s32.totalorder %s12, 2
      // Predicated region
      $region21: #{tpu_custom_call.1} parent=5 // pred_check
        %p159 = pneg %p158
      $region22: #{tpu_custom_call.1} parent=5 // pred_check_branch
        %161 = sbr.rel (%p159) target = $region24
      $region23: #{tpu_custom_call.1} parent=5 // pred_region
        // Predicated region
        $region25: #{tpu_custom_call.1} parent=23 // pred_check
          %p162 = pneg %p44
        $region26: #{tpu_custom_call.1} parent=23 // pred_check_branch
          %164 = sbr.rel (%p162) target = $region28
        $region27: #{tpu_custom_call.1} parent=23 // pred_region
          %p165 = scmp.lt.s32.totalorder %s20, 1
          %s166 = scalar_select %p165, %s20, 1
          %s167 = smul.addr %s166, 54
          %s168 = smul.addr %s167, 4
          %s169 = scalar_lea.vmem %s0, %s168
        $region28: #{tpu_custom_call.1} parent=23 // pred_fallthru
          _
      $region24: #{tpu_custom_call.1} parent=5 // pred_fallthru
        _
      %p170 = scmp.le.s32.totalorder 1, %s12
      %p171 = scmp.lt.s32.totalorder %s12, 3
      %p172 = pnand %p170, %p171
      %p173 = pneg %p172
      // Predicated region
      $region29: #{tpu_custom_call.1} parent=5 // pred_check
        _
      $region30: #{tpu_custom_call.1} parent=5 // pred_check_branch
        %175 = sbr.rel (%p172) target = $region32
      $region31: #{tpu_custom_call.1} parent=5 // pred_region
        %s176 = ssub.s32 %s12, 1
        %p177 = scmp.lt.s32.totalorder %s22, 1
        %s178 = scalar_select %p177, %s22, 1
        %s179 = smul.addr %s178, 54
        %s180 = smul.addr %s179, 4
        %s181 = scalar_lea.vmem %s0, %s180
        %p182 = pneg %p50
        %p183 = pneg %p47
        %p184 = scmp.lt.s32.totalorder %s21, 0
        %s185 = scalar_select %p184, %s21, 0
        %s186 = smul.addr %s185, 2
        %s187 = scalar_lea.vmem %s1, %s186
        %p188 = pneg %p76
        %p189 = pneg %p73
        %p190 = scmp.lt.s32.totalorder %s21, 0
        %s191 = scalar_select %p190, %s21, 0
        %s192 = scalar_lea.vmem %s2, %s191
        %p193 = pneg %p102
        %p194 = pneg %p99
        %p195 = pneg %p130
        %p196 = pneg %p127
        %s197 = sand.u32 %s117, 1
        %s198 = scalar_lea.sflag [#allocation4], %s197
        %s199 = sand.u32 %s117, 1
        %s200 = smul.addr %s199, 256
        %s201 = scalar_lea.vmem [#allocation3], %s200
        %p202 = scmp.lt.s32.totalorder %s22, 1
        %s203 = scalar_select %p202, %s22, 1
        %s204 = smul.addr %s203, 54
        %s205 = smul.addr %s204, 4
        %s206 = scalar_lea.vmem %s0, %s205
        %p207 = scmp.lt.s32.totalorder %s21, 0
        %s208 = scalar_select %p207, %s21, 0
        %s209 = smul.addr %s208, 2
        %s210 = scalar_lea.vmem %s1, %s209
        %p211 = scmp.lt.s32.totalorder %s21, 0
        %s212 = scalar_select %p211, %s21, 0
        %s213 = scalar_lea.vmem %s2, %s212
        %v215 = vld [vmem:[%s206] sm:$0xf]
        %v216 = vld [vmem:[%s206 + $0x4] sm:$0xf]
        %v217 = vld [vmem:[%s206 + $0x8] sm:$0xf]
        %v218 = vld [vmem:[%s206 + $0xc] sm:$0xf]
        %v219 = vld [vmem:[%s206 + $0x10] sm:$0xf]
        %v220 = vld [vmem:[%s206 + $0x14] sm:$0xf]
        %v221 = vld [vmem:[%s206 + $0x18] sm:$0xf]
        %v222 = vld [vmem:[%s206 + $0x1c] sm:$0xf]
        %v223 = vld [vmem:[%s206 + $0x20] sm:$0xf]
        %v224 = vld [vmem:[%s206 + $0x24] sm:$0xf]
        %v225 = vld [vmem:[%s206 + $0x28] sm:$0xf]
        %v226 = vld [vmem:[%s206 + $0x2c] sm:$0xf]
        %v227 = vld [vmem:[%s206 + $0x30] sm:$0xf]
        %v228 = vld [vmem:[%s206 + $0x34] sm:$0xf]
        %v229 = vld [vmem:[%s206 + $0x38] sm:$0xf]
        %v230 = vld [vmem:[%s206 + $0x3c] sm:$0xf]
        %v231 = vld [vmem:[%s206 + $0x40] sm:$0xf]
        %v232 = vld [vmem:[%s206 + $0x44] sm:$0xf]
        %v233 = vld [vmem:[%s206 + $0x48] sm:$0xf]
        %v234 = vld [vmem:[%s206 + $0x4c] sm:$0xf]
        %v235 = vld [vmem:[%s206 + $0x50] sm:$0xf]
        %v236 = vld [vmem:[%s206 + $0x54] sm:$0xf]
        %v237 = vld [vmem:[%s206 + $0x58] sm:$0xf]
        %v238 = vld [vmem:[%s206 + $0x5c] sm:$0xf]
        %v239 = vld [vmem:[%s206 + $0x60] sm:$0xf]
        %v240 = vld [vmem:[%s206 + $0x64] sm:$0xf]
        %v241 = vld [vmem:[%s206 + $0x68] sm:$0xf]
        %v242 = vld [vmem:[%s206 + $0x6c] sm:$0xf]
        %v243 = vld [vmem:[%s206 + $0x70] sm:$0xf]
        %v244 = vld [vmem:[%s206 + $0x74] sm:$0xf]
        %v245 = vld [vmem:[%s206 + $0x78] sm:$0xf]
        %v246 = vld [vmem:[%s206 + $0x7c] sm:$0xf]
        %v247 = vld [vmem:[%s206 + $0x80] sm:$0xf]
        %v248 = vld [vmem:[%s206 + $0x84] sm:$0xf]
        %v249 = vld [vmem:[%s206 + $0x88] sm:$0xf]
        %v250 = vld [vmem:[%s206 + $0x8c] sm:$0xf]
        %v251 = vld [vmem:[%s206 + $0x90] sm:$0xf]
        %v252 = vld [vmem:[%s206 + $0x94] sm:$0xf]
        %v253 = vld [vmem:[%s206 + $0x98] sm:$0xf]
        %v254 = vld [vmem:[%s206 + $0x9c] sm:$0xf]
        %v255 = vld [vmem:[%s206 + $0xa0] sm:$0xf]
        %v256 = vld [vmem:[%s206 + $0xa4] sm:$0xf]
        %v257 = vld [vmem:[%s206 + $0xa8] sm:$0xf]
        %v258 = vld [vmem:[%s206 + $0xac] sm:$0xf]
        %v259 = vld [vmem:[%s206 + $0xb0] sm:$0xf]
        %v260 = vld [vmem:[%s206 + $0xb4] sm:$0xf]
        %v261 = vld [vmem:[%s206 + $0xb8] sm:$0xf]
        %v262 = vld [vmem:[%s206 + $0xbc] sm:$0xf]
        %v263 = vld [vmem:[%s210] sm:$0x3]
        %v312 = vunpack.c.l.b16 %v215
        %v313 = vunpack.c.l.b16 %v216
        %v314 = vunpack.c.l.b16 %v217
        %v315 = vunpack.c.l.b16 %v218
        %v316 = vunpack.c.l.b16 %v219
        %v317 = vunpack.c.l.b16 %v220
        %v318 = vunpack.c.l.b16 %v221
        %v319 = vunpack.c.l.b16 %v222
        %v320 = vunpack.c.l.b16 %v223
        %v321 = vunpack.c.l.b16 %v224
        %v322 = vunpack.c.l.b16 %v225
        %v323 = vunpack.c.l.b16 %v226
        %v324 = vunpack.c.l.b16 %v227
        %v325 = vunpack.c.l.b16 %v228
        %v326 = vunpack.c.l.b16 %v229
        %v327 = vunpack.c.l.b16 %v230
        %v328 = vunpack.c.l.b16 %v231
        %v329 = vunpack.c.l.b16 %v232
        %v330 = vunpack.c.l.b16 %v233
        %v331 = vunpack.c.l.b16 %v234
        %v332 = vunpack.c.l.b16 %v235
        %v333 = vunpack.c.l.b16 %v236
        %v334 = vunpack.c.l.b16 %v237
        %v335 = vunpack.c.l.b16 %v238
        %v336 = vunpack.c.l.b16 %v239
        %v337 = vunpack.c.l.b16 %v240
        %v338 = vunpack.c.l.b16 %v241
        %v339 = vunpack.c.l.b16 %v242
        %v340 = vunpack.c.l.b16 %v243
        %v341 = vunpack.c.l.b16 %v244
        %v342 = vunpack.c.l.b16 %v245
        %v343 = vunpack.c.l.b16 %v246
        %v344 = vunpack.c.l.b16 %v247
        %v345 = vunpack.c.l.b16 %v248
        %v346 = vunpack.c.l.b16 %v249
        %v347 = vunpack.c.l.b16 %v250
        %v348 = vunpack.c.l.b16 %v251
        %v349 = vunpack.c.l.b16 %v252
        %v350 = vunpack.c.l.b16 %v253
        %v351 = vunpack.c.l.b16 %v254
        %v352 = vunpack.c.l.b16 %v255
        %v353 = vunpack.c.l.b16 %v256
        %v354 = vunpack.c.l.b16 %v257
        %v355 = vunpack.c.l.b16 %v258
        %v356 = vunpack.c.l.b16 %v259
        %v357 = vunpack.c.l.b16 %v260
        %v358 = vunpack.c.l.b16 %v261
        %v359 = vunpack.c.l.b16 %v262
        %v360 = vpack.c.b16 %v313, %v312
        %v361 = vpack.c.b16 %v315, %v314
        %v362 = vpack.c.b16 %v317, %v316
        %v363 = vpack.c.b16 %v319, %v318
        %v364 = vpack.c.b16 %v321, %v320
        %v365 = vpack.c.b16 %v323, %v322
        %v366 = vpack.c.b16 %v325, %v324
        %v367 = vpack.c.b16 %v327, %v326
        %v368 = vpack.c.b16 %v329, %v328
        %v369 = vpack.c.b16 %v331, %v330
        %v370 = vpack.c.b16 %v333, %v332
        %v371 = vpack.c.b16 %v335, %v334
        %v372 = vpack.c.b16 %v337, %v336
        %v373 = vpack.c.b16 %v339, %v338
        %v374 = vpack.c.b16 %v341, %v340
        %v375 = vpack.c.b16 %v343, %v342
        %v376 = vpack.c.b16 %v345, %v344
        %v377 = vpack.c.b16 %v347, %v346
        %v378 = vpack.c.b16 %v349, %v348
        %v379 = vpack.c.b16 %v351, %v350
        %v380 = vpack.c.b16 %v353, %v352
        %v381 = vpack.c.b16 %v355, %v354
        %v382 = vpack.c.b16 %v357, %v356
        %v383 = vpack.c.b16 %v359, %v358
        %vm384 = vcmask 31744
        %v386 = vsel %vm384, %v360, 0
        %v389 = vsel %vm384, %v361, 0
        %v392 = vsel %vm384, %v362, 0
        %v395 = vsel %vm384, %v363, 0
        %v398 = vsel %vm384, %v364, 0
        %v401 = vsel %vm384, %v365, 0
        %v404 = vsel %vm384, %v366, 0
        %v407 = vsel %vm384, %v367, 0
        %v410 = vsel %vm384, %v368, 0
        %v413 = vsel %vm384, %v369, 0
        %v416 = vsel %vm384, %v370, 0
        %v419 = vsel %vm384, %v371, 0
        %v422 = vsel %vm384, %v372, 0
        %v425 = vsel %vm384, %v373, 0
        %v428 = vsel %vm384, %v374, 0
        %v431 = vsel %vm384, %v375, 0
        %v434 = vsel %vm384, %v376, 0
        %v437 = vsel %vm384, %v377, 0
        %v440 = vsel %vm384, %v378, 0
        %v443 = vsel %vm384, %v379, 0
        %v446 = vsel %vm384, %v380, 0
        %v449 = vsel %vm384, %v381, 0
        %v452 = vsel %vm384, %v382, 0
        %v455 = vsel %vm384, %v383, 0
        %vm457 = vcmask 1041408
        %v459 = vsel %vm457, %v263, 0
        %461 = vmatprep.subr.bf16.mxu0 0
        %462 = vmatpush1.bf16.msra.mxu0 %v459
        %463 = vmatprep.subr.bf16.mxu0 0
        %464 = vmatpush1.bf16.msra.mxu0 0
        %465 = vmatprep.subr.bf16.mxu0 0
        %466 = vmatpush1.bf16.msra.mxu0 0
        %467 = vmatprep.subr.bf16.mxu0 0
        %468 = vmatpush1.bf16.msra.mxu0 0
        %469 = vmatprep.subr.bf16.mxu0 0
        %470 = vmatpush1.bf16.msra.mxu0 0
        %471 = vmatprep.subr.bf16.mxu0 0
        %472 = vmatpush1.bf16.msra.mxu0 0
        %473 = vmatprep.subr.bf16.mxu0 0
        %474 = vmatpush1.bf16.msra.mxu0 0
        %475 = vmatprep.subr.bf16.mxu0 0
        %476 = vmatpush1.bf16.msra.mxu0 0
        %477 = vmatprep.subr.bf16.mxu0 0
        %478 = vmatpush1.bf16.msra.mxu0 0
        %479 = vmatprep.subr.bf16.mxu0 0
        %480 = vmatpush1.bf16.msra.mxu0 0
        %481 = vmatprep.subr.bf16.mxu0 0
        %482 = vmatpush1.bf16.msra.mxu0 0
        %483 = vmatprep.subr.bf16.mxu0 0
        %484 = vmatpush1.bf16.msra.mxu0 0
        %485 = vmatprep.subr.bf16.mxu0 0
        %486 = vmatpush1.bf16.msra.mxu0 0
        %487 = vmatprep.subr.bf16.mxu0 0
        %488 = vmatpush1.bf16.msra.mxu0 0
        %489 = vmatprep.subr.bf16.mxu0 0
        %490 = vmatpush1.bf16.msra.mxu0 0
        %491 = vmatprep.subr.bf16.mxu0 0
        %492 = vmatpush1.bf16.msra.mxu0 0
        %493 = vmatprep.mubr.bf16.mxu0 0
        %494 = vmatmul.mubr.bf16.gmra.mrb[0].mxu0 %v386
        %v495 = vpop.f32.mrb[0].mxu0
        %v496 = vadd.f32 0.0, %v495
        %v497 = vpop.f32.mrb[0].mxu0
        %v498 = vpop.f32.mrb[0].mxu0
        %v499 = vadd.f32 0.0, %v498
        %v500 = vpop.f32.mrb[0].mxu0
        %501 = vmatprep.mubr.bf16.mxu0 0
        %502 = vmatmul.mubr.bf16.gmra.mrb[0].mxu0 %v389
        %v503 = vpop.f32.mrb[0].mxu0
        %v504 = vadd.f32 0.0, %v503
        %v505 = vpop.f32.mrb[0].mxu0
        %v506 = vpop.f32.mrb[0].mxu0
        %v507 = vadd.f32 0.0, %v506
        %v508 = vpop.f32.mrb[0].mxu0
        %509 = vmatprep.mubr.bf16.mxu0 0
        %510 = vmatmul.mubr.bf16.gmra.mrb[0].mxu0 %v392
        %v511 = vpop.f32.mrb[0].mxu0
        %v512 = vadd.f32 0.0, %v511
        %v513 = vpop.f32.mrb[0].mxu0
        %v514 = vpop.f32.mrb[0].mxu0
        %v515 = vadd.f32 0.0, %v514
        %v516 = vpop.f32.mrb[0].mxu0
        %517 = vmatprep.mubr.bf16.mxu0 0
        %518 = vmatmul.mubr.bf16.gmra.mrb[0].mxu0 %v395
        %v519 = vpop.f32.mrb[0].mxu0
        %v520 = vadd.f32 0.0, %v519
        %v521 = vpop.f32.mrb[0].mxu0
        %v522 = vpop.f32.mrb[0].mxu0
        %v523 = vadd.f32 0.0, %v522
        %v524 = vpop.f32.mrb[0].mxu0
        %525 = vmatprep.mubr.bf16.mxu0 0
        %526 = vmatmul.mubr.bf16.gmra.mrb[0].mxu0 %v398
        %v527 = vpop.f32.mrb[0].mxu0
        %v528 = vadd.f32 0.0, %v527
        %v529 = vpop.f32.mrb[0].mxu0
        %v530 = vpop.f32.mrb[0].mxu0
        %v531 = vadd.f32 0.0, %v530
        %v532 = vpop.f32.mrb[0].mxu0
        %533 = vmatprep.mubr.bf16.mxu0 0
        %534 = vmatmul.mubr.bf16.gmra.mrb[0].mxu0 %v401
        %v535 = vpop.f32.mrb[0].mxu0
        %v536 = vadd.f32 0.0, %v535
        %v537 = vpop.f32.mrb[0].mxu0
        %v538 = vpop.f32.mrb[0].mxu0
        %v539 = vadd.f32 0.0, %v538
        %v540 = vpop.f32.mrb[0].mxu0
        %541 = vmatprep.mubr.bf16.mxu0 0
        %542 = vmatmul.mubr.bf16.gmra.mrb[0].mxu0 %v404
        %v543 = vpop.f32.mrb[0].mxu0
        %v544 = vadd.f32 0.0, %v543
        %v545 = vpop.f32.mrb[0].mxu0
        %v546 = vpop.f32.mrb[0].mxu0
        %v547 = vadd.f32 0.0, %v546
        %v548 = vpop.f32.mrb[0].mxu0
        %549 = vmatprep.mubr.bf16.mxu0 0
        %550 = vmatmul.mubr.bf16.gmra.mrb[0].mxu0 %v407
        %v551 = vpop.f32.mrb[0].mxu0
        %v552 = vadd.f32 0.0, %v551
        %v553 = vpop.f32.mrb[0].mxu0
        %v554 = vpop.f32.mrb[0].mxu0
        %v555 = vadd.f32 0.0, %v554
        %v556 = vpop.f32.mrb[0].mxu0
        %557 = vmatprep.mubr.bf16.mxu0 0
        %558 = vmatmul.mubr.bf16.gmra.mrb[0].mxu0 %v410
        %v559 = vpop.f32.mrb[0].mxu0
        %v560 = vadd.f32 0.0, %v559
        %v561 = vpop.f32.mrb[0].mxu0
        %v562 = vpop.f32.mrb[0].mxu0
        %v563 = vadd.f32 0.0, %v562
        %v564 = vpop.f32.mrb[0].mxu0
        %565 = vmatprep.mubr.bf16.mxu0 0
        %566 = vmatmul.mubr.bf16.gmra.mrb[0].mxu0 %v413
        %v567 = vpop.f32.mrb[0].mxu0
        %v568 = vadd.f32 0.0, %v567
        %v569 = vpop.f32.mrb[0].mxu0
        %v570 = vpop.f32.mrb[0].mxu0
        %v571 = vadd.f32 0.0, %v570
        %v572 = vpop.f32.mrb[0].mxu0
        %573 = vmatprep.mubr.bf16.mxu0 0
        %574 = vmatmul.mubr.bf16.gmra.mrb[0].mxu0 %v416
        %v575 = vpop.f32.mrb[0].mxu0
        %v576 = vadd.f32 0.0, %v575
        %v577 = vpop.f32.mrb[0].mxu0
        %v578 = vpop.f32.mrb[0].mxu0
        %v579 = vadd.f32 0.0, %v578
        %v580 = vpop.f32.mrb[0].mxu0
        %581 = vmatprep.mubr.bf16.mxu0 0
        %582 = vmatmul.mubr.bf16.gmra.mrb[0].mxu0 %v419
        %v583 = vpop.f32.mrb[0].mxu0
        %v584 = vadd.f32 0.0, %v583
        %v585 = vpop.f32.mrb[0].mxu0
        %v586 = vpop.f32.mrb[0].mxu0
        %v587 = vadd.f32 0.0, %v586
        %v588 = vpop.f32.mrb[0].mxu0
        %589 = vmatprep.mubr.bf16.mxu0 0
        %590 = vmatmul.mubr.bf16.gmra.mrb[0].mxu0 %v422
        %v591 = vpop.f32.mrb[0].mxu0
        %v592 = vadd.f32 0.0, %v591
        %v593 = vpop.f32.mrb[0].mxu0
        %v594 = vpop.f32.mrb[0].mxu0
        %v595 = vadd.f32 0.0, %v594
        %v596 = vpop.f32.mrb[0].mxu0
        %597 = vmatprep.mubr.bf16.mxu0 0
        %598 = vmatmul.mubr.bf16.gmra.mrb[0].mxu0 %v425
        %v599 = vpop.f32.mrb[0].mxu0
        %v600 = vadd.f32 0.0, %v599
        %v601 = vpop.f32.mrb[0].mxu0
        %v602 = vpop.f32.mrb[0].mxu0
        %v603 = vadd.f32 0.0, %v602
        %v604 = vpop.f32.mrb[0].mxu0
        %605 = vmatprep.mubr.bf16.mxu0 0
        %606 = vmatmul.mubr.bf16.gmra.mrb[0].mxu0 %v428
        %v607 = vpop.f32.mrb[0].mxu0
        %v608 = vadd.f32 0.0, %v607
        %v609 = vpop.f32.mrb[0].mxu0
        %v610 = vpop.f32.mrb[0].mxu0
        %v611 = vadd.f32 0.0, %v610
        %v612 = vpop.f32.mrb[0].mxu0
        %613 = vmatprep.mubr.bf16.mxu0 0
        %614 = vmatmul.mubr.bf16.gmra.mrb[0].mxu0 %v431
        %v615 = vpop.f32.mrb[0].mxu0
        %v616 = vadd.f32 0.0, %v615
        %v617 = vpop.f32.mrb[0].mxu0
        %v618 = vpop.f32.mrb[0].mxu0
        %v619 = vadd.f32 0.0, %v618
        %v620 = vpop.f32.mrb[0].mxu0
        %621 = vmatprep.mubr.bf16.mxu0 0
        %622 = vmatmul.mubr.bf16.gmra.mrb[0].mxu0 %v434
        %v623 = vpop.f32.mrb[0].mxu0
        %v624 = vadd.f32 0.0, %v623
        %v625 = vpop.f32.mrb[0].mxu0
        %v626 = vpop.f32.mrb[0].mxu0
        %v627 = vadd.f32 0.0, %v626
        %v628 = vpop.f32.mrb[0].mxu0
        %629 = vmatprep.mubr.bf16.mxu0 0
        %630 = vmatmul.mubr.bf16.gmra.mrb[0].mxu0 %v437
        %v631 = vpop.f32.mrb[0].mxu0
        %v632 = vadd.f32 0.0, %v631
        %v633 = vpop.f32.mrb[0].mxu0
        %v634 = vpop.f32.mrb[0].mxu0
        %v635 = vadd.f32 0.0, %v634
        %v636 = vpop.f32.mrb[0].mxu0
        %637 = vmatprep.mubr.bf16.mxu0 0
        %638 = vmatmul.mubr.bf16.gmra.mrb[0].mxu0 %v440
        %v639 = vpop.f32.mrb[0].mxu0
        %v640 = vadd.f32 0.0, %v639
        %v641 = vpop.f32.mrb[0].mxu0
        %v642 = vpop.f32.mrb[0].mxu0
        %v643 = vadd.f32 0.0, %v642
        %v644 = vpop.f32.mrb[0].mxu0
        %645 = vmatprep.mubr.bf16.mxu0 0
        %646 = vmatmul.mubr.bf16.gmra.mrb[0].mxu0 %v443
        %v647 = vpop.f32.mrb[0].mxu0
        %v648 = vadd.f32 0.0, %v647
        %v649 = vpop.f32.mrb[0].mxu0
        %v650 = vpop.f32.mrb[0].mxu0
        %v651 = vadd.f32 0.0, %v650
        %v652 = vpop.f32.mrb[0].mxu0
        %653 = vmatprep.mubr.bf16.mxu0 0
        %654 = vmatmul.mubr.bf16.gmra.mrb[0].mxu0 %v446
        %v655 = vpop.f32.mrb[0].mxu0
        %v656 = vadd.f32 0.0, %v655
        %v657 = vpop.f32.mrb[0].mxu0
        %v658 = vpop.f32.mrb[0].mxu0
        %v659 = vadd.f32 0.0, %v658
        %v660 = vpop.f32.mrb[0].mxu0
        %661 = vmatprep.mubr.bf16.mxu0 0
        %662 = vmatmul.mubr.bf16.gmra.mrb[0].mxu0 %v449
        %v663 = vpop.f32.mrb[0].mxu0
        %v664 = vadd.f32 0.0, %v663
        %v665 = vpop.f32.mrb[0].mxu0
        %v666 = vpop.f32.mrb[0].mxu0
        %v667 = vadd.f32 0.0, %v666
        %v668 = vpop.f32.mrb[0].mxu0
        %669 = vmatprep.mubr.bf16.mxu0 0
        %670 = vmatmul.mubr.bf16.gmra.mrb[0].mxu0 %v452
        %v671 = vpop.f32.mrb[0].mxu0
        %v672 = vadd.f32 0.0, %v671
        %v673 = vpop.f32.mrb[0].mxu0
        %v674 = vpop.f32.mrb[0].mxu0
        %v675 = vadd.f32 0.0, %v674
        %v676 = vpop.f32.mrb[0].mxu0
        %677 = vmatprep.mubr.bf16.mxu0 0
        %678 = vmatmul.mubr.bf16.gmra.mrb[0].mxu0 %v455
        %v679 = vpop.f32.mrb[0].mxu0
        %v680 = vadd.f32 0.0, %v679
        %v681 = vpop.f32.mrb[0].mxu0
        %v682 = vpop.f32.mrb[0].mxu0
        %v683 = vadd.f32 0.0, %v682
        %v684 = vpop.f32.mrb[0].mxu0
        %685 = vdwg.mxu0
        %686 = vst [vmem:[#allocation2] sm:$0xff] %v496
        %687 = vst [vmem:[#allocation2 + $0x8] sm:$0xff] %v499
        %688 = vst [vmem:[#allocation2 + $0x10] sm:$0xff] %v504
        %689 = vst [vmem:[#allocation2 + $0x18] sm:$0xff] %v507
        %690 = vst [vmem:[#allocation2 + $0x20] sm:$0xff] %v512
        %691 = vst [vmem:[#allocation2 + $0x28] sm:$0xff] %v515
        %692 = vst [vmem:[#allocation2 + $0x30] sm:$0xff] %v520
        %693 = vst [vmem:[#allocation2 + $0x38] sm:$0xff] %v523
        %694 = vst [vmem:[#allocation2 + $0x40] sm:$0xff] %v528
        %695 = vst [vmem:[#allocation2 + $0x48] sm:$0xff] %v531
        %696 = vst [vmem:[#allocation2 + $0x50] sm:$0xff] %v536
        %697 = vst [vmem:[#allocation2 + $0x58] sm:$0xff] %v539
        %698 = vst [vmem:[#allocation2 + $0x60] sm:$0xff] %v544
        %699 = vst [vmem:[#allocation2 + $0x68] sm:$0xff] %v547
        %700 = vst [vmem:[#allocation2 + $0x70] sm:$0xff] %v552
        %701 = vst [vmem:[#allocation2 + $0x78] sm:$0xff] %v555
        %702 = vst [vmem:[#allocation2 + $0x80] sm:$0xff] %v560
        %703 = vst [vmem:[#allocation2 + $0x88] sm:$0xff] %v563
        %704 = vst [vmem:[#allocation2 + $0x90] sm:$0xff] %v568
        %705 = vst [vmem:[#allocation2 + $0x98] sm:$0xff] %v571
        %706 = vst [vmem:[#allocation2 + $0xa0] sm:$0xff] %v576
        %707 = vst [vmem:[#allocation2 + $0xa8] sm:$0xff] %v579
        %708 = vst [vmem:[#allocation2 + $0xb0] sm:$0xff] %v584
        %709 = vst [vmem:[#allocation2 + $0xb8] sm:$0xff] %v587
        %710 = vst [vmem:[#allocation2 + $0xc0] sm:$0xff] %v592
        %711 = vst [vmem:[#allocation2 + $0xc8] sm:$0xff] %v595
        %712 = vst [vmem:[#allocation2 + $0xd0] sm:$0xff] %v600
        %713 = vst [vmem:[#allocation2 + $0xd8] sm:$0xff] %v603
        %714 = vst [vmem:[#allocation2 + $0xe0] sm:$0xff] %v608
        %715 = vst [vmem:[#allocation2 + $0xe8] sm:$0xff] %v611
        %716 = vst [vmem:[#allocation2 + $0xf0] sm:$0xff] %v616
        %717 = vst [vmem:[#allocation2 + $0xf8] sm:$0xff] %v619
        %718 = vst [vmem:[#allocation2 + $0x100] sm:$0xff] %v624
        %719 = vst [vmem:[#allocation2 + $0x108] sm:$0xff] %v627
        %720 = vst [vmem:[#allocation2 + $0x110] sm:$0xff] %v632
        %721 = vst [vmem:[#allocation2 + $0x118] sm:$0xff] %v635
        %722 = vst [vmem:[#allocation2 + $0x120] sm:$0xff] %v640
        %723 = vst [vmem:[#allocation2 + $0x128] sm:$0xff] %v643
        %724 = vst [vmem:[#allocation2 + $0x130] sm:$0xff] %v648
        %725 = vst [vmem:[#allocation2 + $0x138] sm:$0xff] %v651
        %726 = vst [vmem:[#allocation2 + $0x140] sm:$0xff] %v656
        %727 = vst [vmem:[#allocation2 + $0x148] sm:$0xff] %v659
        %728 = vst [vmem:[#allocation2 + $0x150] sm:$0xff] %v664
        %729 = vst [vmem:[#allocation2 + $0x158] sm:$0xff] %v667
        %730 = vst [vmem:[#allocation2 + $0x160] sm:$0xff] %v672
        %731 = vst [vmem:[#allocation2 + $0x168] sm:$0xff] %v675
        %732 = vst [vmem:[#allocation2 + $0x170] sm:$0xff] %v680
        %733 = vst [vmem:[#allocation2 + $0x178] sm:$0xff] %v683
        %s734 = scalar_lea.vmem %s210, 2
        %v735 = vld [vmem:[%s734] sm:$0x3]
        %v737 = vsel %vm457, %v735, 0
        %739 = vmatprep.subr.bf16.mxu0 0
        %740 = vmatpush1.bf16.msra.mxu0 %v737
        %741 = vmatprep.subr.bf16.mxu0 0
        %742 = vmatpush1.bf16.msra.mxu0 0
        %743 = vmatprep.subr.bf16.mxu0 0
        %744 = vmatpush1.bf16.msra.mxu0 0
        %745 = vmatprep.subr.bf16.mxu0 0
        %746 = vmatpush1.bf16.msra.mxu0 0
        %747 = vmatprep.subr.bf16.mxu0 0
        %748 = vmatpush1.bf16.msra.mxu0 0
        %749 = vmatprep.subr.bf16.mxu0 0
        %750 = vmatpush1.bf16.msra.mxu0 0
        %751 = vmatprep.subr.bf16.mxu0 0
        %752 = vmatpush1.bf16.msra.mxu0 0
        %753 = vmatprep.subr.bf16.mxu0 0
        %754 = vmatpush1.bf16.msra.mxu0 0
        %755 = vmatprep.subr.bf16.mxu0 0
        %756 = vmatpush1.bf16.msra.mxu0 0
        %757 = vmatprep.subr.bf16.mxu0 0
        %758 = vmatpush1.bf16.msra.mxu0 0
        %759 = vmatprep.subr.bf16.mxu0 0
        %760 = vmatpush1.bf16.msra.mxu0 0
        %761 = vmatprep.subr.bf16.mxu0 0
        %762 = vmatpush1.bf16.msra.mxu0 0
        %763 = vmatprep.subr.bf16.mxu0 0
        %764 = vmatpush1.bf16.msra.mxu0 0
        %765 = vmatprep.subr.bf16.mxu0 0
        %766 = vmatpush1.bf16.msra.mxu0 0
        %767 = vmatprep.subr.bf16.mxu0 0
        %768 = vmatpush1.bf16.msra.mxu0 0
        %769 = vmatprep.subr.bf16.mxu0 0
        %770 = vmatpush1.bf16.msra.mxu0 0
        %771 = vmatprep.mubr.bf16.mxu0 0
        %772 = vmatmul.mubr.bf16.gmra.mrb[0].mxu0 %v386
        %v773 = vpop.f32.mrb[0].mxu0
        %v774 = vadd.f32 0.0, %v773
        %v775 = vpop.f32.mrb[0].mxu0
        %v776 = vpop.f32.mrb[0].mxu0
        %v777 = vadd.f32 0.0, %v776
        %v778 = vpop.f32.mrb[0].mxu0
        %779 = vmatprep.mubr.bf16.mxu0 0
        %780 = vmatmul.mubr.bf16.gmra.mrb[0].mxu0 %v389
        %v781 = vpop.f32.mrb[0].mxu0
        %v782 = vadd.f32 0.0, %v781
        %v783 = vpop.f32.mrb[0].mxu0
        %v784 = vpop.f32.mrb[0].mxu0
        %v785 = vadd.f32 0.0, %v784
        %v786 = vpop.f32.mrb[0].mxu0
        %787 = vmatprep.mubr.bf16.mxu0 0
        %788 = vmatmul.mubr.bf16.gmra.mrb[0].mxu0 %v392
        %v789 = vpop.f32.mrb[0].mxu0
        %v790 = vadd.f32 0.0, %v789
        %v791 = vpop.f32.mrb[0].mxu0
        %v792 = vpop.f32.mrb[0].mxu0
        %v793 = vadd.f32 0.0, %v792
        %v794 = vpop.f32.mrb[0].mxu0
        %795 = vmatprep.mubr.bf16.mxu0 0
        %796 = vmatmul.mubr.bf16.gmra.mrb[0].mxu0 %v395
        %v797 = vpop.f32.mrb[0].mxu0
        %v798 = vadd.f32 0.0, %v797
        %v799 = vpop.f32.mrb[0].mxu0
        %v800 = vpop.f32.mrb[0].mxu0
        %v801 = vadd.f32 0.0, %v800
        %v802 = vpop.f32.mrb[0].mxu0
        %803 = vmatprep.mubr.bf16.mxu0 0
        %804 = vmatmul.mubr.bf16.gmra.mrb[0].mxu0 %v398
        %v805 = vpop.f32.mrb[0].mxu0
        %v806 = vadd.f32 0.0, %v805
        %v807 = vpop.f32.mrb[0].mxu0
        %v808 = vpop.f32.mrb[0].mxu0
        %v809 = vadd.f32 0.0, %v808
        %v810 = vpop.f32.mrb[0].mxu0
        %811 = vmatprep.mubr.bf16.mxu0 0
        %812 = vmatmul.mubr.bf16.gmra.mrb[0].mxu0 %v401
        %v813 = vpop.f32.mrb[0].mxu0
        %v814 = vadd.f32 0.0, %v813
        %v815 = vpop.f32.mrb[0].mxu0
        %v816 = vpop.f32.mrb[0].mxu0
        %v817 = vadd.f32 0.0, %v816
        %v818 = vpop.f32.mrb[0].mxu0
        %819 = vmatprep.mubr.bf16.mxu0 0
        %820 = vmatmul.mubr.bf16.gmra.mrb[0].mxu0 %v404
        %v821 = vpop.f32.mrb[0].mxu0
        %v822 = vadd.f32 0.0, %v821
        %v823 = vpop.f32.mrb[0].mxu0
        %v824 = vpop.f32.mrb[0].mxu0
        %v825 = vadd.f32 0.0, %v824
        %v826 = vpop.f32.mrb[0].mxu0
        %827 = vmatprep.mubr.bf16.mxu0 0
        %828 = vmatmul.mubr.bf16.gmra.mrb[0].mxu0 %v407
        %v829 = vpop.f32.mrb[0].mxu0
        %v830 = vadd.f32 0.0, %v829
        %v831 = vpop.f32.mrb[0].mxu0
        %v832 = vpop.f32.mrb[0].mxu0
        %v833 = vadd.f32 0.0, %v832
        %v834 = vpop.f32.mrb[0].mxu0
        %835 = vmatprep.mubr.bf16.mxu0 0
        %836 = vmatmul.mubr.bf16.gmra.mrb[0].mxu0 %v410
        %v837 = vpop.f32.mrb[0].mxu0
        %v838 = vadd.f32 0.0, %v837
        %v839 = vpop.f32.mrb[0].mxu0
        %v840 = vpop.f32.mrb[0].mxu0
        %v841 = vadd.f32 0.0, %v840
        %v842 = vpop.f32.mrb[0].mxu0
        %843 = vmatprep.mubr.bf16.mxu0 0
        %844 = vmatmul.mubr.bf16.gmra.mrb[0].mxu0 %v413
        %v845 = vpop.f32.mrb[0].mxu0
        %v846 = vadd.f32 0.0, %v845
        %v847 = vpop.f32.mrb[0].mxu0
        %v848 = vpop.f32.mrb[0].mxu0
        %v849 = vadd.f32 0.0, %v848
        %v850 = vpop.f32.mrb[0].mxu0
        %851 = vmatprep.mubr.bf16.mxu0 0
        %852 = vmatmul.mubr.bf16.gmra.mrb[0].mxu0 %v416
        %v853 = vpop.f32.mrb[0].mxu0
        %v854 = vadd.f32 0.0, %v853
        %v855 = vpop.f32.mrb[0].mxu0
        %v856 = vpop.f32.mrb[0].mxu0
        %v857 = vadd.f32 0.0, %v856
        %v858 = vpop.f32.mrb[0].mxu0
        %859 = vmatprep.mubr.bf16.mxu0 0
        %860 = vmatmul.mubr.bf16.gmra.mrb[0].mxu0 %v419
        %v861 = vpop.f32.mrb[0].mxu0
        %v862 = vadd.f32 0.0, %v861
        %v863 = vpop.f32.mrb[0].mxu0
        %v864 = vpop.f32.mrb[0].mxu0
        %v865 = vadd.f32 0.0, %v864
        %v866 = vpop.f32.mrb[0].mxu0
        %867 = vmatprep.mubr.bf16.mxu0 0
        %868 = vmatmul.mubr.bf16.gmra.mrb[0].mxu0 %v422
        %v869 = vpop.f32.mrb[0].mxu0
        %v870 = vadd.f32 0.0, %v869
        %v871 = vpop.f32.mrb[0].mxu0
        %v872 = vpop.f32.mrb[0].mxu0
        %v873 = vadd.f32 0.0, %v872
        %v874 = vpop.f32.mrb[0].mxu0
        %875 = vmatprep.mubr.bf16.mxu0 0
        %876 = vmatmul.mubr.bf16.gmra.mrb[0].mxu0 %v425
        %v877 = vpop.f32.mrb[0].mxu0
        %v878 = vadd.f32 0.0, %v877
        %v879 = vpop.f32.mrb[0].mxu0
        %v880 = vpop.f32.mrb[0].mxu0
        %v881 = vadd.f32 0.0, %v880
        %v882 = vpop.f32.mrb[0].mxu0
        %883 = vmatprep.mubr.bf16.mxu0 0
        %884 = vmatmul.mubr.bf16.gmra.mrb[0].mxu0 %v428
        %v885 = vpop.f32.mrb[0].mxu0
        %v886 = vadd.f32 0.0, %v885
        %v887 = vpop.f32.mrb[0].mxu0
        %v888 = vpop.f32.mrb[0].mxu0
        %v889 = vadd.f32 0.0, %v888
        %v890 = vpop.f32.mrb[0].mxu0
        %891 = vmatprep.mubr.bf16.mxu0 0
        %892 = vmatmul.mubr.bf16.gmra.mrb[0].mxu0 %v431
        %v893 = vpop.f32.mrb[0].mxu0
        %v894 = vadd.f32 0.0, %v893
        %v895 = vpop.f32.mrb[0].mxu0
        %v896 = vpop.f32.mrb[0].mxu0
        %v897 = vadd.f32 0.0, %v896
        %v898 = vpop.f32.mrb[0].mxu0
        %899 = vmatprep.mubr.bf16.mxu0 0
        %900 = vmatmul.mubr.bf16.gmra.mrb[0].mxu0 %v434
        %v901 = vpop.f32.mrb[0].mxu0
        %v902 = vadd.f32 0.0, %v901
        %v903 = vpop.f32.mrb[0].mxu0
        %v904 = vpop.f32.mrb[0].mxu0
        %v905 = vadd.f32 0.0, %v904
        %v906 = vpop.f32.mrb[0].mxu0
        %907 = vmatprep.mubr.bf16.mxu0 0
        %908 = vmatmul.mubr.bf16.gmra.mrb[0].mxu0 %v437
        %v909 = vpop.f32.mrb[0].mxu0
        %v910 = vadd.f32 0.0, %v909
        %v911 = vpop.f32.mrb[0].mxu0
        %v912 = vpop.f32.mrb[0].mxu0
        %v913 = vadd.f32 0.0, %v912
        %v914 = vpop.f32.mrb[0].mxu0
        %915 = vmatprep.mubr.bf16.mxu0 0
        %916 = vmatmul.mubr.bf16.gmra.mrb[0].mxu0 %v440
        %v917 = vpop.f32.mrb[0].mxu0
        %v918 = vadd.f32 0.0, %v917
        %v919 = vpop.f32.mrb[0].mxu0
        %v920 = vpop.f32.mrb[0].mxu0
        %v921 = vadd.f32 0.0, %v920
        %v922 = vpop.f32.mrb[0].mxu0
        %923 = vmatprep.mubr.bf16.mxu0 0
        %924 = vmatmul.mubr.bf16.gmra.mrb[0].mxu0 %v443
        %v925 = vpop.f32.mrb[0].mxu0
        %v926 = vadd.f32 0.0, %v925
        %v927 = vpop.f32.mrb[0].mxu0
        %v928 = vpop.f32.mrb[0].mxu0
        %v929 = vadd.f32 0.0, %v928
        %v930 = vpop.f32.mrb[0].mxu0
        %931 = vmatprep.mubr.bf16.mxu0 0
        %932 = vmatmul.mubr.bf16.gmra.mrb[0].mxu0 %v446
        %v933 = vpop.f32.mrb[0].mxu0
        %v934 = vadd.f32 0.0, %v933
        %v935 = vpop.f32.mrb[0].mxu0
        %v936 = vpop.f32.mrb[0].mxu0
        %v937 = vadd.f32 0.0, %v936
        %v938 = vpop.f32.mrb[0].mxu0
        %939 = vmatprep.mubr.bf16.mxu0 0
        %940 = vmatmul.mubr.bf16.gmra.mrb[0].mxu0 %v449
        %v941 = vpop.f32.mrb[0].mxu0
        %v942 = vadd.f32 0.0, %v941
        %v943 = vpop.f32.mrb[0].mxu0
        %v944 = vpop.f32.mrb[0].mxu0
        %v945 = vadd.f32 0.0, %v944
        %v946 = vpop.f32.mrb[0].mxu0
        %947 = vmatprep.mubr.bf16.mxu0 0
        %948 = vmatmul.mubr.bf16.gmra.mrb[0].mxu0 %v452
        %v949 = vpop.f32.mrb[0].mxu0
        %v950 = vadd.f32 0.0, %v949
        %v951 = vpop.f32.mrb[0].mxu0
        %v952 = vpop.f32.mrb[0].mxu0
        %v953 = vadd.f32 0.0, %v952
        %v954 = vpop.f32.mrb[0].mxu0
        %955 = vmatprep.mubr.bf16.mxu0 0
        %956 = vmatmul.mubr.bf16.gmra.mrb[0].mxu0 %v455
        %v957 = vpop.f32.mrb[0].mxu0
        %v958 = vadd.f32 0.0, %v957
        %v959 = vpop.f32.mrb[0].mxu0
        %v960 = vpop.f32.mrb[0].mxu0
        %v961 = vadd.f32 0.0, %v960
        %v962 = vpop.f32.mrb[0].mxu0
        %963 = vdwg.mxu0
        %v964 = vrot.slane %v774, 1
        %v965 = vrot.slane %v777, 1
        %v966 = vrot.slane %v782, 1
        %v967 = vrot.slane %v785, 1
        %v968 = vrot.slane %v790, 1
        %v969 = vrot.slane %v793, 1
        %v970 = vrot.slane %v798, 1
        %v971 = vrot.slane %v801, 1
        %v972 = vrot.slane %v806, 1
        %v973 = vrot.slane %v809, 1
        %v974 = vrot.slane %v814, 1
        %v975 = vrot.slane %v817, 1
        %v976 = vrot.slane %v822, 1
        %v977 = vrot.slane %v825, 1
        %v978 = vrot.slane %v830, 1
        %v979 = vrot.slane %v833, 1
        %v980 = vrot.slane %v838, 1
        %v981 = vrot.slane %v841, 1
        %v982 = vrot.slane %v846, 1
        %v983 = vrot.slane %v849, 1
        %v984 = vrot.slane %v854, 1
        %v985 = vrot.slane %v857, 1
        %v986 = vrot.slane %v862, 1
        %v987 = vrot.slane %v865, 1
        %v988 = vrot.slane %v870, 1
        %v989 = vrot.slane %v873, 1
        %v990 = vrot.slane %v878, 1
        %v991 = vrot.slane %v881, 1
        %v992 = vrot.slane %v886, 1
        %v993 = vrot.slane %v889, 1
        %v994 = vrot.slane %v894, 1
        %v995 = vrot.slane %v897, 1
        %v996 = vrot.slane %v902, 1
        %v997 = vrot.slane %v905, 1
        %v998 = vrot.slane %v910, 1
        %v999 = vrot.slane %v913, 1
        %v1000 = vrot.slane %v918, 1
        %v1001 = vrot.slane %v921, 1
        %v1002 = vrot.slane %v926, 1
        %v1003 = vrot.slane %v929, 1
        %v1004 = vrot.slane %v934, 1
        %v1005 = vrot.slane %v937, 1
        %v1006 = vrot.slane %v942, 1
        %v1007 = vrot.slane %v945, 1
        %v1008 = vrot.slane %v950, 1
        %v1009 = vrot.slane %v953, 1
        %v1010 = vrot.slane %v958, 1
        %v1011 = vrot.slane %v961, 1
        %v1012 = vlaneseq
        %v1013 = vshrl.u32 %v1012, 7
        %vm1014 = vcmp.lt.s32.totalorder %v1013, 7
        %v1015 = vsel %vm1014, %v1010, %v1011
        %v1016 = vsel %vm1014, %v1009, %v1010
        %v1017 = vsel %vm1014, %v1008, %v1009
        %v1018 = vsel %vm1014, %v1007, %v1008
        %v1019 = vsel %vm1014, %v1006, %v1007
        %v1020 = vsel %vm1014, %v1005, %v1006
        %v1021 = vsel %vm1014, %v1004, %v1005
        %v1022 = vsel %vm1014, %v1003, %v1004
        %v1023 = vsel %vm1014, %v1002, %v1003
        %v1024 = vsel %vm1014, %v1001, %v1002
        %v1025 = vsel %vm1014, %v1000, %v1001
        %v1026 = vsel %vm1014, %v999, %v1000
        %v1027 = vsel %vm1014, %v998, %v999
        %v1028 = vsel %vm1014, %v997, %v998
        %v1029 = vsel %vm1014, %v996, %v997
        %v1030 = vsel %vm1014, %v995, %v996
        %v1031 = vsel %vm1014, %v994, %v995
        %v1032 = vsel %vm1014, %v993, %v994
        %v1033 = vsel %vm1014, %v992, %v993
        %v1034 = vsel %vm1014, %v991, %v992
        %v1035 = vsel %vm1014, %v990, %v991
        %v1036 = vsel %vm1014, %v989, %v990
        %v1037 = vsel %vm1014, %v988, %v989
        %v1038 = vsel %vm1014, %v987, %v988
        %v1039 = vsel %vm1014, %v986, %v987
        %v1040 = vsel %vm1014, %v985, %v986
        %v1041 = vsel %vm1014, %v984, %v985
        %v1042 = vsel %vm1014, %v983, %v984
        %v1043 = vsel %vm1014, %v982, %v983
        %v1044 = vsel %vm1014, %v981, %v982
        %v1045 = vsel %vm1014, %v980, %v981
        %v1046 = vsel %vm1014, %v979, %v980
        %v1047 = vsel %vm1014, %v978, %v979
        %v1048 = vsel %vm1014, %v977, %v978
        %v1049 = vsel %vm1014, %v976, %v977
        %v1050 = vsel %vm1014, %v975, %v976
        %v1051 = vsel %vm1014, %v974, %v975
        %v1052 = vsel %vm1014, %v973, %v974
        %v1053 = vsel %vm1014, %v972, %v973
        %v1054 = vsel %vm1014, %v971, %v972
        %v1055 = vsel %vm1014, %v970, %v971
        %v1056 = vsel %vm1014, %v969, %v970
        %v1057 = vsel %vm1014, %v968, %v969
        %v1058 = vsel %vm1014, %v967, %v968
        %v1059 = vsel %vm1014, %v966, %v967
        %v1060 = vsel %vm1014, %v965, %v966
        %v1061 = vsel %vm1014, %v964, %v965
        %v1062 = vsel %vm1014, %v1011, %v964
        %v1063 = vld [vmem:[#allocation2] sm:$0xff]
        %v1064 = vld [vmem:[#allocation2 + $0x8] sm:$0xff]
        %v1065 = vld [vmem:[#allocation2 + $0x10] sm:$0xff]
        %v1066 = vld [vmem:[#allocation2 + $0x18] sm:$0xff]
        %v1067 = vld [vmem:[#allocation2 + $0x20] sm:$0xff]
        %v1068 = vld [vmem:[#allocation2 + $0x28] sm:$0xff]
        %v1069 = vld [vmem:[#allocation2 + $0x30] sm:$0xff]
        %v1070 = vld [vmem:[#allocation2 + $0x38] sm:$0xff]
        %v1071 = vld [vmem:[#allocation2 + $0x40] sm:$0xff]
        %v1072 = vld [vmem:[#allocation2 + $0x48] sm:$0xff]
        %v1073 = vld [vmem:[#allocation2 + $0x50] sm:$0xff]
        %v1074 = vld [vmem:[#allocation2 + $0x58] sm:$0xff]
        %v1075 = vld [vmem:[#allocation2 + $0x60] sm:$0xff]
        %v1076 = vld [vmem:[#allocation2 + $0x68] sm:$0xff]
        %v1077 = vld [vmem:[#allocation2 + $0x70] sm:$0xff]
        %v1078 = vld [vmem:[#allocation2 + $0x78] sm:$0xff]
        %v1079 = vld [vmem:[#allocation2 + $0x80] sm:$0xff]
        %v1080 = vld [vmem:[#allocation2 + $0x88] sm:$0xff]
        %v1081 = vld [vmem:[#allocation2 + $0x90] sm:$0xff]
        %v1082 = vld [vmem:[#allocation2 + $0x98] sm:$0xff]
        %v1083 = vld [vmem:[#allocation2 + $0xa0] sm:$0xff]
        %v1084 = vld [vmem:[#allocation2 + $0xa8] sm:$0xff]
        %v1085 = vld [vmem:[#allocation2 + $0xb0] sm:$0xff]
        %v1086 = vld [vmem:[#allocation2 + $0xb8] sm:$0xff]
        %v1087 = vld [vmem:[#allocation2 + $0xc0] sm:$0xff]
        %v1088 = vld [vmem:[#allocation2 + $0xc8] sm:$0xff]
        %v1089 = vld [vmem:[#allocation2 + $0xd0] sm:$0xff]
        %v1090 = vld [vmem:[#allocation2 + $0xd8] sm:$0xff]
        %v1091 = vld [vmem:[#allocation2 + $0xe0] sm:$0xff]
        %v1092 = vld [vmem:[#allocation2 + $0xe8] sm:$0xff]
        %v1093 = vld [vmem:[#allocation2 + $0xf0] sm:$0xff]
        %v1094 = vld [vmem:[#allocation2 + $0xf8] sm:$0xff]
        %v1095 = vld [vmem:[#allocation2 + $0x100] sm:$0xff]
        %v1096 = vld [vmem:[#allocation2 + $0x108] sm:$0xff]
        %v1097 = vld [vmem:[#allocation2 + $0x110] sm:$0xff]
        %v1098 = vld [vmem:[#allocation2 + $0x118] sm:$0xff]
        %v1099 = vld [vmem:[#allocation2 + $0x120] sm:$0xff]
        %v1100 = vld [vmem:[#allocation2 + $0x128] sm:$0xff]
        %v1101 = vld [vmem:[#allocation2 + $0x130] sm:$0xff]
        %v1102 = vld [vmem:[#allocation2 + $0x138] sm:$0xff]
        %v1103 = vld [vmem:[#allocation2 + $0x140] sm:$0xff]
        %v1104 = vld [vmem:[#allocation2 + $0x148] sm:$0xff]
        %v1105 = vld [vmem:[#allocation2 + $0x150] sm:$0xff]
        %v1106 = vld [vmem:[#allocation2 + $0x158] sm:$0xff]
        %v1107 = vld [vmem:[#allocation2 + $0x160] sm:$0xff]
        %v1108 = vld [vmem:[#allocation2 + $0x168] sm:$0xff]
        %v1109 = vld [vmem:[#allocation2 + $0x170] sm:$0xff]
        %v1110 = vld [vmem:[#allocation2 + $0x178] sm:$0xff]
        %v1111 = vadd.f32 %v1063, %v1061
        %v1112 = vadd.f32 %v1064, %v1060
        %v1113 = vadd.f32 %v1065, %v1059
        %v1114 = vadd.f32 %v1066, %v1058
        %v1115 = vadd.f32 %v1067, %v1057
        %v1116 = vadd.f32 %v1068, %v1056
        %v1117 = vadd.f32 %v1069, %v1055
        %v1118 = vadd.f32 %v1070, %v1054
        %v1119 = vadd.f32 %v1071, %v1053
        %v1120 = vadd.f32 %v1072, %v1052
        %v1121 = vadd.f32 %v1073, %v1051
        %v1122 = vadd.f32 %v1074, %v1050
        %v1123 = vadd.f32 %v1075, %v1049
        %v1124 = vadd.f32 %v1076, %v1048
        %v1125 = vadd.f32 %v1077, %v1047
        %v1126 = vadd.f32 %v1078, %v1046
        %v1127 = vadd.f32 %v1079, %v1045
        %v1128 = vadd.f32 %v1080, %v1044
        %v1129 = vadd.f32 %v1081, %v1043
        %v1130 = vadd.f32 %v1082, %v1042
        %v1131 = vadd.f32 %v1083, %v1041
        %v1132 = vadd.f32 %v1084, %v1040
        %v1133 = vadd.f32 %v1085, %v1039
        %v1134 = vadd.f32 %v1086, %v1038
        %v1135 = vadd.f32 %v1087, %v1037
        %v1136 = vadd.f32 %v1088, %v1036
        %v1137 = vadd.f32 %v1089, %v1035
        %v1138 = vadd.f32 %v1090, %v1034
        %v1139 = vadd.f32 %v1091, %v1033
        %v1140 = vadd.f32 %v1092, %v1032
        %v1141 = vadd.f32 %v1093, %v1031
        %v1142 = vadd.f32 %v1094, %v1030
        %v1143 = vadd.f32 %v1095, %v1029
        %v1144 = vadd.f32 %v1096, %v1028
        %v1145 = vadd.f32 %v1097, %v1027
        %v1146 = vadd.f32 %v1098, %v1026
        %v1147 = vadd.f32 %v1099, %v1025
        %v1148 = vadd.f32 %v1100, %v1024
        %v1149 = vadd.f32 %v1101, %v1023
        %v1150 = vadd.f32 %v1102, %v1022
        %v1151 = vadd.f32 %v1103, %v1021
        %v1152 = vadd.f32 %v1104, %v1020
        %v1153 = vadd.f32 %v1105, %v1019
        %v1154 = vadd.f32 %v1106, %v1018
        %v1155 = vadd.f32 %v1107, %v1017
        %v1156 = vadd.f32 %v1108, %v1016
        %v1157 = vadd.f32 %v1109, %v1015
        %v1158 = vadd.f32 %v1110, %v1062
        %1159 = vst [vmem:[#allocation2] sm:$0xff] %v1111
        %1160 = vst [vmem:[#allocation2 + $0x8] sm:$0xff] %v1112
        %1161 = vst [vmem:[#allocation2 + $0x10] sm:$0xff] %v1113
        %1162 = vst [vmem:[#allocation2 + $0x18] sm:$0xff] %v1114
        %1163 = vst [vmem:[#allocation2 + $0x20] sm:$0xff] %v1115
        %1164 = vst [vmem:[#allocation2 + $0x28] sm:$0xff] %v1116
        %1165 = vst [vmem:[#allocation2 + $0x30] sm:$0xff] %v1117
        %1166 = vst [vmem:[#allocation2 + $0x38] sm:$0xff] %v1118
        %1167 = vst [vmem:[#allocation2 + $0x40] sm:$0xff] %v1119
        %1168 = vst [vmem:[#allocation2 + $0x48] sm:$0xff] %v1120
        %1169 = vst [vmem:[#allocation2 + $0x50] sm:$0xff] %v1121
        %1170 = vst [vmem:[#allocation2 + $0x58] sm:$0xff] %v1122
        %1171 = vst [vmem:[#allocation2 + $0x60] sm:$0xff] %v1123
        %1172 = vst [vmem:[#allocation2 + $0x68] sm:$0xff] %v1124
        %1173 = vst [vmem:[#allocation2 + $0x70] sm:$0xff] %v1125
        %1174 = vst [vmem:[#allocation2 + $0x78] sm:$0xff] %v1126
        %1175 = vst [vmem:[#allocation2 + $0x80] sm:$0xff] %v1127
        %1176 = vst [vmem:[#allocation2 + $0x88] sm:$0xff] %v1128
        %1177 = vst [vmem:[#allocation2 + $0x90] sm:$0xff] %v1129
        %1178 = vst [vmem:[#allocation2 + $0x98] sm:$0xff] %v1130
        %1179 = vst [vmem:[#allocation2 + $0xa0] sm:$0xff] %v1131
        %1180 = vst [vmem:[#allocation2 + $0xa8] sm:$0xff] %v1132
        %1181 = vst [vmem:[#allocation2 + $0xb0] sm:$0xff] %v1133
        %1182 = vst [vmem:[#allocation2 + $0xb8] sm:$0xff] %v1134
        %1183 = vst [vmem:[#allocation2 + $0xc0] sm:$0xff] %v1135
        %1184 = vst [vmem:[#allocation2 + $0xc8] sm:$0xff] %v1136
        %1185 = vst [vmem:[#allocation2 + $0xd0] sm:$0xff] %v1137
        %1186 = vst [vmem:[#allocation2 + $0xd8] sm:$0xff] %v1138
        %1187 = vst [vmem:[#allocation2 + $0xe0] sm:$0xff] %v1139
        %1188 = vst [vmem:[#allocation2 + $0xe8] sm:$0xff] %v1140
        %1189 = vst [vmem:[#allocation2 + $0xf0] sm:$0xff] %v1141
        %1190 = vst [vmem:[#allocation2 + $0xf8] sm:$0xff] %v1142
        %1191 = vst [vmem:[#allocation2 + $0x100] sm:$0xff] %v1143
        %1192 = vst [vmem:[#allocation2 + $0x108] sm:$0xff] %v1144
        %1193 = vst [vmem:[#allocation2 + $0x110] sm:$0xff] %v1145
        %1194 = vst [vmem:[#allocation2 + $0x118] sm:$0xff] %v1146
        %1195 = vst [vmem:[#allocation2 + $0x120] sm:$0xff] %v1147
        %1196 = vst [vmem:[#allocation2 + $0x128] sm:$0xff] %v1148
        %1197 = vst [vmem:[#allocation2 + $0x130] sm:$0xff] %v1149
        %1198 = vst [vmem:[#allocation2 + $0x138] sm:$0xff] %v1150
        %1199 = vst [vmem:[#allocation2 + $0x140] sm:$0xff] %v1151
        %1200 = vst [vmem:[#allocation2 + $0x148] sm:$0xff] %v1152
        %1201 = vst [vmem:[#allocation2 + $0x150] sm:$0xff] %v1153
        %1202 = vst [vmem:[#allocation2 + $0x158] sm:$0xff] %v1154
        %1203 = vst [vmem:[#allocation2 + $0x160] sm:$0xff] %v1155
        %1204 = vst [vmem:[#allocation2 + $0x168] sm:$0xff] %v1156
        %1205 = vst [vmem:[#allocation2 + $0x170] sm:$0xff] %v1157
        %1206 = vst [vmem:[#allocation2 + $0x178] sm:$0xff] %v1158
        %s1207 = scalar_lea.vmem %s210, 4
        %v1208 = vld [vmem:[%s1207] sm:$0x3]
        %v1210 = vsel %vm457, %v1208, 0
        %1212 = vmatprep.subr.bf16.mxu0 0
        %1213 = vmatpush1.bf16.msra.mxu0 %v1210
        %1214 = vmatprep.subr.bf16.mxu0 0
        %1215 = vmatpush1.bf16.msra.mxu0 0
        %1216 = vmatprep.subr.bf16.mxu0 0
        %1217 = vmatpush1.bf16.msra.mxu0 0
        %1218 = vmatprep.subr.bf16.mxu0 0
        %1219 = vmatpush1.bf16.msra.mxu0 0
        %1220 = vmatprep.subr.bf16.mxu0 0
        %1221 = vmatpush1.bf16.msra.mxu0 0
        %1222 = vmatprep.subr.bf16.mxu0 0
        %1223 = vmatpush1.bf16.msra.mxu0 0
        %1224 = vmatprep.subr.bf16.mxu0 0
        %1225 = vmatpush1.bf16.msra.mxu0 0
        %1226 = vmatprep.subr.bf16.mxu0 0
        %1227 = vmatpush1.bf16.msra.mxu0 0
        %1228 = vmatprep.subr.bf16.mxu0 0
        %1229 = vmatpush1.bf16.msra.mxu0 0
        %1230 = vmatprep.subr.bf16.mxu0 0
        %1231 = vmatpush1.bf16.msra.mxu0 0
        %1232 = vmatprep.subr.bf16.mxu0 0
        %1233 = vmatpush1.bf16.msra.mxu0 0
        %1234 = vmatprep.subr.bf16.mxu0 0
        %1235 = vmatpush1.bf16.msra.mxu0 0
        %1236 = vmatprep.subr.bf16.mxu0 0
        %1237 = vmatpush1.bf16.msra.mxu0 0
        %1238 = vmatprep.subr.bf16.mxu0 0
        %1239 = vmatpush1.bf16.msra.mxu0 0
        %1240 = vmatprep.subr.bf16.mxu0 0
        %1241 = vmatpush1.bf16.msra.mxu0 0
        %1242 = vmatprep.subr.bf16.mxu0 0
        %1243 = vmatpush1.bf16.msra.mxu0 0
        %1244 = vmatprep.mubr.bf16.mxu0 0
        %1245 = vmatmul.mubr.bf16.gmra.mrb[0].mxu0 %v386
        %v1246 = vpop.f32.mrb[0].mxu0
        %v1247 = vadd.f32 0.0, %v1246
        %v1248 = vpop.f32.mrb[0].mxu0
        %v1249 = vpop.f32.mrb[0].mxu0
        %v1250 = vadd.f32 0.0, %v1249
        %v1251 = vpop.f32.mrb[0].mxu0
        %1252 = vmatprep.mubr.bf16.mxu0 0
        %1253 = vmatmul.mubr.bf16.gmra.mrb[0].mxu0 %v389
        %v1254 = vpop.f32.mrb[0].mxu0
        %v1255 = vadd.f32 0.0, %v1254
        %v1256 = vpop.f32.mrb[0].mxu0
        %v1257 = vpop.f32.mrb[0].mxu0
        %v1258 = vadd.f32 0.0, %v1257
        %v1259 = vpop.f32.mrb[0].mxu0
        %1260 = vmatprep.mubr.bf16.mxu0 0
        %1261 = vmatmul.mubr.bf16.gmra.mrb[0].mxu0 %v392
        %v1262 = vpop.f32.mrb[0].mxu0
        %v1263 = vadd.f32 0.0, %v1262
        %v1264 = vpop.f32.mrb[0].mxu0
        %v1265 = vpop.f32.mrb[0].mxu0
        %v1266 = vadd.f32 0.0, %v1265
        %v1267 = vpop.f32.mrb[0].mxu0
        %1268 = vmatprep.mubr.bf16.mxu0 0
        %1269 = vmatmul.mubr.bf16.gmra.mrb[0].mxu0 %v395
        %v1270 = vpop.f32.mrb[0].mxu0
        %v1271 = vadd.f32 0.0, %v1270
        %v1272 = vpop.f32.mrb[0].mxu0
        %v1273 = vpop.f32.mrb[0].mxu0
        %v1274 = vadd.f32 0.0, %v1273
        %v1275 = vpop.f32.mrb[0].mxu0
        %1276 = vmatprep.mubr.bf16.mxu0 0
        %1277 = vmatmul.mubr.bf16.gmra.mrb[0].mxu0 %v398
        %v1278 = vpop.f32.mrb[0].mxu0
        %v1279 = vadd.f32 0.0, %v1278
        %v1280 = vpop.f32.mrb[0].mxu0
        %v1281 = vpop.f32.mrb[0].mxu0
        %v1282 = vadd.f32 0.0, %v1281
        %v1283 = vpop.f32.mrb[0].mxu0
        %1284 = vmatprep.mubr.bf16.mxu0 0
        %1285 = vmatmul.mubr.bf16.gmra.mrb[0].mxu0 %v401
        %v1286 = vpop.f32.mrb[0].mxu0
        %v1287 = vadd.f32 0.0, %v1286
        %v1288 = vpop.f32.mrb[0].mxu0
        %v1289 = vpop.f32.mrb[0].mxu0
        %v1290 = vadd.f32 0.0, %v1289
        %v1291 = vpop.f32.mrb[0].mxu0
        %1292 = vmatprep.mubr.bf16.mxu0 0
        %1293 = vmatmul.mubr.bf16.gmra.mrb[0].mxu0 %v404
        %v1294 = vpop.f32.mrb[0].mxu0
        %v1295 = vadd.f32 0.0, %v1294
        %v1296 = vpop.f32.mrb[0].mxu0
        %v1297 = vpop.f32.mrb[0].mxu0
        %v1298 = vadd.f32 0.0, %v1297
        %v1299 = vpop.f32.mrb[0].mxu0
        %1300 = vmatprep.mubr.bf16.mxu0 0
        %1301 = vmatmul.mubr.bf16.gmra.mrb[0].mxu0 %v407
        %v1302 = vpop.f32.mrb[0].mxu0
        %v1303 = vadd.f32 0.0, %v1302
        %v1304 = vpop.f32.mrb[0].mxu0
        %v1305 = vpop.f32.mrb[0].mxu0
        %v1306 = vadd.f32 0.0, %v1305
        %v1307 = vpop.f32.mrb[0].mxu0
        %1308 = vmatprep.mubr.bf16.mxu0 0
        %1309 = vmatmul.mubr.bf16.gmra.mrb[0].mxu0 %v410
        %v1310 = vpop.f32.mrb[0].mxu0
        %v1311 = vadd.f32 0.0, %v1310
        %v1312 = vpop.f32.mrb[0].mxu0
        %v1313 = vpop.f32.mrb[0].mxu0
        %v1314 = vadd.f32 0.0, %v1313
        %v1315 = vpop.f32.mrb[0].mxu0
        %1316 = vmatprep.mubr.bf16.mxu0 0
        %1317 = vmatmul.mubr.bf16.gmra.mrb[0].mxu0 %v413
        %v1318 = vpop.f32.mrb[0].mxu0
        %v1319 = vadd.f32 0.0, %v1318
        %v1320 = vpop.f32.mrb[0].mxu0
        %v1321 = vpop.f32.mrb[0].mxu0
        %v1322 = vadd.f32 0.0, %v1321
        %v1323 = vpop.f32.mrb[0].mxu0
        %1324 = vmatprep.mubr.bf16.mxu0 0
        %1325 = vmatmul.mubr.bf16.gmra.mrb[0].mxu0 %v416
        %v1326 = vpop.f32.mrb[0].mxu0
        %v1327 = vadd.f32 0.0, %v1326
        %v1328 = vpop.f32.mrb[0].mxu0
        %v1329 = vpop.f32.mrb[0].mxu0
        %v1330 = vadd.f32 0.0, %v1329
        %v1331 = vpop.f32.mrb[0].mxu0
        %1332 = vmatprep.mubr.bf16.mxu0 0
        %1333 = vmatmul.mubr.bf16.gmra.mrb[0].mxu0 %v419
        %v1334 = vpop.f32.mrb[0].mxu0
        %v1335 = vadd.f32 0.0, %v1334
        %v1336 = vpop.f32.mrb[0].mxu0
        %v1337 = vpop.f32.mrb[0].mxu0
        %v1338 = vadd.f32 0.0, %v1337
        %v1339 = vpop.f32.mrb[0].mxu0
        %1340 = vmatprep.mubr.bf16.mxu0 0
        %1341 = vmatmul.mubr.bf16.gmra.mrb[0].mxu0 %v422
        %v1342 = vpop.f32.mrb[0].mxu0
        %v1343 = vadd.f32 0.0, %v1342
        %v1344 = vpop.f32.mrb[0].mxu0
        %v1345 = vpop.f32.mrb[0].mxu0
        %v1346 = vadd.f32 0.0, %v1345
        %v1347 = vpop.f32.mrb[0].mxu0
        %1348 = vmatprep.mubr.bf16.mxu0 0
        %1349 = vmatmul.mubr.bf16.gmra.mrb[0].mxu0 %v425
        %v1350 = vpop.f32.mrb[0].mxu0
        %v1351 = vadd.f32 0.0, %v1350
        %v1352 = vpop.f32.mrb[0].mxu0
        %v1353 = vpop.f32.mrb[0].mxu0
        %v1354 = vadd.f32 0.0, %v1353
        %v1355 = vpop.f32.mrb[0].mxu0
        %1356 = vmatprep.mubr.bf16.mxu0 0
        %1357 = vmatmul.mubr.bf16.gmra.mrb[0].mxu0 %v428
        %v1358 = vpop.f32.mrb[0].mxu0
        %v1359 = vadd.f32 0.0, %v1358
        %v1360 = vpop.f32.mrb[0].mxu0
        %v1361 = vpop.f32.mrb[0].mxu0
        %v1362 = vadd.f32 0.0, %v1361
        %v1363 = vpop.f32.mrb[0].mxu0
        %1364 = vmatprep.mubr.bf16.mxu0 0
        %1365 = vmatmul.mubr.bf16.gmra.mrb[0].mxu0 %v431
        %v1366 = vpop.f32.mrb[0].mxu0
        %v1367 = vadd.f32 0.0, %v1366
        %v1368 = vpop.f32.mrb[0].mxu0
        %v1369 = vpop.f32.mrb[0].mxu0
        %v1370 = vadd.f32 0.0, %v1369
        %v1371 = vpop.f32.mrb[0].mxu0
        %1372 = vmatprep.mubr.bf16.mxu0 0
        %1373 = vmatmul.mubr.bf16.gmra.mrb[0].mxu0 %v434
        %v1374 = vpop.f32.mrb[0].mxu0
        %v1375 = vadd.f32 0.0, %v1374
        %v1376 = vpop.f32.mrb[0].mxu0
        %v1377 = vpop.f32.mrb[0].mxu0
        %v1378 = vadd.f32 0.0, %v1377
        %v1379 = vpop.f32.mrb[0].mxu0
        %1380 = vmatprep.mubr.bf16.mxu0 0
        %1381 = vmatmul.mubr.bf16.gmra.mrb[0].mxu0 %v437
        %v1382 = vpop.f32.mrb[0].mxu0
        %v1383 = vadd.f32 0.0, %v1382
        %v1384 = vpop.f32.mrb[0].mxu0
        %v1385 = vpop.f32.mrb[0].mxu0
        %v1386 = vadd.f32 0.0, %v1385
        %v1387 = vpop.f32.mrb[0].mxu0
        %1388 = vmatprep.mubr.bf16.mxu0 0
        %1389 = vmatmul.mubr.bf16.gmra.mrb[0].mxu0 %v440
        %v1390 = vpop.f32.mrb[0].mxu0
        %v1391 = vadd.f32 0.0, %v1390
        %v1392 = vpop.f32.mrb[0].mxu0
        %v1393 = vpop.f32.mrb[0].mxu0
        %v1394 = vadd.f32 0.0, %v1393
        %v1395 = vpop.f32.mrb[0].mxu0
        %1396 = vmatprep.mubr.bf16.mxu0 0
        %1397 = vmatmul.mubr.bf16.gmra.mrb[0].mxu0 %v443
        %v1398 = vpop.f32.mrb[0].mxu0
        %v1399 = vadd.f32 0.0, %v1398
        %v1400 = vpop.f32.mrb[0].mxu0
        %v1401 = vpop.f32.mrb[0].mxu0
        %v1402 = vadd.f32 0.0, %v1401
        %v1403 = vpop.f32.mrb[0].mxu0
        %1404 = vmatprep.mubr.bf16.mxu0 0
        %1405 = vmatmul.mubr.bf16.gmra.mrb[0].mxu0 %v446
        %v1406 = vpop.f32.mrb[0].mxu0
        %v1407 = vadd.f32 0.0, %v1406
        %v1408 = vpop.f32.mrb[0].mxu0
        %v1409 = vpop.f32.mrb[0].mxu0
        %v1410 = vadd.f32 0.0, %v1409
        %v1411 = vpop.f32.mrb[0].mxu0
        %1412 = vmatprep.mubr.bf16.mxu0 0
        %1413 = vmatmul.mubr.bf16.gmra.mrb[0].mxu0 %v449
        %v1414 = vpop.f32.mrb[0].mxu0
        %v1415 = vadd.f32 0.0, %v1414
        %v1416 = vpop.f32.mrb[0].mxu0
        %v1417 = vpop.f32.mrb[0].mxu0
        %v1418 = vadd.f32 0.0, %v1417
        %v1419 = vpop.f32.mrb[0].mxu0
        %1420 = vmatprep.mubr.bf16.mxu0 0
        %1421 = vmatmul.mubr.bf16.gmra.mrb[0].mxu0 %v452
        %v1422 = vpop.f32.mrb[0].mxu0
        %v1423 = vadd.f32 0.0, %v1422
        %v1424 = vpop.f32.mrb[0].mxu0
        %v1425 = vpop.f32.mrb[0].mxu0
        %v1426 = vadd.f32 0.0, %v1425
        %v1427 = vpop.f32.mrb[0].mxu0
        %1428 = vmatprep.mubr.bf16.mxu0 0
        %1429 = vmatmul.mubr.bf16.gmra.mrb[0].mxu0 %v455
        %v1430 = vpop.f32.mrb[0].mxu0
        %v1431 = vadd.f32 0.0, %v1430
        %v1432 = vpop.f32.mrb[0].mxu0
        %v1433 = vpop.f32.mrb[0].mxu0
        %v1434 = vadd.f32 0.0, %v1433
        %v1435 = vpop.f32.mrb[0].mxu0
        %1436 = vdwg.mxu0
        %v1437 = vrot.slane %v1247, 2
        %v1438 = vrot.slane %v1250, 2
        %v1439 = vrot.slane %v1255, 2
        %v1440 = vrot.slane %v1258, 2
        %v1441 = vrot.slane %v1263, 2
        %v1442 = vrot.slane %v1266, 2
        %v1443 = vrot.slane %v1271, 2
        %v1444 = vrot.slane %v1274, 2
        %v1445 = vrot.slane %v1279, 2
        %v1446 = vrot.slane %v1282, 2
        %v1447 = vrot.slane %v1287, 2
        %v1448 = vrot.slane %v1290, 2
        %v1449 = vrot.slane %v1295, 2
        %v1450 = vrot.slane %v1298, 2
        %v1451 = vrot.slane %v1303, 2
        %v1452 = vrot.slane %v1306, 2
        %v1453 = vrot.slane %v1311, 2
        %v1454 = vrot.slane %v1314, 2
        %v1455 = vrot.slane %v1319, 2
        %v1456 = vrot.slane %v1322, 2
        %v1457 = vrot.slane %v1327, 2
        %v1458 = vrot.slane %v1330, 2
        %v1459 = vrot.slane %v1335, 2
        %v1460 = vrot.slane %v1338, 2
        %v1461 = vrot.slane %v1343, 2
        %v1462 = vrot.slane %v1346, 2
        %v1463 = vrot.slane %v1351, 2
        %v1464 = vrot.slane %v1354, 2
        %v1465 = vrot.slane %v1359, 2
        %v1466 = vrot.slane %v1362, 2
        %v1467 = vrot.slane %v1367, 2
        %v1468 = vrot.slane %v1370, 2
        %v1469 = vrot.slane %v1375, 2
        %v1470 = vrot.slane %v1378, 2
        %v1471 = vrot.slane %v1383, 2
        %v1472 = vrot.slane %v1386, 2
        %v1473 = vrot.slane %v1391, 2
        %v1474 = vrot.slane %v1394, 2
        %v1475 = vrot.slane %v1399, 2
        %v1476 = vrot.slane %v1402, 2
        %v1477 = vrot.slane %v1407, 2
        %v1478 = vrot.slane %v1410, 2
        %v1479 = vrot.slane %v1415, 2
        %v1480 = vrot.slane %v1418, 2
        %v1481 = vrot.slane %v1423, 2
        %v1482 = vrot.slane %v1426, 2
        %v1483 = vrot.slane %v1431, 2
        %v1484 = vrot.slane %v1434, 2
        %vm1485 = vcmp.lt.s32.totalorder %v1013, 6
        %v1486 = vsel %vm1485, %v1483, %v1484
        %v1487 = vsel %vm1485, %v1482, %v1483
        %v1488 = vsel %vm1485, %v1481, %v1482
        %v1489 = vsel %vm1485, %v1480, %v1481
        %v1490 = vsel %vm1485, %v1479, %v1480
        %v1491 = vsel %vm1485, %v1478, %v1479
        %v1492 = vsel %vm1485, %v1477, %v1478
        %v1493 = vsel %vm1485, %v1476, %v1477
        %v1494 = vsel %vm1485, %v1475, %v1476
        %v1495 = vsel %vm1485, %v1474, %v1475
        %v1496 = vsel %vm1485, %v1473, %v1474
        %v1497 = vsel %vm1485, %v1472, %v1473
        %v1498 = vsel %vm1485, %v1471, %v1472
        %v1499 = vsel %vm1485, %v1470, %v1471
        %v1500 = vsel %vm1485, %v1469, %v1470
        %v1501 = vsel %vm1485, %v1468, %v1469
        %v1502 = vsel %vm1485, %v1467, %v1468
        %v1503 = vsel %vm1485, %v1466, %v1467
        %v1504 = vsel %vm1485, %v1465, %v1466
        %v1505 = vsel %vm1485, %v1464, %v1465
        %v1506 = vsel %vm1485, %v1463, %v1464
        %v1507 = vsel %vm1485, %v1462, %v1463
        %v1508 = vsel %vm1485, %v1461, %v1462
        %v1509 = vsel %vm1485, %v1460, %v1461
        %v1510 = vsel %vm1485, %v1459, %v1460
        %v1511 = vsel %vm1485, %v1458, %v1459
        %v1512 = vsel %vm1485, %v1457, %v1458
        %v1513 = vsel %vm1485, %v1456, %v1457
        %v1514 = vsel %vm1485, %v1455, %v1456
        %v1515 = vsel %vm1485, %v1454, %v1455
        %v1516 = vsel %vm1485, %v1453, %v1454
        %v1517 = vsel %vm1485, %v1452, %v1453
        %v1518 = vsel %vm1485, %v1451, %v1452
        %v1519 = vsel %vm1485, %v1450, %v1451
        %v1520 = vsel %vm1485, %v1449, %v1450
        %v1521 = vsel %vm1485, %v1448, %v1449
        %v1522 = vsel %vm1485, %v1447, %v1448
        %v1523 = vsel %vm1485, %v1446, %v1447
        %v1524 = vsel %vm1485, %v1445, %v1446
        %v1525 = vsel %vm1485, %v1444, %v1445
        %v1526 = vsel %vm1485, %v1443, %v1444
        %v1527 = vsel %vm1485, %v1442, %v1443
        %v1528 = vsel %vm1485, %v1441, %v1442
        %v1529 = vsel %vm1485, %v1440, %v1441
        %v1530 = vsel %vm1485, %v1439, %v1440
        %v1531 = vsel %vm1485, %v1438, %v1439
        %v1532 = vsel %vm1485, %v1437, %v1438
        %v1533 = vsel %vm1485, %v1484, %v1437
        %v1534 = vld [vmem:[#allocation2] sm:$0xff]
        %v1535 = vld [vmem:[#allocation2 + $0x8] sm:$0xff]
        %v1536 = vld [vmem:[#allocation2 + $0x10] sm:$0xff]
        %v1537 = vld [vmem:[#allocation2 + $0x18] sm:$0xff]
        %v1538 = vld [vmem:[#allocation2 + $0x20] sm:$0xff]
        %v1539 = vld [vmem:[#allocation2 + $0x28] sm:$0xff]
        %v1540 = vld [vmem:[#allocation2 + $0x30] sm:$0xff]
        %v1541 = vld [vmem:[#allocation2 + $0x38] sm:$0xff]
        %v1542 = vld [vmem:[#allocation2 + $0x40] sm:$0xff]
        %v1543 = vld [vmem:[#allocation2 + $0x48] sm:$0xff]
        %v1544 = vld [vmem:[#allocation2 + $0x50] sm:$0xff]
        %v1545 = vld [vmem:[#allocation2 + $0x58] sm:$0xff]
        %v1546 = vld [vmem:[#allocation2 + $0x60] sm:$0xff]
        %v1547 = vld [vmem:[#allocation2 + $0x68] sm:$0xff]
        %v1548 = vld [vmem:[#allocation2 + $0x70] sm:$0xff]
        %v1549 = vld [vmem:[#allocation2 + $0x78] sm:$0xff]
        %v1550 = vld [vmem:[#allocation2 + $0x80] sm:$0xff]
        %v1551 = vld [vmem:[#allocation2 + $0x88] sm:$0xff]
        %v1552 = vld [vmem:[#allocation2 + $0x90] sm:$0xff]
        %v1553 = vld [vmem:[#allocation2 + $0x98] sm:$0xff]
        %v1554 = vld [vmem:[#allocation2 + $0xa0] sm:$0xff]
        %v1555 = vld [vmem:[#allocation2 + $0xa8] sm:$0xff]
        %v1556 = vld [vmem:[#allocation2 + $0xb0] sm:$0xff]
        %v1557 = vld [vmem:[#allocation2 + $0xb8] sm:$0xff]
        %v1558 = vld [vmem:[#allocation2 + $0xc0] sm:$0xff]
        %v1559 = vld [vmem:[#allocation2 + $0xc8] sm:$0xff]
        %v1560 = vld [vmem:[#allocation2 + $0xd0] sm:$0xff]
        %v1561 = vld [vmem:[#allocation2 + $0xd8] sm:$0xff]
        %v1562 = vld [vmem:[#allocation2 + $0xe0] sm:$0xff]
        %v1563 = vld [vmem:[#allocation2 + $0xe8] sm:$0xff]
        %v1564 = vld [vmem:[#allocation2 + $0xf0] sm:$0xff]
        %v1565 = vld [vmem:[#allocation2 + $0xf8] sm:$0xff]
        %v1566 = vld [vmem:[#allocation2 + $0x100] sm:$0xff]
        %v1567 = vld [vmem:[#allocation2 + $0x108] sm:$0xff]
        %v1568 = vld [vmem:[#allocation2 + $0x110] sm:$0xff]
        %v1569 = vld [vmem:[#allocation2 + $0x118] sm:$0xff]
        %v1570 = vld [vmem:[#allocation2 + $0x120] sm:$0xff]
        %v1571 = vld [vmem:[#allocation2 + $0x128] sm:$0xff]
        %v1572 = vld [vmem:[#allocation2 + $0x130] sm:$0xff]
        %v1573 = vld [vmem:[#allocation2 + $0x138] sm:$0xff]
        %v1574 = vld [vmem:[#allocation2 + $0x140] sm:$0xff]
        %v1575 = vld [vmem:[#allocation2 + $0x148] sm:$0xff]
        %v1576 = vld [vmem:[#allocation2 + $0x150] sm:$0xff]
        %v1577 = vld [vmem:[#allocation2 + $0x158] sm:$0xff]
        %v1578 = vld [vmem:[#allocation2 + $0x160] sm:$0xff]
        %v1579 = vld [vmem:[#allocation2 + $0x168] sm:$0xff]
        %v1580 = vld [vmem:[#allocation2 + $0x170] sm:$0xff]
        %v1581 = vld [vmem:[#allocation2 + $0x178] sm:$0xff]
        %v1582 = vadd.f32 %v1534, %v1532
        %v1583 = vadd.f32 %v1535, %v1531
        %v1584 = vadd.f32 %v1536, %v1530
        %v1585 = vadd.f32 %v1537, %v1529
        %v1586 = vadd.f32 %v1538, %v1528
        %v1587 = vadd.f32 %v1539, %v1527
        %v1588 = vadd.f32 %v1540, %v1526
        %v1589 = vadd.f32 %v1541, %v1525
        %v1590 = vadd.f32 %v1542, %v1524
        %v1591 = vadd.f32 %v1543, %v1523
        %v1592 = vadd.f32 %v1544, %v1522
        %v1593 = vadd.f32 %v1545, %v1521
        %v1594 = vadd.f32 %v1546, %v1520
        %v1595 = vadd.f32 %v1547, %v1519
        %v1596 = vadd.f32 %v1548, %v1518
        %v1597 = vadd.f32 %v1549, %v1517
        %v1598 = vadd.f32 %v1550, %v1516
        %v1599 = vadd.f32 %v1551, %v1515
        %v1600 = vadd.f32 %v1552, %v1514
        %v1601 = vadd.f32 %v1553, %v1513
        %v1602 = vadd.f32 %v1554, %v1512
        %v1603 = vadd.f32 %v1555, %v1511
        %v1604 = vadd.f32 %v1556, %v1510
        %v1605 = vadd.f32 %v1557, %v1509
        %v1606 = vadd.f32 %v1558, %v1508
        %v1607 = vadd.f32 %v1559, %v1507
        %v1608 = vadd.f32 %v1560, %v1506
        %v1609 = vadd.f32 %v1561, %v1505
        %v1610 = vadd.f32 %v1562, %v1504
        %v1611 = vadd.f32 %v1563, %v1503
        %v1612 = vadd.f32 %v1564, %v1502
        %v1613 = vadd.f32 %v1565, %v1501
        %v1614 = vadd.f32 %v1566, %v1500
        %v1615 = vadd.f32 %v1567, %v1499
        %v1616 = vadd.f32 %v1568, %v1498
        %v1617 = vadd.f32 %v1569, %v1497
        %v1618 = vadd.f32 %v1570, %v1496
        %v1619 = vadd.f32 %v1571, %v1495
        %v1620 = vadd.f32 %v1572, %v1494
        %v1621 = vadd.f32 %v1573, %v1493
        %v1622 = vadd.f32 %v1574, %v1492
        %v1623 = vadd.f32 %v1575, %v1491
        %v1624 = vadd.f32 %v1576, %v1490
        %v1625 = vadd.f32 %v1577, %v1489
        %v1626 = vadd.f32 %v1578, %v1488
        %v1627 = vadd.f32 %v1579, %v1487
        %v1628 = vadd.f32 %v1580, %v1486
        %v1629 = vadd.f32 %v1581, %v1533
        %1630 = vst [vmem:[#allocation2] sm:$0xff] %v1582
        %1631 = vst [vmem:[#allocation2 + $0x8] sm:$0xff] %v1583
        %1632 = vst [vmem:[#allocation2 + $0x10] sm:$0xff] %v1584
        %1633 = vst [vmem:[#allocation2 + $0x18] sm:$0xff] %v1585
        %1634 = vst [vmem:[#allocation2 + $0x20] sm:$0xff] %v1586
        %1635 = vst [vmem:[#allocation2 + $0x28] sm:$0xff] %v1587
        %1636 = vst [vmem:[#allocation2 + $0x30] sm:$0xff] %v1588
        %1637 = vst [vmem:[#allocation2 + $0x38] sm:$0xff] %v1589
        %1638 = vst [vmem:[#allocation2 + $0x40] sm:$0xff] %v1590
        %1639 = vst [vmem:[#allocation2 + $0x48] sm:$0xff] %v1591
        %1640 = vst [vmem:[#allocation2 + $0x50] sm:$0xff] %v1592
        %1641 = vst [vmem:[#allocation2 + $0x58] sm:$0xff] %v1593
        %1642 = vst [vmem:[#allocation2 + $0x60] sm:$0xff] %v1594
        %1643 = vst [vmem:[#allocation2 + $0x68] sm:$0xff] %v1595
        %1644 = vst [vmem:[#allocation2 + $0x70] sm:$0xff] %v1596
        %1645 = vst [vmem:[#allocation2 + $0x78] sm:$0xff] %v1597
        %1646 = vst [vmem:[#allocation2 + $0x80] sm:$0xff] %v1598
        %1647 = vst [vmem:[#allocation2 + $0x88] sm:$0xff] %v1599
        %1648 = vst [vmem:[#allocation2 + $0x90] sm:$0xff] %v1600
        %1649 = vst [vmem:[#allocation2 + $0x98] sm:$0xff] %v1601
        %1650 = vst [vmem:[#allocation2 + $0xa0] sm:$0xff] %v1602
        %1651 = vst [vmem:[#allocation2 + $0xa8] sm:$0xff] %v1603
        %1652 = vst [vmem:[#allocation2 + $0xb0] sm:$0xff] %v1604
        %1653 = vst [vmem:[#allocation2 + $0xb8] sm:$0xff] %v1605
        %1654 = vst [vmem:[#allocation2 + $0xc0] sm:$0xff] %v1606
        %1655 = vst [vmem:[#allocation2 + $0xc8] sm:$0xff] %v1607
        %1656 = vst [vmem:[#allocation2 + $0xd0] sm:$0xff] %v1608
        %1657 = vst [vmem:[#allocation2 + $0xd8] sm:$0xff] %v1609
        %1658 = vst [vmem:[#allocation2 + $0xe0] sm:$0xff] %v1610
        %1659 = vst [vmem:[#allocation2 + $0xe8] sm:$0xff] %v1611
        %1660 = vst [vmem:[#allocation2 + $0xf0] sm:$0xff] %v1612
        %1661 = vst [vmem:[#allocation2 + $0xf8] sm:$0xff] %v1613
        %1662 = vst [vmem:[#allocation2 + $0x100] sm:$0xff] %v1614
        %1663 = vst [vmem:[#allocation2 + $0x108] sm:$0xff] %v1615
        %1664 = vst [vmem:[#allocation2 + $0x110] sm:$0xff] %v1616
        %1665 = vst [vmem:[#allocation2 + $0x118] sm:$0xff] %v1617
        %1666 = vst [vmem:[#allocation2 + $0x120] sm:$0xff] %v1618
        %1667 = vst [vmem:[#allocation2 + $0x128] sm:$0xff] %v1619
        %1668 = vst [vmem:[#allocation2 + $0x130] sm:$0xff] %v1620
        %1669 = vst [vmem:[#allocation2 + $0x138] sm:$0xff] %v1621
        %1670 = vst [vmem:[#allocation2 + $0x140] sm:$0xff] %v1622
        %1671 = vst [vmem:[#allocation2 + $0x148] sm:$0xff] %v1623
        %1672 = vst [vmem:[#allocation2 + $0x150] sm:$0xff] %v1624
        %1673 = vst [vmem:[#allocation2 + $0x158] sm:$0xff] %v1625
        %1674 = vst [vmem:[#allocation2 + $0x160] sm:$0xff] %v1626
        %1675 = vst [vmem:[#allocation2 + $0x168] sm:$0xff] %v1627
        %1676 = vst [vmem:[#allocation2 + $0x170] sm:$0xff] %v1628
        %1677 = vst [vmem:[#allocation2 + $0x178] sm:$0xff] %v1629
        %s1678 = scalar_lea.vmem %s206, 12
        %v1679 = vld [vmem:[%s1678] sm:$0xf]
        %v1680 = vld [vmem:[%s1678 + $0x4] sm:$0xf]
        %v1681 = vld [vmem:[%s1678 + $0x8] sm:$0xf]
        %v1682 = vld [vmem:[%s1678 + $0xc] sm:$0xf]
        %v1683 = vld [vmem:[%s1678 + $0x10] sm:$0xf]
        %v1684 = vld [vmem:[%s1678 + $0x14] sm:$0xf]
        %v1685 = vld [vmem:[%s1678 + $0x18] sm:$0xf]
        %v1686 = vld [vmem:[%s1678 + $0x1c] sm:$0xf]
        %v1687 = vld [vmem:[%s1678 + $0x20] sm:$0xf]
        %v1688 = vld [vmem:[%s1678 + $0x24] sm:$0xf]
        %v1689 = vld [vmem:[%s1678 + $0x28] sm:$0xf]
        %v1690 = vld [vmem:[%s1678 + $0x2c] sm:$0xf]
        %v1691 = vld [vmem:[%s1678 + $0x30] sm:$0xf]
        %v1692 = vld [vmem:[%s1678 + $0x34] sm:$0xf]
        %v1693 = vld [vmem:[%s1678 + $0x38] sm:$0xf]
        %v1694 = vld [vmem:[%s1678 + $0x3c] sm:$0xf]
        %v1695 = vld [vmem:[%s1678 + $0x40] sm:$0xf]
        %v1696 = vld [vmem:[%s1678 + $0x44] sm:$0xf]
        %v1697 = vld [vmem:[%s1678 + $0x48] sm:$0xf]
        %v1698 = vld [vmem:[%s1678 + $0x4c] sm:$0xf]
        %v1699 = vld [vmem:[%s1678 + $0x50] sm:$0xf]
        %v1700 = vld [vmem:[%s1678 + $0x54] sm:$0xf]
        %v1701 = vld [vmem:[%s1678 + $0x58] sm:$0xf]
        %v1702 = vld [vmem:[%s1678 + $0x5c] sm:$0xf]
        %v1703 = vld [vmem:[%s1678 + $0x60] sm:$0xf]
        %v1704 = vld [vmem:[%s1678 + $0x64] sm:$0xf]
        %v1705 = vld [vmem:[%s1678 + $0x68] sm:$0xf]
        %v1706 = vld [vmem:[%s1678 + $0x6c] sm:$0xf]
        %v1707 = vld [vmem:[%s1678 + $0x70] sm:$0xf]
        %v1708 = vld [vmem:[%s1678 + $0x74] sm:$0xf]
        %v1709 = vld [vmem:[%s1678 + $0x78] sm:$0xf]
        %v1710 = vld [vmem:[%s1678 + $0x7c] sm:$0xf]
        %v1711 = vld [vmem:[%s1678 + $0x80] sm:$0xf]
        %v1712 = vld [vmem:[%s1678 + $0x84] sm:$0xf]
        %v1713 = vld [vmem:[%s1678 + $0x88] sm:$0xf]
        %v1714 = vld [vmem:[%s1678 + $0x8c] sm:$0xf]
        %v1715 = vld [vmem:[%s1678 + $0x90] sm:$0xf]
        %v1716 = vld [vmem:[%s1678 + $0x94] sm:$0xf]
        %v1717 = vld [vmem:[%s1678 + $0x98] sm:$0xf]
        %v1718 = vld [vmem:[%s1678 + $0x9c] sm:$0xf]
        %v1719 = vld [vmem:[%s1678 + $0xa0] sm:$0xf]
        %v1720 = vld [vmem:[%s1678 + $0xa4] sm:$0xf]
        %v1721 = vld [vmem:[%s1678 + $0xa8] sm:$0xf]
        %v1722 = vld [vmem:[%s1678 + $0xac] sm:$0xf]
        %v1723 = vld [vmem:[%s1678 + $0xb0] sm:$0xf]
        %v1724 = vld [vmem:[%s1678 + $0xb4] sm:$0xf]
        %v1725 = vld [vmem:[%s1678 + $0xb8] sm:$0xf]
        %v1726 = vld [vmem:[%s1678 + $0xbc] sm:$0xf]
        %s1727 = scalar_lea.vmem %s210, 6
        %v1728 = vld [vmem:[%s1727] sm:$0x3]
        %v1777 = vunpack.c.l.b16 %v1679
        %v1778 = vunpack.c.l.b16 %v1680
        %v1779 = vunpack.c.l.b16 %v1681
        %v1780 = vunpack.c.l.b16 %v1682
        %v1781 = vunpack.c.l.b16 %v1683
        %v1782 = vunpack.c.l.b16 %v1684
        %v1783 = vunpack.c.l.b16 %v1685
        %v1784 = vunpack.c.l.b16 %v1686
        %v1785 = vunpack.c.l.b16 %v1687
        %v1786 = vunpack.c.l.b16 %v1688
        %v1787 = vunpack.c.l.b16 %v1689
        %v1788 = vunpack.c.l.b16 %v1690
        %v1789 = vunpack.c.l.b16 %v1691
        %v1790 = vunpack.c.l.b16 %v1692
        %v1791 = vunpack.c.l.b16 %v1693
        %v1792 = vunpack.c.l.b16 %v1694
        %v1793 = vunpack.c.l.b16 %v1695
        %v1794 = vunpack.c.l.b16 %v1696
        %v1795 = vunpack.c.l.b16 %v1697
        %v1796 = vunpack.c.l.b16 %v1698
        %v1797 = vunpack.c.l.b16 %v1699
        %v1798 = vunpack.c.l.b16 %v1700
        %v1799 = vunpack.c.l.b16 %v1701
        %v1800 = vunpack.c.l.b16 %v1702
        %v1801 = vunpack.c.l.b16 %v1703
        %v1802 = vunpack.c.l.b16 %v1704
        %v1803 = vunpack.c.l.b16 %v1705
        %v1804 = vunpack.c.l.b16 %v1706
        %v1805 = vunpack.c.l.b16 %v1707
        %v1806 = vunpack.c.l.b16 %v1708
        %v1807 = vunpack.c.l.b16 %v1709
        %v1808 = vunpack.c.l.b16 %v1710
        %v1809 = vunpack.c.l.b16 %v1711
        %v1810 = vunpack.c.l.b16 %v1712
        %v1811 = vunpack.c.l.b16 %v1713
        %v1812 = vunpack.c.l.b16 %v1714
        %v1813 = vunpack.c.l.b16 %v1715
        %v1814 = vunpack.c.l.b16 %v1716
        %v1815 = vunpack.c.l.b16 %v1717
        %v1816 = vunpack.c.l.b16 %v1718
        %v1817 = vunpack.c.l.b16 %v1719
        %v1818 = vunpack.c.l.b16 %v1720
        %v1819 = vunpack.c.l.b16 %v1721
        %v1820 = vunpack.c.l.b16 %v1722
        %v1821 = vunpack.c.l.b16 %v1723
        %v1822 = vunpack.c.l.b16 %v1724
        %v1823 = vunpack.c.l.b16 %v1725
        %v1824 = vunpack.c.l.b16 %v1726
        %v1825 = vpack.c.b16 %v1778, %v1777
        %v1826 = vpack.c.b16 %v1780, %v1779
        %v1827 = vpack.c.b16 %v1782, %v1781
        %v1828 = vpack.c.b16 %v1784, %v1783
        %v1829 = vpack.c.b16 %v1786, %v1785
        %v1830 = vpack.c.b16 %v1788, %v1787
        %v1831 = vpack.c.b16 %v1790, %v1789
        %v1832 = vpack.c.b16 %v1792, %v1791
        %v1833 = vpack.c.b16 %v1794, %v1793
        %v1834 = vpack.c.b16 %v1796, %v1795
        %v1835 = vpack.c.b16 %v1798, %v1797
        %v1836 = vpack.c.b16 %v1800, %v1799
        %v1837 = vpack.c.b16 %v1802, %v1801
        %v1838 = vpack.c.b16 %v1804, %v1803
        %v1839 = vpack.c.b16 %v1806, %v1805
        %v1840 = vpack.c.b16 %v1808, %v1807
        %v1841 = vpack.c.b16 %v1810, %v1809
        %v1842 = vpack.c.b16 %v1812, %v1811
        %v1843 = vpack.c.b16 %v1814, %v1813
        %v1844 = vpack.c.b16 %v1816, %v1815
        %v1845 = vpack.c.b16 %v1818, %v1817
        %v1846 = vpack.c.b16 %v1820, %v1819
        %v1847 = vpack.c.b16 %v1822, %v1821
        %v1848 = vpack.c.b16 %v1824, %v1823
        %v1850 = vsel %vm384, %v1825, 0
        %v1853 = vsel %vm384, %v1826, 0
        %v1856 = vsel %vm384, %v1827, 0
        %v1859 = vsel %vm384, %v1828, 0
        %v1862 = vsel %vm384, %v1829, 0
        %v1865 = vsel %vm384, %v1830, 0
        %v1868 = vsel %vm384, %v1831, 0
        %v1871 = vsel %vm384, %v1832, 0
        %v1874 = vsel %vm384, %v1833, 0
        %v1877 = vsel %vm384, %v1834, 0
        %v1880 = vsel %vm384, %v1835, 0
        %v1883 = vsel %vm384, %v1836, 0
        %v1886 = vsel %vm384, %v1837, 0
        %v1889 = vsel %vm384, %v1838, 0
        %v1892 = vsel %vm384, %v1839, 0
        %v1895 = vsel %vm384, %v1840, 0
        %v1898 = vsel %vm384, %v1841, 0
        %v1901 = vsel %vm384, %v1842, 0
        %v1904 = vsel %vm384, %v1843, 0
        %v1907 = vsel %vm384, %v1844, 0
        %v1910 = vsel %vm384, %v1845, 0
        %v1913 = vsel %vm384, %v1846, 0
        %v1916 = vsel %vm384, %v1847, 0
        %v1919 = vsel %vm384, %v1848, 0
        %v1922 = vsel %vm457, %v1728, 0
        %1924 = vmatprep.subr.bf16.mxu0 0
        %1925 = vmatpush1.bf16.msra.mxu0 %v1922
        %1926 = vmatprep.subr.bf16.mxu0 0
        %1927 = vmatpush1.bf16.msra.mxu0 0
        %1928 = vmatprep.subr.bf16.mxu0 0
        %1929 = vmatpush1.bf16.msra.mxu0 0
        %1930 = vmatprep.subr.bf16.mxu0 0
        %1931 = vmatpush1.bf16.msra.mxu0 0
        %1932 = vmatprep.subr.bf16.mxu0 0
        %1933 = vmatpush1.bf16.msra.mxu0 0
        %1934 = vmatprep.subr.bf16.mxu0 0
        %1935 = vmatpush1.bf16.msra.mxu0 0
        %1936 = vmatprep.subr.bf16.mxu0 0
        %1937 = vmatpush1.bf16.msra.mxu0 0
        %1938 = vmatprep.subr.bf16.mxu0 0
        %1939 = vmatpush1.bf16.msra.mxu0 0
        %1940 = vmatprep.subr.bf16.mxu0 0
        %1941 = vmatpush1.bf16.msra.mxu0 0
        %1942 = vmatprep.subr.bf16.mxu0 0
        %1943 = vmatpush1.bf16.msra.mxu0 0
        %1944 = vmatprep.subr.bf16.mxu0 0
        %1945 = vmatpush1.bf16.msra.mxu0 0
        %1946 = vmatprep.subr.bf16.mxu0 0
        %1947 = vmatpush1.bf16.msra.mxu0 0
        %1948 = vmatprep.subr.bf16.mxu0 0
        %1949 = vmatpush1.bf16.msra.mxu0 0
        %1950 = vmatprep.subr.bf16.mxu0 0
        %1951 = vmatpush1.bf16.msra.mxu0 0
        %1952 = vmatprep.subr.bf16.mxu0 0
        %1953 = vmatpush1.bf16.msra.mxu0 0
        %1954 = vmatprep.subr.bf16.mxu0 0
        %1955 = vmatpush1.bf16.msra.mxu0 0
        %1956 = vmatprep.mubr.bf16.mxu0 0
        %1957 = vmatmul.mubr.bf16.gmra.mrb[0].mxu0 %v1850
        %v1958 = vpop.f32.mrb[0].mxu0
        %v1959 = vadd.f32 0.0, %v1958
        %v1960 = vpop.f32.mrb[0].mxu0
        %v1961 = vpop.f32.mrb[0].mxu0
        %v1962 = vadd.f32 0.0, %v1961
        %v1963 = vpop.f32.mrb[0].mxu0
        %1964 = vmatprep.mubr.bf16.mxu0 0
        %1965 = vmatmul.mubr.bf16.gmra.mrb[0].mxu0 %v1853
        %v1966 = vpop.f32.mrb[0].mxu0
        %v1967 = vadd.f32 0.0, %v1966
        %v1968 = vpop.f32.mrb[0].mxu0
        %v1969 = vpop.f32.mrb[0].mxu0
        %v1970 = vadd.f32 0.0, %v1969
        %v1971 = vpop.f32.mrb[0].mxu0
        %1972 = vmatprep.mubr.bf16.mxu0 0
        %1973 = vmatmul.mubr.bf16.gmra.mrb[0].mxu0 %v1856
        %v1974 = vpop.f32.mrb[0].mxu0
        %v1975 = vadd.f32 0.0, %v1974
        %v1976 = vpop.f32.mrb[0].mxu0
        %v1977 = vpop.f32.mrb[0].mxu0
        %v1978 = vadd.f32 0.0, %v1977
        %v1979 = vpop.f32.mrb[0].mxu0
        %1980 = vmatprep.mubr.bf16.mxu0 0
        %1981 = vmatmul.mubr.bf16.gmra.mrb[0].mxu0 %v1859
        %v1982 = vpop.f32.mrb[0].mxu0
        %v1983 = vadd.f32 0.0, %v1982
        %v1984 = vpop.f32.mrb[0].mxu0
        %v1985 = vpop.f32.mrb[0].mxu0
        %v1986 = vadd.f32 0.0, %v1985
        %v1987 = vpop.f32.mrb[0].mxu0
        %1988 = vmatprep.mubr.bf16.mxu0 0
        %1989 = vmatmul.mubr.bf16.gmra.mrb[0].mxu0 %v1862
        %v1990 = vpop.f32.mrb[0].mxu0
        %v1991 = vadd.f32 0.0, %v1990
        %v1992 = vpop.f32.mrb[0].mxu0
        %v1993 = vpop.f32.mrb[0].mxu0
        %v1994 = vadd.f32 0.0, %v1993
        %v1995 = vpop.f32.mrb[0].mxu0
        %1996 = vmatprep.mubr.bf16.mxu0 0
        %1997 = vmatmul.mubr.bf16.gmra.mrb[0].mxu0 %v1865
        %v1998 = vpop.f32.mrb[0].mxu0
        %v1999 = vadd.f32 0.0, %v1998
        %v2000 = vpop.f32.mrb[0].mxu0
        %v2001 = vpop.f32.mrb[0].mxu0
        %v2002 = vadd.f32 0.0, %v2001
        %v2003 = vpop.f32.mrb[0].mxu0
        %2004 = vmatprep.mubr.bf16.mxu0 0
        %2005 = vmatmul.mubr.bf16.gmra.mrb[0].mxu0 %v1868
        %v2006 = vpop.f32.mrb[0].mxu0
        %v2007 = vadd.f32 0.0, %v2006
        %v2008 = vpop.f32.mrb[0].mxu0
        %v2009 = vpop.f32.mrb[0].mxu0
        %v2010 = vadd.f32 0.0, %v2009
        %v2011 = vpop.f32.mrb[0].mxu0
        %2012 = vmatprep.mubr.bf16.mxu0 0
        %2013 = vmatmul.mubr.bf16.gmra.mrb[0].mxu0 %v1871
        %v2014 = vpop.f32.mrb[0].mxu0
        %v2015 = vadd.f32 0.0, %v2014
        %v2016 = vpop.f32.mrb[0].mxu0
        %v2017 = vpop.f32.mrb[0].mxu0
        %v2018 = vadd.f32 0.0, %v2017
        %v2019 = vpop.f32.mrb[0].mxu0
        %2020 = vmatprep.mubr.bf16.mxu0 0
        %2021 = vmatmul.mubr.bf16.gmra.mrb[0].mxu0 %v1874
        %v2022 = vpop.f32.mrb[0].mxu0
        %v2023 = vadd.f32 0.0, %v2022
        %v2024 = vpop.f32.mrb[0].mxu0
        %v2025 = vpop.f32.mrb[0].mxu0
        %v2026 = vadd.f32 0.0, %v2025
        %v2027 = vpop.f32.mrb[0].mxu0
        %2028 = vmatprep.mubr.bf16.mxu0 0
        %2029 = vmatmul.mubr.bf16.gmra.mrb[0].mxu0 %v1877
        %v2030 = vpop.f32.mrb[0].mxu0
        %v2031 = vadd.f32 0.0, %v2030
        %v2032 = vpop.f32.mrb[0].mxu0
        %v2033 = vpop.f32.mrb[0].mxu0
        %v2034 = vadd.f32 0.0, %v2033
        %v2035 = vpop.f32.mrb[0].mxu0
        %2036 = vmatprep.mubr.bf16.mxu0 0
        %2037 = vmatmul.mubr.bf16.gmra.mrb[0].mxu0 %v1880
        %v2038 = vpop.f32.mrb[0].mxu0
        %v2039 = vadd.f32 0.0, %v2038
        %v2040 = vpop.f32.mrb[0].mxu0
        %v2041 = vpop.f32.mrb[0].mxu0
        %v2042 = vadd.f32 0.0, %v2041
        %v2043 = vpop.f32.mrb[0].mxu0
        %2044 = vmatprep.mubr.bf16.mxu0 0
        %2045 = vmatmul.mubr.bf16.gmra.mrb[0].mxu0 %v1883
        %v2046 = vpop.f32.mrb[0].mxu0
        %v2047 = vadd.f32 0.0, %v2046
        %v2048 = vpop.f32.mrb[0].mxu0
        %v2049 = vpop.f32.mrb[0].mxu0
        %v2050 = vadd.f32 0.0, %v2049
        %v2051 = vpop.f32.mrb[0].mxu0
        %2052 = vmatprep.mubr.bf16.mxu0 0
        %2053 = vmatmul.mubr.bf16.gmra.mrb[0].mxu0 %v1886
        %v2054 = vpop.f32.mrb[0].mxu0
        %v2055 = vadd.f32 0.0, %v2054
        %v2056 = vpop.f32.mrb[0].mxu0
        %v2057 = vpop.f32.mrb[0].mxu0
        %v2058 = vadd.f32 0.0, %v2057
        %v2059 = vpop.f32.mrb[0].mxu0
        %2060 = vmatprep.mubr.bf16.mxu0 0
        %2061 = vmatmul.mubr.bf16.gmra.mrb[0].mxu0 %v1889
        %v2062 = vpop.f32.mrb[0].mxu0
        %v2063 = vadd.f32 0.0, %v2062
        %v2064 = vpop.f32.mrb[0].mxu0
        %v2065 = vpop.f32.mrb[0].mxu0
        %v2066 = vadd.f32 0.0, %v2065
        %v2067 = vpop.f32.mrb[0].mxu0
        %2068 = vmatprep.mubr.bf16.mxu0 0
        %2069 = vmatmul.mubr.bf16.gmra.mrb[0].mxu0 %v1892
        %v2070 = vpop.f32.mrb[0].mxu0
        %v2071 = vadd.f32 0.0, %v2070
        %v2072 = vpop.f32.mrb[0].mxu0
        %v2073 = vpop.f32.mrb[0].mxu0
        %v2074 = vadd.f32 0.0, %v2073
        %v2075 = vpop.f32.mrb[0].mxu0
        %2076 = vmatprep.mubr.bf16.mxu0 0
        %2077 = vmatmul.mubr.bf16.gmra.mrb[0].mxu0 %v1895
        %v2078 = vpop.f32.mrb[0].mxu0
        %v2079 = vadd.f32 0.0, %v2078
        %v2080 = vpop.f32.mrb[0].mxu0
        %v2081 = vpop.f32.mrb[0].mxu0
        %v2082 = vadd.f32 0.0, %v2081
        %v2083 = vpop.f32.mrb[0].mxu0
        %2084 = vmatprep.mubr.bf16.mxu0 0
        %2085 = vmatmul.mubr.bf16.gmra.mrb[0].mxu0 %v1898
        %v2086 = vpop.f32.mrb[0].mxu0
        %v2087 = vadd.f32 0.0, %v2086
        %v2088 = vpop.f32.mrb[0].mxu0
        %v2089 = vpop.f32.mrb[0].mxu0
        %v2090 = vadd.f32 0.0, %v2089
        %v2091 = vpop.f32.mrb[0].mxu0
        %2092 = vmatprep.mubr.bf16.mxu0 0
        %2093 = vmatmul.mubr.bf16.gmra.mrb[0].mxu0 %v1901
        %v2094 = vpop.f32.mrb[0].mxu0
        %v2095 = vadd.f32 0.0, %v2094
        %v2096 = vpop.f32.mrb[0].mxu0
        %v2097 = vpop.f32.mrb[0].mxu0
        %v2098 = vadd.f32 0.0, %v2097
        %v2099 = vpop.f32.mrb[0].mxu0
        %2100 = vmatprep.mubr.bf16.mxu0 0
        %2101 = vmatmul.mubr.bf16.gmra.mrb[0].mxu0 %v1904
        %v2102 = vpop.f32.mrb[0].mxu0
        %v2103 = vadd.f32 0.0, %v2102
        %v2104 = vpop.f32.mrb[0].mxu0
        %v2105 = vpop.f32.mrb[0].mxu0
        %v2106 = vadd.f32 0.0, %v2105
        %v2107 = vpop.f32.mrb[0].mxu0
        %2108 = vmatprep.mubr.bf16.mxu0 0
        %2109 = vmatmul.mubr.bf16.gmra.mrb[0].mxu0 %v1907
        %v2110 = vpop.f32.mrb[0].mxu0
        %v2111 = vadd.f32 0.0, %v2110
        %v2112 = vpop.f32.mrb[0].mxu0
        %v2113 = vpop.f32.mrb[0].mxu0
        %v2114 = vadd.f32 0.0, %v2113
        %v2115 = vpop.f32.mrb[0].mxu0
        %2116 = vmatprep.mubr.bf16.mxu0 0
        %2117 = vmatmul.mubr.bf16.gmra.mrb[0].mxu0 %v1910
        %v2118 = vpop.f32.mrb[0].mxu0
        %v2119 = vadd.f32 0.0, %v2118
        %v2120 = vpop.f32.mrb[0].mxu0
        %v2121 = vpop.f32.mrb[0].mxu0
        %v2122 = vadd.f32 0.0, %v2121
        %v2123 = vpop.f32.mrb[0].mxu0
        %2124 = vmatprep.mubr.bf16.mxu0 0
        %2125 = vmatmul.mubr.bf16.gmra.mrb[0].mxu0 %v1913
        %v2126 = vpop.f32.mrb[0].mxu0
        %v2127 = vadd.f32 0.0, %v2126
        %v2128 = vpop.f32.mrb[0].mxu0
        %v2129 = vpop.f32.mrb[0].mxu0
        %v2130 = vadd.f32 0.0, %v2129
        %v2131 = vpop.f32.mrb[0].mxu0
        %2132 = vmatprep.mubr.bf16.mxu0 0
        %2133 = vmatmul.mubr.bf16.gmra.mrb[0].mxu0 %v1916
        %v2134 = vpop.f32.mrb[0].mxu0
        %v2135 = vadd.f32 0.0, %v2134
        %v2136 = vpop.f32.mrb[0].mxu0
        %v2137 = vpop.f32.mrb[0].mxu0
        %v2138 = vadd.f32 0.0, %v2137
        %v2139 = vpop.f32.mrb[0].mxu0
        %2140 = vmatprep.mubr.bf16.mxu0 0
        %2141 = vmatmul.mubr.bf16.gmra.mrb[0].mxu0 %v1919
        %v2142 = vpop.f32.mrb[0].mxu0
        %v2143 = vadd.f32 0.0, %v2142
        %v2144 = vpop.f32.mrb[0].mxu0
        %v2145 = vpop.f32.mrb[0].mxu0
        %v2146 = vadd.f32 0.0, %v2145
        %v2147 = vpop.f32.mrb[0].mxu0
        %2148 = vdwg.mxu0
        %v2149 = vld [vmem:[#allocation2] sm:$0xff]
        %v2150 = vld [vmem:[#allocation2 + $0x8] sm:$0xff]
        %v2151 = vld [vmem:[#allocation2 + $0x10] sm:$0xff]
        %v2152 = vld [vmem:[#allocation2 + $0x18] sm:$0xff]
        %v2153 = vld [vmem:[#allocation2 + $0x20] sm:$0xff]
        %v2154 = vld [vmem:[#allocation2 + $0x28] sm:$0xff]
        %v2155 = vld [vmem:[#allocation2 + $0x30] sm:$0xff]
        %v2156 = vld [vmem:[#allocation2 + $0x38] sm:$0xff]
        %v2157 = vld [vmem:[#allocation2 + $0x40] sm:$0xff]
        %v2158 = vld [vmem:[#allocation2 + $0x48] sm:$0xff]
        %v2159 = vld [vmem:[#allocation2 + $0x50] sm:$0xff]
        %v2160 = vld [vmem:[#allocation2 + $0x58] sm:$0xff]
        %v2161 = vld [vmem:[#allocation2 + $0x60] sm:$0xff]
        %v2162 = vld [vmem:[#allocation2 + $0x68] sm:$0xff]
        %v2163 = vld [vmem:[#allocation2 + $0x70] sm:$0xff]
        %v2164 = vld [vmem:[#allocation2 + $0x78] sm:$0xff]
        %v2165 = vld [vmem:[#allocation2 + $0x80] sm:$0xff]
        %v2166 = vld [vmem:[#allocation2 + $0x88] sm:$0xff]
        %v2167 = vld [vmem:[#allocation2 + $0x90] sm:$0xff]
        %v2168 = vld [vmem:[#allocation2 + $0x98] sm:$0xff]
        %v2169 = vld [vmem:[#allocation2 + $0xa0] sm:$0xff]
        %v2170 = vld [vmem:[#allocation2 + $0xa8] sm:$0xff]
        %v2171 = vld [vmem:[#allocation2 + $0xb0] sm:$0xff]
        %v2172 = vld [vmem:[#allocation2 + $0xb8] sm:$0xff]
        %v2173 = vld [vmem:[#allocation2 + $0xc0] sm:$0xff]
        %v2174 = vld [vmem:[#allocation2 + $0xc8] sm:$0xff]
        %v2175 = vld [vmem:[#allocation2 + $0xd0] sm:$0xff]
        %v2176 = vld [vmem:[#allocation2 + $0xd8] sm:$0xff]
        %v2177 = vld [vmem:[#allocation2 + $0xe0] sm:$0xff]
        %v2178 = vld [vmem:[#allocation2 + $0xe8] sm:$0xff]
        %v2179 = vld [vmem:[#allocation2 + $0xf0] sm:$0xff]
        %v2180 = vld [vmem:[#allocation2 + $0xf8] sm:$0xff]
        %v2181 = vld [vmem:[#allocation2 + $0x100] sm:$0xff]
        %v2182 = vld [vmem:[#allocation2 + $0x108] sm:$0xff]
        %v2183 = vld [vmem:[#allocation2 + $0x110] sm:$0xff]
        %v2184 = vld [vmem:[#allocation2 + $0x118] sm:$0xff]
        %v2185 = vld [vmem:[#allocation2 + $0x120] sm:$0xff]
        %v2186 = vld [vmem:[#allocation2 + $0x128] sm:$0xff]
        %v2187 = vld [vmem:[#allocation2 + $0x130] sm:$0xff]
        %v2188 = vld [vmem:[#allocation2 + $0x138] sm:$0xff]
        %v2189 = vld [vmem:[#allocation2 + $0x140] sm:$0xff]
        %v2190 = vld [vmem:[#allocation2 + $0x148] sm:$0xff]
        %v2191 = vld [vmem:[#allocation2 + $0x150] sm:$0xff]
        %v2192 = vld [vmem:[#allocation2 + $0x158] sm:$0xff]
        %v2193 = vld [vmem:[#allocation2 + $0x160] sm:$0xff]
        %v2194 = vld [vmem:[#allocation2 + $0x168] sm:$0xff]
        %v2195 = vld [vmem:[#allocation2 + $0x170] sm:$0xff]
        %v2196 = vld [vmem:[#allocation2 + $0x178] sm:$0xff]
        %v2197 = vadd.f32 %v2149, %v1959
        %v2198 = vadd.f32 %v2150, %v1962
        %v2199 = vadd.f32 %v2151, %v1967
        %v2200 = vadd.f32 %v2152, %v1970
        %v2201 = vadd.f32 %v2153, %v1975
        %v2202 = vadd.f32 %v2154, %v1978
        %v2203 = vadd.f32 %v2155, %v1983
        %v2204 = vadd.f32 %v2156, %v1986
        %v2205 = vadd.f32 %v2157, %v1991
        %v2206 = vadd.f32 %v2158, %v1994
        %v2207 = vadd.f32 %v2159, %v1999
        %v2208 = vadd.f32 %v2160, %v2002
        %v2209 = vadd.f32 %v2161, %v2007
        %v2210 = vadd.f32 %v2162, %v2010
        %v2211 = vadd.f32 %v2163, %v2015
        %v2212 = vadd.f32 %v2164, %v2018
        %v2213 = vadd.f32 %v2165, %v2023
        %v2214 = vadd.f32 %v2166, %v2026
        %v2215 = vadd.f32 %v2167, %v2031
        %v2216 = vadd.f32 %v2168, %v2034
        %v2217 = vadd.f32 %v2169, %v2039
        %v2218 = vadd.f32 %v2170, %v2042
        %v2219 = vadd.f32 %v2171, %v2047
        %v2220 = vadd.f32 %v2172, %v2050
        %v2221 = vadd.f32 %v2173, %v2055
        %v2222 = vadd.f32 %v2174, %v2058
        %v2223 = vadd.f32 %v2175, %v2063
        %v2224 = vadd.f32 %v2176, %v2066
        %v2225 = vadd.f32 %v2177, %v2071
        %v2226 = vadd.f32 %v2178, %v2074
        %v2227 = vadd.f32 %v2179, %v2079
        %v2228 = vadd.f32 %v2180, %v2082
        %v2229 = vadd.f32 %v2181, %v2087
        %v2230 = vadd.f32 %v2182, %v2090
        %v2231 = vadd.f32 %v2183, %v2095
        %v2232 = vadd.f32 %v2184, %v2098
        %v2233 = vadd.f32 %v2185, %v2103
        %v2234 = vadd.f32 %v2186, %v2106
        %v2235 = vadd.f32 %v2187, %v2111
        %v2236 = vadd.f32 %v2188, %v2114
        %v2237 = vadd.f32 %v2189, %v2119
        %v2238 = vadd.f32 %v2190, %v2122
        %v2239 = vadd.f32 %v2191, %v2127
        %v2240 = vadd.f32 %v2192, %v2130
        %v2241 = vadd.f32 %v2193, %v2135
        %v2242 = vadd.f32 %v2194, %v2138
        %v2243 = vadd.f32 %v2195, %v2143
        %v2244 = vadd.f32 %v2196, %v2146
        %2245 = vst [vmem:[#allocation2] sm:$0xff] %v2197
        %2246 = vst [vmem:[#allocation2 + $0x8] sm:$0xff] %v2198
        %2247 = vst [vmem:[#allocation2 + $0x10] sm:$0xff] %v2199
        %2248 = vst [vmem:[#allocation2 + $0x18] sm:$0xff] %v2200
        %2249 = vst [vmem:[#allocation2 + $0x20] sm:$0xff] %v2201
        %2250 = vst [vmem:[#allocation2 + $0x28] sm:$0xff] %v2202
        %2251 = vst [vmem:[#allocation2 + $0x30] sm:$0xff] %v2203
        %2252 = vst [vmem:[#allocation2 + $0x38] sm:$0xff] %v2204
        %2253 = vst [vmem:[#allocation2 + $0x40] sm:$0xff] %v2205
        %2254 = vst [vmem:[#allocation2 + $0x48] sm:$0xff] %v2206
        %2255 = vst [vmem:[#allocation2 + $0x50] sm:$0xff] %v2207
        %2256 = vst [vmem:[#allocation2 + $0x58] sm:$0xff] %v2208
        %2257 = vst [vmem:[#allocation2 + $0x60] sm:$0xff] %v2209
        %2258 = vst [vmem:[#allocation2 + $0x68] sm:$0xff] %v2210
        %2259 = vst [vmem:[#allocation2 + $0x70] sm:$0xff] %v2211
        %2260 = vst [vmem:[#allocation2 + $0x78] sm:$0xff] %v2212
        %2261 = vst [vmem:[#allocation2 + $0x80] sm:$0xff] %v2213
        %2262 = vst [vmem:[#allocation2 + $0x88] sm:$0xff] %v2214
        %2263 = vst [vmem:[#allocation2 + $0x90] sm:$0xff] %v2215
        %2264 = vst [vmem:[#allocation2 + $0x98] sm:$0xff] %v2216
        %2265 = vst [vmem:[#allocation2 + $0xa0] sm:$0xff] %v2217
        %2266 = vst [vmem:[#allocation2 + $0xa8] sm:$0xff] %v2218
        %2267 = vst [vmem:[#allocation2 + $0xb0] sm:$0xff] %v2219
        %2268 = vst [vmem:[#allocation2 + $0xb8] sm:$0xff] %v2220
        %2269 = vst [vmem:[#allocation2 + $0xc0] sm:$0xff] %v2221
        %2270 = vst [vmem:[#allocation2 + $0xc8] sm:$0xff] %v2222
        %2271 = vst [vmem:[#allocation2 + $0xd0] sm:$0xff] %v2223
        %2272 = vst [vmem:[#allocation2 + $0xd8] sm:$0xff] %v2224
        %2273 = vst [vmem:[#allocation2 + $0xe0] sm:$0xff] %v2225
        %2274 = vst [vmem:[#allocation2 + $0xe8] sm:$0xff] %v2226
        %2275 = vst [vmem:[#allocation2 + $0xf0] sm:$0xff] %v2227
        %2276 = vst [vmem:[#allocation2 + $0xf8] sm:$0xff] %v2228
        %2277 = vst [vmem:[#allocation2 + $0x100] sm:$0xff] %v2229
        %2278 = vst [vmem:[#allocation2 + $0x108] sm:$0xff] %v2230
        %2279 = vst [vmem:[#allocation2 + $0x110] sm:$0xff] %v2231
        %2280 = vst [vmem:[#allocation2 + $0x118] sm:$0xff] %v2232
        %2281 = vst [vmem:[#allocation2 + $0x120] sm:$0xff] %v2233
        %2282 = vst [vmem:[#allocation2 + $0x128] sm:$0xff] %v2234
        %2283 = vst [vmem:[#allocation2 + $0x130] sm:$0xff] %v2235
        %2284 = vst [vmem:[#allocation2 + $0x138] sm:$0xff] %v2236
        %2285 = vst [vmem:[#allocation2 + $0x140] sm:$0xff] %v2237
        %2286 = vst [vmem:[#allocation2 + $0x148] sm:$0xff] %v2238
        %2287 = vst [vmem:[#allocation2 + $0x150] sm:$0xff] %v2239
        %2288 = vst [vmem:[#allocation2 + $0x158] sm:$0xff] %v2240
        %2289 = vst [vmem:[#allocation2 + $0x160] sm:$0xff] %v2241
        %2290 = vst [vmem:[#allocation2 + $0x168] sm:$0xff] %v2242
        %2291 = vst [vmem:[#allocation2 + $0x170] sm:$0xff] %v2243
        %2292 = vst [vmem:[#allocation2 + $0x178] sm:$0xff] %v2244
        %s2293 = scalar_lea.vmem %s210, 8
        %v2294 = vld [vmem:[%s2293] sm:$0x3]
        %v2296 = vsel %vm457, %v2294, 0
        %2298 = vmatprep.subr.bf16.mxu0 0
        %2299 = vmatpush1.bf16.msra.mxu0 %v2296
        %2300 = vmatprep.subr.bf16.mxu0 0
        %2301 = vmatpush1.bf16.msra.mxu0 0
        %2302 = vmatprep.subr.bf16.mxu0 0
        %2303 = vmatpush1.bf16.msra.mxu0 0
        %2304 = vmatprep.subr.bf16.mxu0 0
        %2305 = vmatpush1.bf16.msra.mxu0 0
        %2306 = vmatprep.subr.bf16.mxu0 0
        %2307 = vmatpush1.bf16.msra.mxu0 0
        %2308 = vmatprep.subr.bf16.mxu0 0
        %2309 = vmatpush1.bf16.msra.mxu0 0
        %2310 = vmatprep.subr.bf16.mxu0 0
        %2311 = vmatpush1.bf16.msra.mxu0 0
        %2312 = vmatprep.subr.bf16.mxu0 0
        %2313 = vmatpush1.bf16.msra.mxu0 0
        %2314 = vmatprep.subr.bf16.mxu0 0
        %2315 = vmatpush1.bf16.msra.mxu0 0
        %2316 = vmatprep.subr.bf16.mxu0 0
        %2317 = vmatpush1.bf16.msra.mxu0 0
        %2318 = vmatprep.subr.bf16.mxu0 0
        %2319 = vmatpush1.bf16.msra.mxu0 0
        %2320 = vmatprep.subr.bf16.mxu0 0
        %2321 = vmatpush1.bf16.msra.mxu0 0
        %2322 = vmatprep.subr.bf16.mxu0 0
        %2323 = vmatpush1.bf16.msra.mxu0 0
        %2324 = vmatprep.subr.bf16.mxu0 0
        %2325 = vmatpush1.bf16.msra.mxu0 0
        %2326 = vmatprep.subr.bf16.mxu0 0
        %2327 = vmatpush1.bf16.msra.mxu0 0
        %2328 = vmatprep.subr.bf16.mxu0 0
        %2329 = vmatpush1.bf16.msra.mxu0 0
        %2330 = vmatprep.mubr.bf16.mxu0 0
        %2331 = vmatmul.mubr.bf16.gmra.mrb[0].mxu0 %v1850
        %v2332 = vpop.f32.mrb[0].mxu0
        %v2333 = vadd.f32 0.0, %v2332
        %v2334 = vpop.f32.mrb[0].mxu0
        %v2335 = vpop.f32.mrb[0].mxu0
        %v2336 = vadd.f32 0.0, %v2335
        %v2337 = vpop.f32.mrb[0].mxu0
        %2338 = vmatprep.mubr.bf16.mxu0 0
        %2339 = vmatmul.mubr.bf16.gmra.mrb[0].mxu0 %v1853
        %v2340 = vpop.f32.mrb[0].mxu0
        %v2341 = vadd.f32 0.0, %v2340
        %v2342 = vpop.f32.mrb[0].mxu0
        %v2343 = vpop.f32.mrb[0].mxu0
        %v2344 = vadd.f32 0.0, %v2343
        %v2345 = vpop.f32.mrb[0].mxu0
        %2346 = vmatprep.mubr.bf16.mxu0 0
        %2347 = vmatmul.mubr.bf16.gmra.mrb[0].mxu0 %v1856
        %v2348 = vpop.f32.mrb[0].mxu0
        %v2349 = vadd.f32 0.0, %v2348
        %v2350 = vpop.f32.mrb[0].mxu0
        %v2351 = vpop.f32.mrb[0].mxu0
        %v2352 = vadd.f32 0.0, %v2351
        %v2353 = vpop.f32.mrb[0].mxu0
        %2354 = vmatprep.mubr.bf16.mxu0 0
        %2355 = vmatmul.mubr.bf16.gmra.mrb[0].mxu0 %v1859
        %v2356 = vpop.f32.mrb[0].mxu0
        %v2357 = vadd.f32 0.0, %v2356
        %v2358 = vpop.f32.mrb[0].mxu0
        %v2359 = vpop.f32.mrb[0].mxu0
        %v2360 = vadd.f32 0.0, %v2359
        %v2361 = vpop.f32.mrb[0].mxu0
        %2362 = vmatprep.mubr.bf16.mxu0 0
        %2363 = vmatmul.mubr.bf16.gmra.mrb[0].mxu0 %v1862
        %v2364 = vpop.f32.mrb[0].mxu0
        %v2365 = vadd.f32 0.0, %v2364
        %v2366 = vpop.f32.mrb[0].mxu0
        %v2367 = vpop.f32.mrb[0].mxu0
        %v2368 = vadd.f32 0.0, %v2367
        %v2369 = vpop.f32.mrb[0].mxu0
        %2370 = vmatprep.mubr.bf16.mxu0 0
        %2371 = vmatmul.mubr.bf16.gmra.mrb[0].mxu0 %v1865
        %v2372 = vpop.f32.mrb[0].mxu0
        %v2373 = vadd.f32 0.0, %v2372
        %v2374 = vpop.f32.mrb[0].mxu0
        %v2375 = vpop.f32.mrb[0].mxu0
        %v2376 = vadd.f32 0.0, %v2375
        %v2377 = vpop.f32.mrb[0].mxu0
        %2378 = vmatprep.mubr.bf16.mxu0 0
        %2379 = vmatmul.mubr.bf16.gmra.mrb[0].mxu0 %v1868
        %v2380 = vpop.f32.mrb[0].mxu0
        %v2381 = vadd.f32 0.0, %v2380
        %v2382 = vpop.f32.mrb[0].mxu0
        %v2383 = vpop.f32.mrb[0].mxu0
        %v2384 = vadd.f32 0.0, %v2383
        %v2385 = vpop.f32.mrb[0].mxu0
        %2386 = vmatprep.mubr.bf16.mxu0 0
        %2387 = vmatmul.mubr.bf16.gmra.mrb[0].mxu0 %v1871
        %v2388 = vpop.f32.mrb[0].mxu0
        %v2389 = vadd.f32 0.0, %v2388
        %v2390 = vpop.f32.mrb[0].mxu0
        %v2391 = vpop.f32.mrb[0].mxu0
        %v2392 = vadd.f32 0.0, %v2391
        %v2393 = vpop.f32.mrb[0].mxu0
        %2394 = vmatprep.mubr.bf16.mxu0 0
        %2395 = vmatmul.mubr.bf16.gmra.mrb[0].mxu0 %v1874
        %v2396 = vpop.f32.mrb[0].mxu0
        %v2397 = vadd.f32 0.0, %v2396
        %v2398 = vpop.f32.mrb[0].mxu0
        %v2399 = vpop.f32.mrb[0].mxu0
        %v2400 = vadd.f32 0.0, %v2399
        %v2401 = vpop.f32.mrb[0].mxu0
        %2402 = vmatprep.mubr.bf16.mxu0 0
        %2403 = vmatmul.mubr.bf16.gmra.mrb[0].mxu0 %v1877
        %v2404 = vpop.f32.mrb[0].mxu0
        %v2405 = vadd.f32 0.0, %v2404
        %v2406 = vpop.f32.mrb[0].mxu0
        %v2407 = vpop.f32.mrb[0].mxu0
        %v2408 = vadd.f32 0.0, %v2407
        %v2409 = vpop.f32.mrb[0].mxu0
        %2410 = vmatprep.mubr.bf16.mxu0 0
        %2411 = vmatmul.mubr.bf16.gmra.mrb[0].mxu0 %v1880
        %v2412 = vpop.f32.mrb[0].mxu0
        %v2413 = vadd.f32 0.0, %v2412
        %v2414 = vpop.f32.mrb[0].mxu0
        %v2415 = vpop.f32.mrb[0].mxu0
        %v2416 = vadd.f32 0.0, %v2415
        %v2417 = vpop.f32.mrb[0].mxu0
        %2418 = vmatprep.mubr.bf16.mxu0 0
        %2419 = vmatmul.mubr.bf16.gmra.mrb[0].mxu0 %v1883
        %v2420 = vpop.f32.mrb[0].mxu0
        %v2421 = vadd.f32 0.0, %v2420
        %v2422 = vpop.f32.mrb[0].mxu0
        %v2423 = vpop.f32.mrb[0].mxu0
        %v2424 = vadd.f32 0.0, %v2423
        %v2425 = vpop.f32.mrb[0].mxu0
        %2426 = vmatprep.mubr.bf16.mxu0 0
        %2427 = vmatmul.mubr.bf16.gmra.mrb[0].mxu0 %v1886
        %v2428 = vpop.f32.mrb[0].mxu0
        %v2429 = vadd.f32 0.0, %v2428
        %v2430 = vpop.f32.mrb[0].mxu0
        %v2431 = vpop.f32.mrb[0].mxu0
        %v2432 = vadd.f32 0.0, %v2431
        %v2433 = vpop.f32.mrb[0].mxu0
        %2434 = vmatprep.mubr.bf16.mxu0 0
        %2435 = vmatmul.mubr.bf16.gmra.mrb[0].mxu0 %v1889
        %v2436 = vpop.f32.mrb[0].mxu0
        %v2437 = vadd.f32 0.0, %v2436
        %v2438 = vpop.f32.mrb[0].mxu0
        %v2439 = vpop.f32.mrb[0].mxu0
        %v2440 = vadd.f32 0.0, %v2439
        %v2441 = vpop.f32.mrb[0].mxu0
        %2442 = vmatprep.mubr.bf16.mxu0 0
        %2443 = vmatmul.mubr.bf16.gmra.mrb[0].mxu0 %v1892
        %v2444 = vpop.f32.mrb[0].mxu0
        %v2445 = vadd.f32 0.0, %v2444
        %v2446 = vpop.f32.mrb[0].mxu0
        %v2447 = vpop.f32.mrb[0].mxu0
        %v2448 = vadd.f32 0.0, %v2447
        %v2449 = vpop.f32.mrb[0].mxu0
        %2450 = vmatprep.mubr.bf16.mxu0 0
        %2451 = vmatmul.mubr.bf16.gmra.mrb[0].mxu0 %v1895
        %v2452 = vpop.f32.mrb[0].mxu0
        %v2453 = vadd.f32 0.0, %v2452
        %v2454 = vpop.f32.mrb[0].mxu0
        %v2455 = vpop.f32.mrb[0].mxu0
        %v2456 = vadd.f32 0.0, %v2455
        %v2457 = vpop.f32.mrb[0].mxu0
        %2458 = vmatprep.mubr.bf16.mxu0 0
        %2459 = vmatmul.mubr.bf16.gmra.mrb[0].mxu0 %v1898
        %v2460 = vpop.f32.mrb[0].mxu0
        %v2461 = vadd.f32 0.0, %v2460
        %v2462 = vpop.f32.mrb[0].mxu0
        %v2463 = vpop.f32.mrb[0].mxu0
        %v2464 = vadd.f32 0.0, %v2463
        %v2465 = vpop.f32.mrb[0].mxu0
        %2466 = vmatprep.mubr.bf16.mxu0 0
        %2467 = vmatmul.mubr.bf16.gmra.mrb[0].mxu0 %v1901
        %v2468 = vpop.f32.mrb[0].mxu0
        %v2469 = vadd.f32 0.0, %v2468
        %v2470 = vpop.f32.mrb[0].mxu0
        %v2471 = vpop.f32.mrb[0].mxu0
        %v2472 = vadd.f32 0.0, %v2471
        %v2473 = vpop.f32.mrb[0].mxu0
        %2474 = vmatprep.mubr.bf16.mxu0 0
        %2475 = vmatmul.mubr.bf16.gmra.mrb[0].mxu0 %v1904
        %v2476 = vpop.f32.mrb[0].mxu0
        %v2477 = vadd.f32 0.0, %v2476
        %v2478 = vpop.f32.mrb[0].mxu0
        %v2479 = vpop.f32.mrb[0].mxu0
        %v2480 = vadd.f32 0.0, %v2479
        %v2481 = vpop.f32.mrb[0].mxu0
        %2482 = vmatprep.mubr.bf16.mxu0 0
        %2483 = vmatmul.mubr.bf16.gmra.mrb[0].mxu0 %v1907
        %v2484 = vpop.f32.mrb[0].mxu0
        %v2485 = vadd.f32 0.0, %v2484
        %v2486 = vpop.f32.mrb[0].mxu0
        %v2487 = vpop.f32.mrb[0].mxu0
        %v2488 = vadd.f32 0.0, %v2487
        %v2489 = vpop.f32.mrb[0].mxu0
        %2490 = vmatprep.mubr.bf16.mxu0 0
        %2491 = vmatmul.mubr.bf16.gmra.mrb[0].mxu0 %v1910
        %v2492 = vpop.f32.mrb[0].mxu0
        %v2493 = vadd.f32 0.0, %v2492
        %v2494 = vpop.f32.mrb[0].mxu0
        %v2495 = vpop.f32.mrb[0].mxu0
        %v2496 = vadd.f32 0.0, %v2495
        %v2497 = vpop.f32.mrb[0].mxu0
        %2498 = vmatprep.mubr.bf16.mxu0 0
        %2499 = vmatmul.mubr.bf16.gmra.mrb[0].mxu0 %v1913
        %v2500 = vpop.f32.mrb[0].mxu0
        %v2501 = vadd.f32 0.0, %v2500
        %v2502 = vpop.f32.mrb[0].mxu0
        %v2503 = vpop.f32.mrb[0].mxu0
        %v2504 = vadd.f32 0.0, %v2503
        %v2505 = vpop.f32.mrb[0].mxu0
        %2506 = vmatprep.mubr.bf16.mxu0 0
        %2507 = vmatmul.mubr.bf16.gmra.mrb[0].mxu0 %v1916
        %v2508 = vpop.f32.mrb[0].mxu0
        %v2509 = vadd.f32 0.0, %v2508
        %v2510 = vpop.f32.mrb[0].mxu0
        %v2511 = vpop.f32.mrb[0].mxu0
        %v2512 = vadd.f32 0.0, %v2511
        %v2513 = vpop.f32.mrb[0].mxu0
        %2514 = vmatprep.mubr.bf16.mxu0 0
        %2515 = vmatmul.mubr.bf16.gmra.mrb[0].mxu0 %v1919
        %v2516 = vpop.f32.mrb[0].mxu0
        %v2517 = vadd.f32 0.0, %v2516
        %v2518 = vpop.f32.mrb[0].mxu0
        %v2519 = vpop.f32.mrb[0].mxu0
        %v2520 = vadd.f32 0.0, %v2519
        %v2521 = vpop.f32.mrb[0].mxu0
        %2522 = vdwg.mxu0
        %v2523 = vrot.slane %v2333, 1
        %v2524 = vrot.slane %v2336, 1
        %v2525 = vrot.slane %v2341, 1
        %v2526 = vrot.slane %v2344, 1
        %v2527 = vrot.slane %v2349, 1
        %v2528 = vrot.slane %v2352, 1
        %v2529 = vrot.slane %v2357, 1
        %v2530 = vrot.slane %v2360, 1
        %v2531 = vrot.slane %v2365, 1
        %v2532 = vrot.slane %v2368, 1
        %v2533 = vrot.slane %v2373, 1
        %v2534 = vrot.slane %v2376, 1
        %v2535 = vrot.slane %v2381, 1
        %v2536 = vrot.slane %v2384, 1
        %v2537 = vrot.slane %v2389, 1
        %v2538 = vrot.slane %v2392, 1
        %v2539 = vrot.slane %v2397, 1
        %v2540 = vrot.slane %v2400, 1
        %v2541 = vrot.slane %v2405, 1
        %v2542 = vrot.slane %v2408, 1
        %v2543 = vrot.slane %v2413, 1
        %v2544 = vrot.slane %v2416, 1
        %v2545 = vrot.slane %v2421, 1
        %v2546 = vrot.slane %v2424, 1
        %v2547 = vrot.slane %v2429, 1
        %v2548 = vrot.slane %v2432, 1
        %v2549 = vrot.slane %v2437, 1
        %v2550 = vrot.slane %v2440, 1
        %v2551 = vrot.slane %v2445, 1
        %v2552 = vrot.slane %v2448, 1
        %v2553 = vrot.slane %v2453, 1
        %v2554 = vrot.slane %v2456, 1
        %v2555 = vrot.slane %v2461, 1
        %v2556 = vrot.slane %v2464, 1
        %v2557 = vrot.slane %v2469, 1
        %v2558 = vrot.slane %v2472, 1
        %v2559 = vrot.slane %v2477, 1
        %v2560 = vrot.slane %v2480, 1
        %v2561 = vrot.slane %v2485, 1
        %v2562 = vrot.slane %v2488, 1
        %v2563 = vrot.slane %v2493, 1
        %v2564 = vrot.slane %v2496, 1
        %v2565 = vrot.slane %v2501, 1
        %v2566 = vrot.slane %v2504, 1
        %v2567 = vrot.slane %v2509, 1
        %v2568 = vrot.slane %v2512, 1
        %v2569 = vrot.slane %v2517, 1
        %v2570 = vrot.slane %v2520, 1
        %v2571 = vsel %vm1014, %v2569, %v2570
        %v2572 = vsel %vm1014, %v2568, %v2569
        %v2573 = vsel %vm1014, %v2567, %v2568
        %v2574 = vsel %vm1014, %v2566, %v2567
        %v2575 = vsel %vm1014, %v2565, %v2566
        %v2576 = vsel %vm1014, %v2564, %v2565
        %v2577 = vsel %vm1014, %v2563, %v2564
        %v2578 = vsel %vm1014, %v2562, %v2563
        %v2579 = vsel %vm1014, %v2561, %v2562
        %v2580 = vsel %vm1014, %v2560, %v2561
        %v2581 = vsel %vm1014, %v2559, %v2560
        %v2582 = vsel %vm1014, %v2558, %v2559
        %v2583 = vsel %vm1014, %v2557, %v2558
        %v2584 = vsel %vm1014, %v2556, %v2557
        %v2585 = vsel %vm1014, %v2555, %v2556
        %v2586 = vsel %vm1014, %v2554, %v2555
        %v2587 = vsel %vm1014, %v2553, %v2554
        %v2588 = vsel %vm1014, %v2552, %v2553
        %v2589 = vsel %vm1014, %v2551, %v2552
        %v2590 = vsel %vm1014, %v2550, %v2551
        %v2591 = vsel %vm1014, %v2549, %v2550
        %v2592 = vsel %vm1014, %v2548, %v2549
        %v2593 = vsel %vm1014, %v2547, %v2548
        %v2594 = vsel %vm1014, %v2546, %v2547
        %v2595 = vsel %vm1014, %v2545, %v2546
        %v2596 = vsel %vm1014, %v2544, %v2545
        %v2597 = vsel %vm1014, %v2543, %v2544
        %v2598 = vsel %vm1014, %v2542, %v2543
        %v2599 = vsel %vm1014, %v2541, %v2542
        %v2600 = vsel %vm1014, %v2540, %v2541
        %v2601 = vsel %vm1014, %v2539, %v2540
        %v2602 = vsel %vm1014, %v2538, %v2539
        %v2603 = vsel %vm1014, %v2537, %v2538
        %v2604 = vsel %vm1014, %v2536, %v2537
        %v2605 = vsel %vm1014, %v2535, %v2536
        %v2606 = vsel %vm1014, %v2534, %v2535
        %v2607 = vsel %vm1014, %v2533, %v2534
        %v2608 = vsel %vm1014, %v2532, %v2533
        %v2609 = vsel %vm1014, %v2531, %v2532
        %v2610 = vsel %vm1014, %v2530, %v2531
        %v2611 = vsel %vm1014, %v2529, %v2530
        %v2612 = vsel %vm1014, %v2528, %v2529
        %v2613 = vsel %vm1014, %v2527, %v2528
        %v2614 = vsel %vm1014, %v2526, %v2527
        %v2615 = vsel %vm1014, %v2525, %v2526
        %v2616 = vsel %vm1014, %v2524, %v2525
        %v2617 = vsel %vm1014, %v2523, %v2524
        %v2618 = vsel %vm1014, %v2570, %v2523
        %v2619 = vld [vmem:[#allocation2] sm:$0xff]
        %v2620 = vld [vmem:[#allocation2 + $0x8] sm:$0xff]
        %v2621 = vld [vmem:[#allocation2 + $0x10] sm:$0xff]
        %v2622 = vld [vmem:[#allocation2 + $0x18] sm:$0xff]
        %v2623 = vld [vmem:[#allocation2 + $0x20] sm:$0xff]
        %v2624 = vld [vmem:[#allocation2 + $0x28] sm:$0xff]
        %v2625 = vld [vmem:[#allocation2 + $0x30] sm:$0xff]
        %v2626 = vld [vmem:[#allocation2 + $0x38] sm:$0xff]
        %v2627 = vld [vmem:[#allocation2 + $0x40] sm:$0xff]
        %v2628 = vld [vmem:[#allocation2 + $0x48] sm:$0xff]
        %v2629 = vld [vmem:[#allocation2 + $0x50] sm:$0xff]
        %v2630 = vld [vmem:[#allocation2 + $0x58] sm:$0xff]
        %v2631 = vld [vmem:[#allocation2 + $0x60] sm:$0xff]
        %v2632 = vld [vmem:[#allocation2 + $0x68] sm:$0xff]
        %v2633 = vld [vmem:[#allocation2 + $0x70] sm:$0xff]
        %v2634 = vld [vmem:[#allocation2 + $0x78] sm:$0xff]
        %v2635 = vld [vmem:[#allocation2 + $0x80] sm:$0xff]
        %v2636 = vld [vmem:[#allocation2 + $0x88] sm:$0xff]
        %v2637 = vld [vmem:[#allocation2 + $0x90] sm:$0xff]
        %v2638 = vld [vmem:[#allocation2 + $0x98] sm:$0xff]
        %v2639 = vld [vmem:[#allocation2 + $0xa0] sm:$0xff]
        %v2640 = vld [vmem:[#allocation2 + $0xa8] sm:$0xff]
        %v2641 = vld [vmem:[#allocation2 + $0xb0] sm:$0xff]
        %v2642 = vld [vmem:[#allocation2 + $0xb8] sm:$0xff]
        %v2643 = vld [vmem:[#allocation2 + $0xc0] sm:$0xff]
        %v2644 = vld [vmem:[#allocation2 + $0xc8] sm:$0xff]
        %v2645 = vld [vmem:[#allocation2 + $0xd0] sm:$0xff]
        %v2646 = vld [vmem:[#allocation2 + $0xd8] sm:$0xff]
        %v2647 = vld [vmem:[#allocation2 + $0xe0] sm:$0xff]
        %v2648 = vld [vmem:[#allocation2 + $0xe8] sm:$0xff]
        %v2649 = vld [vmem:[#allocation2 + $0xf0] sm:$0xff]
        %v2650 = vld [vmem:[#allocation2 + $0xf8] sm:$0xff]
        %v2651 = vld [vmem:[#allocation2 + $0x100] sm:$0xff]
        %v2652 = vld [vmem:[#allocation2 + $0x108] sm:$0xff]
        %v2653 = vld [vmem:[#allocation2 + $0x110] sm:$0xff]
        %v2654 = vld [vmem:[#allocation2 + $0x118] sm:$0xff]
        %v2655 = vld [vmem:[#allocation2 + $0x120] sm:$0xff]
        %v2656 = vld [vmem:[#allocation2 + $0x128] sm:$0xff]
        %v2657 = vld [vmem:[#allocation2 + $0x130] sm:$0xff]
        %v2658 = vld [vmem:[#allocation2 + $0x138] sm:$0xff]
        %v2659 = vld [vmem:[#allocation2 + $0x140] sm:$0xff]
        %v2660 = vld [vmem:[#allocation2 + $0x148] sm:$0xff]
        %v2661 = vld [vmem:[#allocation2 + $0x150] sm:$0xff]
        %v2662 = vld [vmem:[#allocation2 + $0x158] sm:$0xff]
        %v2663 = vld [vmem:[#allocation2 + $0x160] sm:$0xff]
        %v2664 = vld [vmem:[#allocation2 + $0x168] sm:$0xff]
        %v2665 = vld [vmem:[#allocation2 + $0x170] sm:$0xff]
        %v2666 = vld [vmem:[#allocation2 + $0x178] sm:$0xff]
        %v2667 = vadd.f32 %v2619, %v2617
        %v2668 = vadd.f32 %v2620, %v2616
        %v2669 = vadd.f32 %v2621, %v2615
        %v2670 = vadd.f32 %v2622, %v2614
        %v2671 = vadd.f32 %v2623, %v2613
        %v2672 = vadd.f32 %v2624, %v2612
        %v2673 = vadd.f32 %v2625, %v2611
        %v2674 = vadd.f32 %v2626, %v2610
        %v2675 = vadd.f32 %v2627, %v2609
        %v2676 = vadd.f32 %v2628, %v2608
        %v2677 = vadd.f32 %v2629, %v2607
        %v2678 = vadd.f32 %v2630, %v2606
        %v2679 = vadd.f32 %v2631, %v2605
        %v2680 = vadd.f32 %v2632, %v2604
        %v2681 = vadd.f32 %v2633, %v2603
        %v2682 = vadd.f32 %v2634, %v2602
        %v2683 = vadd.f32 %v2635, %v2601
        %v2684 = vadd.f32 %v2636, %v2600
        %v2685 = vadd.f32 %v2637, %v2599
        %v2686 = vadd.f32 %v2638, %v2598
        %v2687 = vadd.f32 %v2639, %v2597
        %v2688 = vadd.f32 %v2640, %v2596
        %v2689 = vadd.f32 %v2641, %v2595
        %v2690 = vadd.f32 %v2642, %v2594
        %v2691 = vadd.f32 %v2643, %v2593
        %v2692 = vadd.f32 %v2644, %v2592
        %v2693 = vadd.f32 %v2645, %v2591
        %v2694 = vadd.f32 %v2646, %v2590
        %v2695 = vadd.f32 %v2647, %v2589
        %v2696 = vadd.f32 %v2648, %v2588
        %v2697 = vadd.f32 %v2649, %v2587
        %v2698 = vadd.f32 %v2650, %v2586
        %v2699 = vadd.f32 %v2651, %v2585
        %v2700 = vadd.f32 %v2652, %v2584
        %v2701 = vadd.f32 %v2653, %v2583
        %v2702 = vadd.f32 %v2654, %v2582
        %v2703 = vadd.f32 %v2655, %v2581
        %v2704 = vadd.f32 %v2656, %v2580
        %v2705 = vadd.f32 %v2657, %v2579
        %v2706 = vadd.f32 %v2658, %v2578
        %v2707 = vadd.f32 %v2659, %v2577
        %v2708 = vadd.f32 %v2660, %v2576
        %v2709 = vadd.f32 %v2661, %v2575
        %v2710 = vadd.f32 %v2662, %v2574
        %v2711 = vadd.f32 %v2663, %v2573
        %v2712 = vadd.f32 %v2664, %v2572
        %v2713 = vadd.f32 %v2665, %v2571
        %v2714 = vadd.f32 %v2666, %v2618
        %2715 = vst [vmem:[#allocation2] sm:$0xff] %v2667
        %2716 = vst [vmem:[#allocation2 + $0x8] sm:$0xff] %v2668
        %2717 = vst [vmem:[#allocation2 + $0x10] sm:$0xff] %v2669
        %2718 = vst [vmem:[#allocation2 + $0x18] sm:$0xff] %v2670
        %2719 = vst [vmem:[#allocation2 + $0x20] sm:$0xff] %v2671
        %2720 = vst [vmem:[#allocation2 + $0x28] sm:$0xff] %v2672
        %2721 = vst [vmem:[#allocation2 + $0x30] sm:$0xff] %v2673
        %2722 = vst [vmem:[#allocation2 + $0x38] sm:$0xff] %v2674
        %2723 = vst [vmem:[#allocation2 + $0x40] sm:$0xff] %v2675
        %2724 = vst [vmem:[#allocation2 + $0x48] sm:$0xff] %v2676
        %2725 = vst [vmem:[#allocation2 + $0x50] sm:$0xff] %v2677
        %2726 = vst [vmem:[#allocation2 + $0x58] sm:$0xff] %v2678
        %2727 = vst [vmem:[#allocation2 + $0x60] sm:$0xff] %v2679
        %2728 = vst [vmem:[#allocation2 + $0x68] sm:$0xff] %v2680
        %2729 = vst [vmem:[#allocation2 + $0x70] sm:$0xff] %v2681
        %2730 = vst [vmem:[#allocation2 + $0x78] sm:$0xff] %v2682
        %2731 = vst [vmem:[#allocation2 + $0x80] sm:$0xff] %v2683
        %2732 = vst [vmem:[#allocation2 + $0x88] sm:$0xff] %v2684
        %2733 = vst [vmem:[#allocation2 + $0x90] sm:$0xff] %v2685
        %2734 = vst [vmem:[#allocation2 + $0x98] sm:$0xff] %v2686
        %2735 = vst [vmem:[#allocation2 + $0xa0] sm:$0xff] %v2687
        %2736 = vst [vmem:[#allocation2 + $0xa8] sm:$0xff] %v2688
        %2737 = vst [vmem:[#allocation2 + $0xb0] sm:$0xff] %v2689
        %2738 = vst [vmem:[#allocation2 + $0xb8] sm:$0xff] %v2690
        %2739 = vst [vmem:[#allocation2 + $0xc0] sm:$0xff] %v2691
        %2740 = vst [vmem:[#allocation2 + $0xc8] sm:$0xff] %v2692
        %2741 = vst [vmem:[#allocation2 + $0xd0] sm:$0xff] %v2693
        %2742 = vst [vmem:[#allocation2 + $0xd8] sm:$0xff] %v2694
        %2743 = vst [vmem:[#allocation2 + $0xe0] sm:$0xff] %v2695
        %2744 = vst [vmem:[#allocation2 + $0xe8] sm:$0xff] %v2696
        %2745 = vst [vmem:[#allocation2 + $0xf0] sm:$0xff] %v2697
        %2746 = vst [vmem:[#allocation2 + $0xf8] sm:$0xff] %v2698
        %2747 = vst [vmem:[#allocation2 + $0x100] sm:$0xff] %v2699
        %2748 = vst [vmem:[#allocation2 + $0x108] sm:$0xff] %v2700
        %2749 = vst [vmem:[#allocation2 + $0x110] sm:$0xff] %v2701
        %2750 = vst [vmem:[#allocation2 + $0x118] sm:$0xff] %v2702
        %2751 = vst [vmem:[#allocation2 + $0x120] sm:$0xff] %v2703
        %2752 = vst [vmem:[#allocation2 + $0x128] sm:$0xff] %v2704
        %2753 = vst [vmem:[#allocation2 + $0x130] sm:$0xff] %v2705
        %2754 = vst [vmem:[#allocation2 + $0x138] sm:$0xff] %v2706
        %2755 = vst [vmem:[#allocation2 + $0x140] sm:$0xff] %v2707
        %2756 = vst [vmem:[#allocation2 + $0x148] sm:$0xff] %v2708
        %2757 = vst [vmem:[#allocation2 + $0x150] sm:$0xff] %v2709
        %2758 = vst [vmem:[#allocation2 + $0x158] sm:$0xff] %v2710
        %2759 = vst [vmem:[#allocation2 + $0x160] sm:$0xff] %v2711
        %2760 = vst [vmem:[#allocation2 + $0x168] sm:$0xff] %v2712
        %2761 = vst [vmem:[#allocation2 + $0x170] sm:$0xff] %v2713
        %2762 = vst [vmem:[#allocation2 + $0x178] sm:$0xff] %v2714
        %s2763 = scalar_lea.vmem %s210, 10
        %v2764 = vld [vmem:[%s2763] sm:$0x3]
        %v2766 = vsel %vm457, %v2764, 0
        %2768 = vmatprep.subr.bf16.mxu0 0
        %2769 = vmatpush1.bf16.msra.mxu0 %v2766
        %2770 = vmatprep.subr.bf16.mxu0 0
        %2771 = vmatpush1.bf16.msra.mxu0 0
        %2772 = vmatprep.subr.bf16.mxu0 0
        %2773 = vmatpush1.bf16.msra.mxu0 0
        %2774 = vmatprep.subr.bf16.mxu0 0
        %2775 = vmatpush1.bf16.msra.mxu0 0
        %2776 = vmatprep.subr.bf16.mxu0 0
        %2777 = vmatpush1.bf16.msra.mxu0 0
        %2778 = vmatprep.subr.bf16.mxu0 0
        %2779 = vmatpush1.bf16.msra.mxu0 0
        %2780 = vmatprep.subr.bf16.mxu0 0
        %2781 = vmatpush1.bf16.msra.mxu0 0
        %2782 = vmatprep.subr.bf16.mxu0 0
        %2783 = vmatpush1.bf16.msra.mxu0 0
        %2784 = vmatprep.subr.bf16.mxu0 0
        %2785 = vmatpush1.bf16.msra.mxu0 0
        %2786 = vmatprep.subr.bf16.mxu0 0
        %2787 = vmatpush1.bf16.msra.mxu0 0
        %2788 = vmatprep.subr.bf16.mxu0 0
        %2789 = vmatpush1.bf16.msra.mxu0 0
        %2790 = vmatprep.subr.bf16.mxu0 0
        %2791 = vmatpush1.bf16.msra.mxu0 0
        %2792 = vmatprep.subr.bf16.mxu0 0
        %2793 = vmatpush1.bf16.msra.mxu0 0
        %2794 = vmatprep.subr.bf16.mxu0 0
        %2795 = vmatpush1.bf16.msra.mxu0 0
        %2796 = vmatprep.subr.bf16.mxu0 0
        %2797 = vmatpush1.bf16.msra.mxu0 0
        %2798 = vmatprep.subr.bf16.mxu0 0
        %2799 = vmatpush1.bf16.msra.mxu0 0
        %2800 = vmatprep.mubr.bf16.mxu0 0
        %2801 = vmatmul.mubr.bf16.gmra.mrb[0].mxu0 %v1850
        %v2802 = vpop.f32.mrb[0].mxu0
        %v2803 = vadd.f32 0.0, %v2802
        %v2804 = vpop.f32.mrb[0].mxu0
        %v2805 = vpop.f32.mrb[0].mxu0
        %v2806 = vadd.f32 0.0, %v2805
        %v2807 = vpop.f32.mrb[0].mxu0
        %2808 = vmatprep.mubr.bf16.mxu0 0
        %2809 = vmatmul.mubr.bf16.gmra.mrb[0].mxu0 %v1853
        %v2810 = vpop.f32.mrb[0].mxu0
        %v2811 = vadd.f32 0.0, %v2810
        %v2812 = vpop.f32.mrb[0].mxu0
        %v2813 = vpop.f32.mrb[0].mxu0
        %v2814 = vadd.f32 0.0, %v2813
        %v2815 = vpop.f32.mrb[0].mxu0
        %2816 = vmatprep.mubr.bf16.mxu0 0
        %2817 = vmatmul.mubr.bf16.gmra.mrb[0].mxu0 %v1856
        %v2818 = vpop.f32.mrb[0].mxu0
        %v2819 = vadd.f32 0.0, %v2818
        %v2820 = vpop.f32.mrb[0].mxu0
        %v2821 = vpop.f32.mrb[0].mxu0
        %v2822 = vadd.f32 0.0, %v2821
        %v2823 = vpop.f32.mrb[0].mxu0
        %2824 = vmatprep.mubr.bf16.mxu0 0
        %2825 = vmatmul.mubr.bf16.gmra.mrb[0].mxu0 %v1859
        %v2826 = vpop.f32.mrb[0].mxu0
        %v2827 = vadd.f32 0.0, %v2826
        %v2828 = vpop.f32.mrb[0].mxu0
        %v2829 = vpop.f32.mrb[0].mxu0
        %v2830 = vadd.f32 0.0, %v2829
        %v2831 = vpop.f32.mrb[0].mxu0
        %2832 = vmatprep.mubr.bf16.mxu0 0
        %2833 = vmatmul.mubr.bf16.gmra.mrb[0].mxu0 %v1862
        %v2834 = vpop.f32.mrb[0].mxu0
        %v2835 = vadd.f32 0.0, %v2834
        %v2836 = vpop.f32.mrb[0].mxu0
        %v2837 = vpop.f32.mrb[0].mxu0
        %v2838 = vadd.f32 0.0, %v2837
        %v2839 = vpop.f32.mrb[0].mxu0
        %2840 = vmatprep.mubr.bf16.mxu0 0
        %2841 = vmatmul.mubr.bf16.gmra.mrb[0].mxu0 %v1865
        %v2842 = vpop.f32.mrb[0].mxu0
        %v2843 = vadd.f32 0.0, %v2842
        %v2844 = vpop.f32.mrb[0].mxu0
        %v2845 = vpop.f32.mrb[0].mxu0
        %v2846 = vadd.f32 0.0, %v2845
        %v2847 = vpop.f32.mrb[0].mxu0
        %2848 = vmatprep.mubr.bf16.mxu0 0
        %2849 = vmatmul.mubr.bf16.gmra.mrb[0].mxu0 %v1868
        %v2850 = vpop.f32.mrb[0].mxu0
        %v2851 = vadd.f32 0.0, %v2850
        %v2852 = vpop.f32.mrb[0].mxu0
        %v2853 = vpop.f32.mrb[0].mxu0
        %v2854 = vadd.f32 0.0, %v2853
        %v2855 = vpop.f32.mrb[0].mxu0
        %2856 = vmatprep.mubr.bf16.mxu0 0
        %2857 = vmatmul.mubr.bf16.gmra.mrb[0].mxu0 %v1871
        %v2858 = vpop.f32.mrb[0].mxu0
        %v2859 = vadd.f32 0.0, %v2858
        %v2860 = vpop.f32.mrb[0].mxu0
        %v2861 = vpop.f32.mrb[0].mxu0
        %v2862 = vadd.f32 0.0, %v2861
        %v2863 = vpop.f32.mrb[0].mxu0
        %2864 = vmatprep.mubr.bf16.mxu0 0
        %2865 = vmatmul.mubr.bf16.gmra.mrb[0].mxu0 %v1874
        %v2866 = vpop.f32.mrb[0].mxu0
        %v2867 = vadd.f32 0.0, %v2866
        %v2868 = vpop.f32.mrb[0].mxu0
        %v2869 = vpop.f32.mrb[0].mxu0
        %v2870 = vadd.f32 0.0, %v2869
        %v2871 = vpop.f32.mrb[0].mxu0
        %2872 = vmatprep.mubr.bf16.mxu0 0
        %2873 = vmatmul.mubr.bf16.gmra.mrb[0].mxu0 %v1877
        %v2874 = vpop.f32.mrb[0].mxu0
        %v2875 = vadd.f32 0.0, %v2874
        %v2876 = vpop.f32.mrb[0].mxu0
        %v2877 = vpop.f32.mrb[0].mxu0
        %v2878 = vadd.f32 0.0, %v2877
        %v2879 = vpop.f32.mrb[0].mxu0
        %2880 = vmatprep.mubr.bf16.mxu0 0
        %2881 = vmatmul.mubr.bf16.gmra.mrb[0].mxu0 %v1880
        %v2882 = vpop.f32.mrb[0].mxu0
        %v2883 = vadd.f32 0.0, %v2882
        %v2884 = vpop.f32.mrb[0].mxu0
        %v2885 = vpop.f32.mrb[0].mxu0
        %v2886 = vadd.f32 0.0, %v2885
        %v2887 = vpop.f32.mrb[0].mxu0
        %2888 = vmatprep.mubr.bf16.mxu0 0
        %2889 = vmatmul.mubr.bf16.gmra.mrb[0].mxu0 %v1883
        %v2890 = vpop.f32.mrb[0].mxu0
        %v2891 = vadd.f32 0.0, %v2890
        %v2892 = vpop.f32.mrb[0].mxu0
        %v2893 = vpop.f32.mrb[0].mxu0
        %v2894 = vadd.f32 0.0, %v2893
        %v2895 = vpop.f32.mrb[0].mxu0
        %2896 = vmatprep.mubr.bf16.mxu0 0
        %2897 = vmatmul.mubr.bf16.gmra.mrb[0].mxu0 %v1886
        %v2898 = vpop.f32.mrb[0].mxu0
        %v2899 = vadd.f32 0.0, %v2898
        %v2900 = vpop.f32.mrb[0].mxu0
        %v2901 = vpop.f32.mrb[0].mxu0
        %v2902 = vadd.f32 0.0, %v2901
        %v2903 = vpop.f32.mrb[0].mxu0
        %2904 = vmatprep.mubr.bf16.mxu0 0
        %2905 = vmatmul.mubr.bf16.gmra.mrb[0].mxu0 %v1889
        %v2906 = vpop.f32.mrb[0].mxu0
        %v2907 = vadd.f32 0.0, %v2906
        %v2908 = vpop.f32.mrb[0].mxu0
        %v2909 = vpop.f32.mrb[0].mxu0
        %v2910 = vadd.f32 0.0, %v2909
        %v2911 = vpop.f32.mrb[0].mxu0
        %2912 = vmatprep.mubr.bf16.mxu0 0
        %2913 = vmatmul.mubr.bf16.gmra.mrb[0].mxu0 %v1892
        %v2914 = vpop.f32.mrb[0].mxu0
        %v2915 = vadd.f32 0.0, %v2914
        %v2916 = vpop.f32.mrb[0].mxu0
        %v2917 = vpop.f32.mrb[0].mxu0
        %v2918 = vadd.f32 0.0, %v2917
        %v2919 = vpop.f32.mrb[0].mxu0
        %2920 = vmatprep.mubr.bf16.mxu0 0
        %2921 = vmatmul.mubr.bf16.gmra.mrb[0].mxu0 %v1895
        %v2922 = vpop.f32.mrb[0].mxu0
        %v2923 = vadd.f32 0.0, %v2922
        %v2924 = vpop.f32.mrb[0].mxu0
        %v2925 = vpop.f32.mrb[0].mxu0
        %v2926 = vadd.f32 0.0, %v2925
        %v2927 = vpop.f32.mrb[0].mxu0
        %2928 = vmatprep.mubr.bf16.mxu0 0
        %2929 = vmatmul.mubr.bf16.gmra.mrb[0].mxu0 %v1898
        %v2930 = vpop.f32.mrb[0].mxu0
        %v2931 = vadd.f32 0.0, %v2930
        %v2932 = vpop.f32.mrb[0].mxu0
        %v2933 = vpop.f32.mrb[0].mxu0
        %v2934 = vadd.f32 0.0, %v2933
        %v2935 = vpop.f32.mrb[0].mxu0
        %2936 = vmatprep.mubr.bf16.mxu0 0
        %2937 = vmatmul.mubr.bf16.gmra.mrb[0].mxu0 %v1901
        %v2938 = vpop.f32.mrb[0].mxu0
        %v2939 = vadd.f32 0.0, %v2938
        %v2940 = vpop.f32.mrb[0].mxu0
        %v2941 = vpop.f32.mrb[0].mxu0
        %v2942 = vadd.f32 0.0, %v2941
        %v2943 = vpop.f32.mrb[0].mxu0
        %2944 = vmatprep.mubr.bf16.mxu0 0
        %2945 = vmatmul.mubr.bf16.gmra.mrb[0].mxu0 %v1904
        %v2946 = vpop.f32.mrb[0].mxu0
        %v2947 = vadd.f32 0.0, %v2946
        %v2948 = vpop.f32.mrb[0].mxu0
        %v2949 = vpop.f32.mrb[0].mxu0
        %v2950 = vadd.f32 0.0, %v2949
        %v2951 = vpop.f32.mrb[0].mxu0
        %2952 = vmatprep.mubr.bf16.mxu0 0
        %2953 = vmatmul.mubr.bf16.gmra.mrb[0].mxu0 %v1907
        %v2954 = vpop.f32.mrb[0].mxu0
        %v2955 = vadd.f32 0.0, %v2954
        %v2956 = vpop.f32.mrb[0].mxu0
        %v2957 = vpop.f32.mrb[0].mxu0
        %v2958 = vadd.f32 0.0, %v2957
        %v2959 = vpop.f32.mrb[0].mxu0
        %2960 = vmatprep.mubr.bf16.mxu0 0
        %2961 = vmatmul.mubr.bf16.gmra.mrb[0].mxu0 %v1910
        %v2962 = vpop.f32.mrb[0].mxu0
        %v2963 = vadd.f32 0.0, %v2962
        %v2964 = vpop.f32.mrb[0].mxu0
        %v2965 = vpop.f32.mrb[0].mxu0
        %v2966 = vadd.f32 0.0, %v2965
        %v2967 = vpop.f32.mrb[0].mxu0
        %2968 = vmatprep.mubr.bf16.mxu0 0
        %2969 = vmatmul.mubr.bf16.gmra.mrb[0].mxu0 %v1913
        %v2970 = vpop.f32.mrb[0].mxu0
        %v2971 = vadd.f32 0.0, %v2970
        %v2972 = vpop.f32.mrb[0].mxu0
        %v2973 = vpop.f32.mrb[0].mxu0
        %v2974 = vadd.f32 0.0, %v2973
        %v2975 = vpop.f32.mrb[0].mxu0
        %2976 = vmatprep.mubr.bf16.mxu0 0
        %2977 = vmatmul.mubr.bf16.gmra.mrb[0].mxu0 %v1916
        %v2978 = vpop.f32.mrb[0].mxu0
        %v2979 = vadd.f32 0.0, %v2978
        %v2980 = vpop.f32.mrb[0].mxu0
        %v2981 = vpop.f32.mrb[0].mxu0
        %v2982 = vadd.f32 0.0, %v2981
        %v2983 = vpop.f32.mrb[0].mxu0
        %2984 = vmatprep.mubr.bf16.mxu0 0
        %2985 = vmatmul.mubr.bf16.gmra.mrb[0].mxu0 %v1919
        %v2986 = vpop.f32.mrb[0].mxu0
        %v2987 = vadd.f32 0.0, %v2986
        %v2988 = vpop.f32.mrb[0].mxu0
        %v2989 = vpop.f32.mrb[0].mxu0
        %v2990 = vadd.f32 0.0, %v2989
        %v2991 = vpop.f32.mrb[0].mxu0
        %2992 = vdwg.mxu0
        %v2993 = vrot.slane %v2803, 2
        %v2994 = vrot.slane %v2806, 2
        %v2995 = vrot.slane %v2811, 2
        %v2996 = vrot.slane %v2814, 2
        %v2997 = vrot.slane %v2819, 2
        %v2998 = vrot.slane %v2822, 2
        %v2999 = vrot.slane %v2827, 2
        %v3000 = vrot.slane %v2830, 2
        %v3001 = vrot.slane %v2835, 2
        %v3002 = vrot.slane %v2838, 2
        %v3003 = vrot.slane %v2843, 2
        %v3004 = vrot.slane %v2846, 2
        %v3005 = vrot.slane %v2851, 2
        %v3006 = vrot.slane %v2854, 2
        %v3007 = vrot.slane %v2859, 2
        %v3008 = vrot.slane %v2862, 2
        %v3009 = vrot.slane %v2867, 2
        %v3010 = vrot.slane %v2870, 2
        %v3011 = vrot.slane %v2875, 2
        %v3012 = vrot.slane %v2878, 2
        %v3013 = vrot.slane %v2883, 2
        %v3014 = vrot.slane %v2886, 2
        %v3015 = vrot.slane %v2891, 2
        %v3016 = vrot.slane %v2894, 2
        %v3017 = vrot.slane %v2899, 2
        %v3018 = vrot.slane %v2902, 2
        %v3019 = vrot.slane %v2907, 2
        %v3020 = vrot.slane %v2910, 2
        %v3021 = vrot.slane %v2915, 2
        %v3022 = vrot.slane %v2918, 2
        %v3023 = vrot.slane %v2923, 2
        %v3024 = vrot.slane %v2926, 2
        %v3025 = vrot.slane %v2931, 2
        %v3026 = vrot.slane %v2934, 2
        %v3027 = vrot.slane %v2939, 2
        %v3028 = vrot.slane %v2942, 2
        %v3029 = vrot.slane %v2947, 2
        %v3030 = vrot.slane %v2950, 2
        %v3031 = vrot.slane %v2955, 2
        %v3032 = vrot.slane %v2958, 2
        %v3033 = vrot.slane %v2963, 2
        %v3034 = vrot.slane %v2966, 2
        %v3035 = vrot.slane %v2971, 2
        %v3036 = vrot.slane %v2974, 2
        %v3037 = vrot.slane %v2979, 2
        %v3038 = vrot.slane %v2982, 2
        %v3039 = vrot.slane %v2987, 2
        %v3040 = vrot.slane %v2990, 2
        %v3041 = vsel %vm1485, %v3039, %v3040
        %v3042 = vsel %vm1485, %v3038, %v3039
        %v3043 = vsel %vm1485, %v3037, %v3038
        %v3044 = vsel %vm1485, %v3036, %v3037
        %v3045 = vsel %vm1485, %v3035, %v3036
        %v3046 = vsel %vm1485, %v3034, %v3035
        %v3047 = vsel %vm1485, %v3033, %v3034
        %v3048 = vsel %vm1485, %v3032, %v3033
        %v3049 = vsel %vm1485, %v3031, %v3032
        %v3050 = vsel %vm1485, %v3030, %v3031
        %v3051 = vsel %vm1485, %v3029, %v3030
        %v3052 = vsel %vm1485, %v3028, %v3029
        %v3053 = vsel %vm1485, %v3027, %v3028
        %v3054 = vsel %vm1485, %v3026, %v3027
        %v3055 = vsel %vm1485, %v3025, %v3026
        %v3056 = vsel %vm1485, %v3024, %v3025
        %v3057 = vsel %vm1485, %v3023, %v3024
        %v3058 = vsel %vm1485, %v3022, %v3023
        %v3059 = vsel %vm1485, %v3021, %v3022
        %v3060 = vsel %vm1485, %v3020, %v3021
        %v3061 = vsel %vm1485, %v3019, %v3020
        %v3062 = vsel %vm1485, %v3018, %v3019
        %v3063 = vsel %vm1485, %v3017, %v3018
        %v3064 = vsel %vm1485, %v3016, %v3017
        %v3065 = vsel %vm1485, %v3015, %v3016
        %v3066 = vsel %vm1485, %v3014, %v3015
        %v3067 = vsel %vm1485, %v3013, %v3014
        %v3068 = vsel %vm1485, %v3012, %v3013
        %v3069 = vsel %vm1485, %v3011, %v3012
        %v3070 = vsel %vm1485, %v3010, %v3011
        %v3071 = vsel %vm1485, %v3009, %v3010
        %v3072 = vsel %vm1485, %v3008, %v3009
        %v3073 = vsel %vm1485, %v3007, %v3008
        %v3074 = vsel %vm1485, %v3006, %v3007
        %v3075 = vsel %vm1485, %v3005, %v3006
        %v3076 = vsel %vm1485, %v3004, %v3005
        %v3077 = vsel %vm1485, %v3003, %v3004
        %v3078 = vsel %vm1485, %v3002, %v3003
        %v3079 = vsel %vm1485, %v3001, %v3002
        %v3080 = vsel %vm1485, %v3000, %v3001
        %v3081 = vsel %vm1485, %v2999, %v3000
        %v3082 = vsel %vm1485, %v2998, %v2999
        %v3083 = vsel %vm1485, %v2997, %v2998
        %v3084 = vsel %vm1485, %v2996, %v2997
        %v3085 = vsel %vm1485, %v2995, %v2996
        %v3086 = vsel %vm1485, %v2994, %v2995
        %v3087 = vsel %vm1485, %v2993, %v2994
        %v3088 = vsel %vm1485, %v3040, %v2993
        %v3089 = vld [vmem:[#allocation2] sm:$0xff]
        %v3090 = vld [vmem:[#allocation2 + $0x8] sm:$0xff]
        %v3091 = vld [vmem:[#allocation2 + $0x10] sm:$0xff]
        %v3092 = vld [vmem:[#allocation2 + $0x18] sm:$0xff]
        %v3093 = vld [vmem:[#allocation2 + $0x20] sm:$0xff]
        %v3094 = vld [vmem:[#allocation2 + $0x28] sm:$0xff]
        %v3095 = vld [vmem:[#allocation2 + $0x30] sm:$0xff]
        %v3096 = vld [vmem:[#allocation2 + $0x38] sm:$0xff]
        %v3097 = vld [vmem:[#allocation2 + $0x40] sm:$0xff]
        %v3098 = vld [vmem:[#allocation2 + $0x48] sm:$0xff]
        %v3099 = vld [vmem:[#allocation2 + $0x50] sm:$0xff]
        %v3100 = vld [vmem:[#allocation2 + $0x58] sm:$0xff]
        %v3101 = vld [vmem:[#allocation2 + $0x60] sm:$0xff]
        %v3102 = vld [vmem:[#allocation2 + $0x68] sm:$0xff]
        %v3103 = vld [vmem:[#allocation2 + $0x70] sm:$0xff]
        %v3104 = vld [vmem:[#allocation2 + $0x78] sm:$0xff]
        %v3105 = vld [vmem:[#allocation2 + $0x80] sm:$0xff]
        %v3106 = vld [vmem:[#allocation2 + $0x88] sm:$0xff]
        %v3107 = vld [vmem:[#allocation2 + $0x90] sm:$0xff]
        %v3108 = vld [vmem:[#allocation2 + $0x98] sm:$0xff]
        %v3109 = vld [vmem:[#allocation2 + $0xa0] sm:$0xff]
        %v3110 = vld [vmem:[#allocation2 + $0xa8] sm:$0xff]
        %v3111 = vld [vmem:[#allocation2 + $0xb0] sm:$0xff]
        %v3112 = vld [vmem:[#allocation2 + $0xb8] sm:$0xff]
        %v3113 = vld [vmem:[#allocation2 + $0xc0] sm:$0xff]
        %v3114 = vld [vmem:[#allocation2 + $0xc8] sm:$0xff]
        %v3115 = vld [vmem:[#allocation2 + $0xd0] sm:$0xff]
        %v3116 = vld [vmem:[#allocation2 + $0xd8] sm:$0xff]
        %v3117 = vld [vmem:[#allocation2 + $0xe0] sm:$0xff]
        %v3118 = vld [vmem:[#allocation2 + $0xe8] sm:$0xff]
        %v3119 = vld [vmem:[#allocation2 + $0xf0] sm:$0xff]
        %v3120 = vld [vmem:[#allocation2 + $0xf8] sm:$0xff]
        %v3121 = vld [vmem:[#allocation2 + $0x100] sm:$0xff]
        %v3122 = vld [vmem:[#allocation2 + $0x108] sm:$0xff]
        %v3123 = vld [vmem:[#allocation2 + $0x110] sm:$0xff]
        %v3124 = vld [vmem:[#allocation2 + $0x118] sm:$0xff]
        %v3125 = vld [vmem:[#allocation2 + $0x120] sm:$0xff]
        %v3126 = vld [vmem:[#allocation2 + $0x128] sm:$0xff]
        %v3127 = vld [vmem:[#allocation2 + $0x130] sm:$0xff]
        %v3128 = vld [vmem:[#allocation2 + $0x138] sm:$0xff]
        %v3129 = vld [vmem:[#allocation2 + $0x140] sm:$0xff]
        %v3130 = vld [vmem:[#allocation2 + $0x148] sm:$0xff]
        %v3131 = vld [vmem:[#allocation2 + $0x150] sm:$0xff]
        %v3132 = vld [vmem:[#allocation2 + $0x158] sm:$0xff]
        %v3133 = vld [vmem:[#allocation2 + $0x160] sm:$0xff]
        %v3134 = vld [vmem:[#allocation2 + $0x168] sm:$0xff]
        %v3135 = vld [vmem:[#allocation2 + $0x170] sm:$0xff]
        %v3136 = vld [vmem:[#allocation2 + $0x178] sm:$0xff]
        %v3137 = vadd.f32 %v3089, %v3087
        %v3138 = vadd.f32 %v3090, %v3086
        %v3139 = vadd.f32 %v3091, %v3085
        %v3140 = vadd.f32 %v3092, %v3084
        %v3141 = vadd.f32 %v3093, %v3083
        %v3142 = vadd.f32 %v3094, %v3082
        %v3143 = vadd.f32 %v3095, %v3081
        %v3144 = vadd.f32 %v3096, %v3080
        %v3145 = vadd.f32 %v3097, %v3079
        %v3146 = vadd.f32 %v3098, %v3078
        %v3147 = vadd.f32 %v3099, %v3077
        %v3148 = vadd.f32 %v3100, %v3076
        %v3149 = vadd.f32 %v3101, %v3075
        %v3150 = vadd.f32 %v3102, %v3074
        %v3151 = vadd.f32 %v3103, %v3073
        %v3152 = vadd.f32 %v3104, %v3072
        %v3153 = vadd.f32 %v3105, %v3071
        %v3154 = vadd.f32 %v3106, %v3070
        %v3155 = vadd.f32 %v3107, %v3069
        %v3156 = vadd.f32 %v3108, %v3068
        %v3157 = vadd.f32 %v3109, %v3067
        %v3158 = vadd.f32 %v3110, %v3066
        %v3159 = vadd.f32 %v3111, %v3065
        %v3160 = vadd.f32 %v3112, %v3064
        %v3161 = vadd.f32 %v3113, %v3063
        %v3162 = vadd.f32 %v3114, %v3062
        %v3163 = vadd.f32 %v3115, %v3061
        %v3164 = vadd.f32 %v3116, %v3060
        %v3165 = vadd.f32 %v3117, %v3059
        %v3166 = vadd.f32 %v3118, %v3058
        %v3167 = vadd.f32 %v3119, %v3057
        %v3168 = vadd.f32 %v3120, %v3056
        %v3169 = vadd.f32 %v3121, %v3055
        %v3170 = vadd.f32 %v3122, %v3054
        %v3171 = vadd.f32 %v3123, %v3053
        %v3172 = vadd.f32 %v3124, %v3052
        %v3173 = vadd.f32 %v3125, %v3051
        %v3174 = vadd.f32 %v3126, %v3050
        %v3175 = vadd.f32 %v3127, %v3049
        %v3176 = vadd.f32 %v3128, %v3048
        %v3177 = vadd.f32 %v3129, %v3047
        %v3178 = vadd.f32 %v3130, %v3046
        %v3179 = vadd.f32 %v3131, %v3045
        %v3180 = vadd.f32 %v3132, %v3044
        %v3181 = vadd.f32 %v3133, %v3043
        %v3182 = vadd.f32 %v3134, %v3042
        %v3183 = vadd.f32 %v3135, %v3041
        %v3184 = vadd.f32 %v3136, %v3088
        %3185 = vst [vmem:[#allocation2] sm:$0xff] %v3137
        %3186 = vst [vmem:[#allocation2 + $0x8] sm:$0xff] %v3138
        %3187 = vst [vmem:[#allocation2 + $0x10] sm:$0xff] %v3139
        %3188 = vst [vmem:[#allocation2 + $0x18] sm:$0xff] %v3140
        %3189 = vst [vmem:[#allocation2 + $0x20] sm:$0xff] %v3141
        %3190 = vst [vmem:[#allocation2 + $0x28] sm:$0xff] %v3142
        %3191 = vst [vmem:[#allocation2 + $0x30] sm:$0xff] %v3143
        %3192 = vst [vmem:[#allocation2 + $0x38] sm:$0xff] %v3144
        %3193 = vst [vmem:[#allocation2 + $0x40] sm:$0xff] %v3145
        %3194 = vst [vmem:[#allocation2 + $0x48] sm:$0xff] %v3146
        %3195 = vst [vmem:[#allocation2 + $0x50] sm:$0xff] %v3147
        %3196 = vst [vmem:[#allocation2 + $0x58] sm:$0xff] %v3148
        %3197 = vst [vmem:[#allocation2 + $0x60] sm:$0xff] %v3149
        %3198 = vst [vmem:[#allocation2 + $0x68] sm:$0xff] %v3150
        %3199 = vst [vmem:[#allocation2 + $0x70] sm:$0xff] %v3151
        %3200 = vst [vmem:[#allocation2 + $0x78] sm:$0xff] %v3152
        %3201 = vst [vmem:[#allocation2 + $0x80] sm:$0xff] %v3153
        %3202 = vst [vmem:[#allocation2 + $0x88] sm:$0xff] %v3154
        %3203 = vst [vmem:[#allocation2 + $0x90] sm:$0xff] %v3155
        %3204 = vst [vmem:[#allocation2 + $0x98] sm:$0xff] %v3156
        %3205 = vst [vmem:[#allocation2 + $0xa0] sm:$0xff] %v3157
        %3206 = vst [vmem:[#allocation2 + $0xa8] sm:$0xff] %v3158
        %3207 = vst [vmem:[#allocation2 + $0xb0] sm:$0xff] %v3159
        %3208 = vst [vmem:[#allocation2 + $0xb8] sm:$0xff] %v3160
        %3209 = vst [vmem:[#allocation2 + $0xc0] sm:$0xff] %v3161
        %3210 = vst [vmem:[#allocation2 + $0xc8] sm:$0xff] %v3162
        %3211 = vst [vmem:[#allocation2 + $0xd0] sm:$0xff] %v3163
        %3212 = vst [vmem:[#allocation2 + $0xd8] sm:$0xff] %v3164
        %3213 = vst [vmem:[#allocation2 + $0xe0] sm:$0xff] %v3165
        %3214 = vst [vmem:[#allocation2 + $0xe8] sm:$0xff] %v3166
        %3215 = vst [vmem:[#allocation2 + $0xf0] sm:$0xff] %v3167
        %3216 = vst [vmem:[#allocation2 + $0xf8] sm:$0xff] %v3168
        %3217 = vst [vmem:[#allocation2 + $0x100] sm:$0xff] %v3169
        %3218 = vst [vmem:[#allocation2 + $0x108] sm:$0xff] %v3170
        %3219 = vst [vmem:[#allocation2 + $0x110] sm:$0xff] %v3171
        %3220 = vst [vmem:[#allocation2 + $0x118] sm:$0xff] %v3172
        %3221 = vst [vmem:[#allocation2 + $0x120] sm:$0xff] %v3173
        %3222 = vst [vmem:[#allocation2 + $0x128] sm:$0xff] %v3174
        %3223 = vst [vmem:[#allocation2 + $0x130] sm:$0xff] %v3175
        %3224 = vst [vmem:[#allocation2 + $0x138] sm:$0xff] %v3176
        %3225 = vst [vmem:[#allocation2 + $0x140] sm:$0xff] %v3177
        %3226 = vst [vmem:[#allocation2 + $0x148] sm:$0xff] %v3178
        %3227 = vst [vmem:[#allocation2 + $0x150] sm:$0xff] %v3179
        %3228 = vst [vmem:[#allocation2 + $0x158] sm:$0xff] %v3180
        %3229 = vst [vmem:[#allocation2 + $0x160] sm:$0xff] %v3181
        %3230 = vst [vmem:[#allocation2 + $0x168] sm:$0xff] %v3182
        %3231 = vst [vmem:[#allocation2 + $0x170] sm:$0xff] %v3183
        %3232 = vst [vmem:[#allocation2 + $0x178] sm:$0xff] %v3184
        %s3233 = scalar_lea.vmem %s206, 24
        %v3234 = vld [vmem:[%s3233] sm:$0xf]
        %v3235 = vld [vmem:[%s3233 + $0x4] sm:$0xf]
        %v3236 = vld [vmem:[%s3233 + $0x8] sm:$0xf]
        %v3237 = vld [vmem:[%s3233 + $0xc] sm:$0xf]
        %v3238 = vld [vmem:[%s3233 + $0x10] sm:$0xf]
        %v3239 = vld [vmem:[%s3233 + $0x14] sm:$0xf]
        %v3240 = vld [vmem:[%s3233 + $0x18] sm:$0xf]
        %v3241 = vld [vmem:[%s3233 + $0x1c] sm:$0xf]
        %v3242 = vld [vmem:[%s3233 + $0x20] sm:$0xf]
        %v3243 = vld [vmem:[%s3233 + $0x24] sm:$0xf]
        %v3244 = vld [vmem:[%s3233 + $0x28] sm:$0xf]
        %v3245 = vld [vmem:[%s3233 + $0x2c] sm:$0xf]
        %v3246 = vld [vmem:[%s3233 + $0x30] sm:$0xf]
        %v3247 = vld [vmem:[%s3233 + $0x34] sm:$0xf]
        %v3248 = vld [vmem:[%s3233 + $0x38] sm:$0xf]
        %v3249 = vld [vmem:[%s3233 + $0x3c] sm:$0xf]
        %v3250 = vld [vmem:[%s3233 + $0x40] sm:$0xf]
        %v3251 = vld [vmem:[%s3233 + $0x44] sm:$0xf]
        %v3252 = vld [vmem:[%s3233 + $0x48] sm:$0xf]
        %v3253 = vld [vmem:[%s3233 + $0x4c] sm:$0xf]
        %v3254 = vld [vmem:[%s3233 + $0x50] sm:$0xf]
        %v3255 = vld [vmem:[%s3233 + $0x54] sm:$0xf]
        %v3256 = vld [vmem:[%s3233 + $0x58] sm:$0xf]
        %v3257 = vld [vmem:[%s3233 + $0x5c] sm:$0xf]
        %v3258 = vld [vmem:[%s3233 + $0x60] sm:$0xf]
        %v3259 = vld [vmem:[%s3233 + $0x64] sm:$0xf]
        %v3260 = vld [vmem:[%s3233 + $0x68] sm:$0xf]
        %v3261 = vld [vmem:[%s3233 + $0x6c] sm:$0xf]
        %v3262 = vld [vmem:[%s3233 + $0x70] sm:$0xf]
        %v3263 = vld [vmem:[%s3233 + $0x74] sm:$0xf]
        %v3264 = vld [vmem:[%s3233 + $0x78] sm:$0xf]
        %v3265 = vld [vmem:[%s3233 + $0x7c] sm:$0xf]
        %v3266 = vld [vmem:[%s3233 + $0x80] sm:$0xf]
        %v3267 = vld [vmem:[%s3233 + $0x84] sm:$0xf]
        %v3268 = vld [vmem:[%s3233 + $0x88] sm:$0xf]
        %v3269 = vld [vmem:[%s3233 + $0x8c] sm:$0xf]
        %v3270 = vld [vmem:[%s3233 + $0x90] sm:$0xf]
        %v3271 = vld [vmem:[%s3233 + $0x94] sm:$0xf]
        %v3272 = vld [vmem:[%s3233 + $0x98] sm:$0xf]
        %v3273 = vld [vmem:[%s3233 + $0x9c] sm:$0xf]
        %v3274 = vld [vmem:[%s3233 + $0xa0] sm:$0xf]
        %v3275 = vld [vmem:[%s3233 + $0xa4] sm:$0xf]
        %v3276 = vld [vmem:[%s3233 + $0xa8] sm:$0xf]
        %v3277 = vld [vmem:[%s3233 + $0xac] sm:$0xf]
        %v3278 = vld [vmem:[%s3233 + $0xb0] sm:$0xf]
        %v3279 = vld [vmem:[%s3233 + $0xb4] sm:$0xf]
        %v3280 = vld [vmem:[%s3233 + $0xb8] sm:$0xf]
        %v3281 = vld [vmem:[%s3233 + $0xbc] sm:$0xf]
        %s3282 = scalar_lea.vmem %s210, 12
        %v3283 = vld [vmem:[%s3282] sm:$0x3]
        %v3332 = vunpack.c.l.b16 %v3234
        %v3333 = vunpack.c.l.b16 %v3235
        %v3334 = vunpack.c.l.b16 %v3236
        %v3335 = vunpack.c.l.b16 %v3237
        %v3336 = vunpack.c.l.b16 %v3238
        %v3337 = vunpack.c.l.b16 %v3239
        %v3338 = vunpack.c.l.b16 %v3240
        %v3339 = vunpack.c.l.b16 %v3241
        %v3340 = vunpack.c.l.b16 %v3242
        %v3341 = vunpack.c.l.b16 %v3243
        %v3342 = vunpack.c.l.b16 %v3244
        %v3343 = vunpack.c.l.b16 %v3245
        %v3344 = vunpack.c.l.b16 %v3246
        %v3345 = vunpack.c.l.b16 %v3247
        %v3346 = vunpack.c.l.b16 %v3248
        %v3347 = vunpack.c.l.b16 %v3249
        %v3348 = vunpack.c.l.b16 %v3250
        %v3349 = vunpack.c.l.b16 %v3251
        %v3350 = vunpack.c.l.b16 %v3252
        %v3351 = vunpack.c.l.b16 %v3253
        %v3352 = vunpack.c.l.b16 %v3254
        %v3353 = vunpack.c.l.b16 %v3255
        %v3354 = vunpack.c.l.b16 %v3256
        %v3355 = vunpack.c.l.b16 %v3257
        %v3356 = vunpack.c.l.b16 %v3258
        %v3357 = vunpack.c.l.b16 %v3259
        %v3358 = vunpack.c.l.b16 %v3260
        %v3359 = vunpack.c.l.b16 %v3261
        %v3360 = vunpack.c.l.b16 %v3262
        %v3361 = vunpack.c.l.b16 %v3263
        %v3362 = vunpack.c.l.b16 %v3264
        %v3363 = vunpack.c.l.b16 %v3265
        %v3364 = vunpack.c.l.b16 %v3266
        %v3365 = vunpack.c.l.b16 %v3267
        %v3366 = vunpack.c.l.b16 %v3268
        %v3367 = vunpack.c.l.b16 %v3269
        %v3368 = vunpack.c.l.b16 %v3270
        %v3369 = vunpack.c.l.b16 %v3271
        %v3370 = vunpack.c.l.b16 %v3272
        %v3371 = vunpack.c.l.b16 %v3273
        %v3372 = vunpack.c.l.b16 %v3274
        %v3373 = vunpack.c.l.b16 %v3275
        %v3374 = vunpack.c.l.b16 %v3276
        %v3375 = vunpack.c.l.b16 %v3277
        %v3376 = vunpack.c.l.b16 %v3278
        %v3377 = vunpack.c.l.b16 %v3279
        %v3378 = vunpack.c.l.b16 %v3280
        %v3379 = vunpack.c.l.b16 %v3281
        %v3380 = vpack.c.b16 %v3333, %v3332
        %v3381 = vpack.c.b16 %v3335, %v3334
        %v3382 = vpack.c.b16 %v3337, %v3336
        %v3383 = vpack.c.b16 %v3339, %v3338
        %v3384 = vpack.c.b16 %v3341, %v3340
        %v3385 = vpack.c.b16 %v3343, %v3342
        %v3386 = vpack.c.b16 %v3345, %v3344
        %v3387 = vpack.c.b16 %v3347, %v3346
        %v3388 = vpack.c.b16 %v3349, %v3348
        %v3389 = vpack.c.b16 %v3351, %v3350
        %v3390 = vpack.c.b16 %v3353, %v3352
        %v3391 = vpack.c.b16 %v3355, %v3354
        %v3392 = vpack.c.b16 %v3357, %v3356
        %v3393 = vpack.c.b16 %v3359, %v3358
        %v3394 = vpack.c.b16 %v3361, %v3360
        %v3395 = vpack.c.b16 %v3363, %v3362
        %v3396 = vpack.c.b16 %v3365, %v3364
        %v3397 = vpack.c.b16 %v3367, %v3366
        %v3398 = vpack.c.b16 %v3369, %v3368
        %v3399 = vpack.c.b16 %v3371, %v3370
        %v3400 = vpack.c.b16 %v3373, %v3372
        %v3401 = vpack.c.b16 %v3375, %v3374
        %v3402 = vpack.c.b16 %v3377, %v3376
        %v3403 = vpack.c.b16 %v3379, %v3378
        %v3405 = vsel %vm384, %v3380, 0
        %v3408 = vsel %vm384, %v3381, 0
        %v3411 = vsel %vm384, %v3382, 0
        %v3414 = vsel %vm384, %v3383, 0
        %v3417 = vsel %vm384, %v3384, 0
        %v3420 = vsel %vm384, %v3385, 0
        %v3423 = vsel %vm384, %v3386, 0
        %v3426 = vsel %vm384, %v3387, 0
        %v3429 = vsel %vm384, %v3388, 0
        %v3432 = vsel %vm384, %v3389, 0
        %v3435 = vsel %vm384, %v3390, 0
        %v3438 = vsel %vm384, %v3391, 0
        %v3441 = vsel %vm384, %v3392, 0
        %v3444 = vsel %vm384, %v3393, 0
        %v3447 = vsel %vm384, %v3394, 0
        %v3450 = vsel %vm384, %v3395, 0
        %v3453 = vsel %vm384, %v3396, 0
        %v3456 = vsel %vm384, %v3397, 0
        %v3459 = vsel %vm384, %v3398, 0
        %v3462 = vsel %vm384, %v3399, 0
        %v3465 = vsel %vm384, %v3400, 0
        %v3468 = vsel %vm384, %v3401, 0
        %v3471 = vsel %vm384, %v3402, 0
        %v3474 = vsel %vm384, %v3403, 0
        %v3477 = vsel %vm457, %v3283, 0
        %3479 = vmatprep.subr.bf16.mxu0 0
        %3480 = vmatpush1.bf16.msra.mxu0 %v3477
        %3481 = vmatprep.subr.bf16.mxu0 0
        %3482 = vmatpush1.bf16.msra.mxu0 0
        %3483 = vmatprep.subr.bf16.mxu0 0
        %3484 = vmatpush1.bf16.msra.mxu0 0
        %3485 = vmatprep.subr.bf16.mxu0 0
        %3486 = vmatpush1.bf16.msra.mxu0 0
        %3487 = vmatprep.subr.bf16.mxu0 0
        %3488 = vmatpush1.bf16.msra.mxu0 0
        %3489 = vmatprep.subr.bf16.mxu0 0
        %3490 = vmatpush1.bf16.msra.mxu0 0
        %3491 = vmatprep.subr.bf16.mxu0 0
        %3492 = vmatpush1.bf16.msra.mxu0 0
        %3493 = vmatprep.subr.bf16.mxu0 0
        %3494 = vmatpush1.bf16.msra.mxu0 0
        %3495 = vmatprep.subr.bf16.mxu0 0
        %3496 = vmatpush1.bf16.msra.mxu0 0
        %3497 = vmatprep.subr.bf16.mxu0 0
        %3498 = vmatpush1.bf16.msra.mxu0 0
        %3499 = vmatprep.subr.bf16.mxu0 0
        %3500 = vmatpush1.bf16.msra.mxu0 0
        %3501 = vmatprep.subr.bf16.mxu0 0
        %3502 = vmatpush1.bf16.msra.mxu0 0
        %3503 = vmatprep.subr.bf16.mxu0 0
        %3504 = vmatpush1.bf16.msra.mxu0 0
        %3505 = vmatprep.subr.bf16.mxu0 0
        %3506 = vmatpush1.bf16.msra.mxu0 0
        %3507 = vmatprep.subr.bf16.mxu0 0
        %3508 = vmatpush1.bf16.msra.mxu0 0
        %3509 = vmatprep.subr.bf16.mxu0 0
        %3510 = vmatpush1.bf16.msra.mxu0 0
        %3511 = vmatprep.mubr.bf16.mxu0 0
        %3512 = vmatmul.mubr.bf16.gmra.mrb[0].mxu0 %v3405
        %v3513 = vpop.f32.mrb[0].mxu0
        %v3514 = vadd.f32 0.0, %v3513
        %v3515 = vpop.f32.mrb[0].mxu0
        %v3516 = vpop.f32.mrb[0].mxu0
        %v3517 = vadd.f32 0.0, %v3516
        %v3518 = vpop.f32.mrb[0].mxu0
        %3519 = vmatprep.mubr.bf16.mxu0 0
        %3520 = vmatmul.mubr.bf16.gmra.mrb[0].mxu0 %v3408
        %v3521 = vpop.f32.mrb[0].mxu0
        %v3522 = vadd.f32 0.0, %v3521
        %v3523 = vpop.f32.mrb[0].mxu0
        %v3524 = vpop.f32.mrb[0].mxu0
        %v3525 = vadd.f32 0.0, %v3524
        %v3526 = vpop.f32.mrb[0].mxu0
        %3527 = vmatprep.mubr.bf16.mxu0 0
        %3528 = vmatmul.mubr.bf16.gmra.mrb[0].mxu0 %v3411
        %v3529 = vpop.f32.mrb[0].mxu0
        %v3530 = vadd.f32 0.0, %v3529
        %v3531 = vpop.f32.mrb[0].mxu0
        %v3532 = vpop.f32.mrb[0].mxu0
        %v3533 = vadd.f32 0.0, %v3532
        %v3534 = vpop.f32.mrb[0].mxu0
        %3535 = vmatprep.mubr.bf16.mxu0 0
        %3536 = vmatmul.mubr.bf16.gmra.mrb[0].mxu0 %v3414
        %v3537 = vpop.f32.mrb[0].mxu0
        %v3538 = vadd.f32 0.0, %v3537
        %v3539 = vpop.f32.mrb[0].mxu0
        %v3540 = vpop.f32.mrb[0].mxu0
        %v3541 = vadd.f32 0.0, %v3540
        %v3542 = vpop.f32.mrb[0].mxu0
        %3543 = vmatprep.mubr.bf16.mxu0 0
        %3544 = vmatmul.mubr.bf16.gmra.mrb[0].mxu0 %v3417
        %v3545 = vpop.f32.mrb[0].mxu0
        %v3546 = vadd.f32 0.0, %v3545
        %v3547 = vpop.f32.mrb[0].mxu0
        %v3548 = vpop.f32.mrb[0].mxu0
        %v3549 = vadd.f32 0.0, %v3548
        %v3550 = vpop.f32.mrb[0].mxu0
        %3551 = vmatprep.mubr.bf16.mxu0 0
        %3552 = vmatmul.mubr.bf16.gmra.mrb[0].mxu0 %v3420
        %v3553 = vpop.f32.mrb[0].mxu0
        %v3554 = vadd.f32 0.0, %v3553
        %v3555 = vpop.f32.mrb[0].mxu0
        %v3556 = vpop.f32.mrb[0].mxu0
        %v3557 = vadd.f32 0.0, %v3556
        %v3558 = vpop.f32.mrb[0].mxu0
        %3559 = vmatprep.mubr.bf16.mxu0 0
        %3560 = vmatmul.mubr.bf16.gmra.mrb[0].mxu0 %v3423
        %v3561 = vpop.f32.mrb[0].mxu0
        %v3562 = vadd.f32 0.0, %v3561
        %v3563 = vpop.f32.mrb[0].mxu0
        %v3564 = vpop.f32.mrb[0].mxu0
        %v3565 = vadd.f32 0.0, %v3564
        %v3566 = vpop.f32.mrb[0].mxu0
        %3567 = vmatprep.mubr.bf16.mxu0 0
        %3568 = vmatmul.mubr.bf16.gmra.mrb[0].mxu0 %v3426
        %v3569 = vpop.f32.mrb[0].mxu0
        %v3570 = vadd.f32 0.0, %v3569
        %v3571 = vpop.f32.mrb[0].mxu0
        %v3572 = vpop.f32.mrb[0].mxu0
        %v3573 = vadd.f32 0.0, %v3572
        %v3574 = vpop.f32.mrb[0].mxu0
        %3575 = vmatprep.mubr.bf16.mxu0 0
        %3576 = vmatmul.mubr.bf16.gmra.mrb[0].mxu0 %v3429
        %v3577 = vpop.f32.mrb[0].mxu0
        %v3578 = vadd.f32 0.0, %v3577
        %v3579 = vpop.f32.mrb[0].mxu0
        %v3580 = vpop.f32.mrb[0].mxu0
        %v3581 = vadd.f32 0.0, %v3580
        %v3582 = vpop.f32.mrb[0].mxu0
        %3583 = vmatprep.mubr.bf16.mxu0 0
        %3584 = vmatmul.mubr.bf16.gmra.mrb[0].mxu0 %v3432
        %v3585 = vpop.f32.mrb[0].mxu0
        %v3586 = vadd.f32 0.0, %v3585
        %v3587 = vpop.f32.mrb[0].mxu0
        %v3588 = vpop.f32.mrb[0].mxu0
        %v3589 = vadd.f32 0.0, %v3588
        %v3590 = vpop.f32.mrb[0].mxu0
        %3591 = vmatprep.mubr.bf16.mxu0 0
        %3592 = vmatmul.mubr.bf16.gmra.mrb[0].mxu0 %v3435
        %v3593 = vpop.f32.mrb[0].mxu0
        %v3594 = vadd.f32 0.0, %v3593
        %v3595 = vpop.f32.mrb[0].mxu0
        %v3596 = vpop.f32.mrb[0].mxu0
        %v3597 = vadd.f32 0.0, %v3596
        %v3598 = vpop.f32.mrb[0].mxu0
        %3599 = vmatprep.mubr.bf16.mxu0 0
        %3600 = vmatmul.mubr.bf16.gmra.mrb[0].mxu0 %v3438
        %v3601 = vpop.f32.mrb[0].mxu0
        %v3602 = vadd.f32 0.0, %v3601
        %v3603 = vpop.f32.mrb[0].mxu0
        %v3604 = vpop.f32.mrb[0].mxu0
        %v3605 = vadd.f32 0.0, %v3604
        %v3606 = vpop.f32.mrb[0].mxu0
        %3607 = vmatprep.mubr.bf16.mxu0 0
        %3608 = vmatmul.mubr.bf16.gmra.mrb[0].mxu0 %v3441
        %v3609 = vpop.f32.mrb[0].mxu0
        %v3610 = vadd.f32 0.0, %v3609
        %v3611 = vpop.f32.mrb[0].mxu0
        %v3612 = vpop.f32.mrb[0].mxu0
        %v3613 = vadd.f32 0.0, %v3612
        %v3614 = vpop.f32.mrb[0].mxu0
        %3615 = vmatprep.mubr.bf16.mxu0 0
        %3616 = vmatmul.mubr.bf16.gmra.mrb[0].mxu0 %v3444
        %v3617 = vpop.f32.mrb[0].mxu0
        %v3618 = vadd.f32 0.0, %v3617
        %v3619 = vpop.f32.mrb[0].mxu0
        %v3620 = vpop.f32.mrb[0].mxu0
        %v3621 = vadd.f32 0.0, %v3620
        %v3622 = vpop.f32.mrb[0].mxu0
        %3623 = vmatprep.mubr.bf16.mxu0 0
        %3624 = vmatmul.mubr.bf16.gmra.mrb[0].mxu0 %v3447
        %v3625 = vpop.f32.mrb[0].mxu0
        %v3626 = vadd.f32 0.0, %v3625
        %v3627 = vpop.f32.mrb[0].mxu0
        %v3628 = vpop.f32.mrb[0].mxu0
        %v3629 = vadd.f32 0.0, %v3628
        %v3630 = vpop.f32.mrb[0].mxu0
        %3631 = vmatprep.mubr.bf16.mxu0 0
        %3632 = vmatmul.mubr.bf16.gmra.mrb[0].mxu0 %v3450
        %v3633 = vpop.f32.mrb[0].mxu0
        %v3634 = vadd.f32 0.0, %v3633
        %v3635 = vpop.f32.mrb[0].mxu0
        %v3636 = vpop.f32.mrb[0].mxu0
        %v3637 = vadd.f32 0.0, %v3636
        %v3638 = vpop.f32.mrb[0].mxu0
        %3639 = vmatprep.mubr.bf16.mxu0 0
        %3640 = vmatmul.mubr.bf16.gmra.mrb[0].mxu0 %v3453
        %v3641 = vpop.f32.mrb[0].mxu0
        %v3642 = vadd.f32 0.0, %v3641
        %v3643 = vpop.f32.mrb[0].mxu0
        %v3644 = vpop.f32.mrb[0].mxu0
        %v3645 = vadd.f32 0.0, %v3644
        %v3646 = vpop.f32.mrb[0].mxu0
        %3647 = vmatprep.mubr.bf16.mxu0 0
        %3648 = vmatmul.mubr.bf16.gmra.mrb[0].mxu0 %v3456
        %v3649 = vpop.f32.mrb[0].mxu0
        %v3650 = vadd.f32 0.0, %v3649
        %v3651 = vpop.f32.mrb[0].mxu0
        %v3652 = vpop.f32.mrb[0].mxu0
        %v3653 = vadd.f32 0.0, %v3652
        %v3654 = vpop.f32.mrb[0].mxu0
        %3655 = vmatprep.mubr.bf16.mxu0 0
        %3656 = vmatmul.mubr.bf16.gmra.mrb[0].mxu0 %v3459
        %v3657 = vpop.f32.mrb[0].mxu0
        %v3658 = vadd.f32 0.0, %v3657
        %v3659 = vpop.f32.mrb[0].mxu0
        %v3660 = vpop.f32.mrb[0].mxu0
        %v3661 = vadd.f32 0.0, %v3660
        %v3662 = vpop.f32.mrb[0].mxu0
        %3663 = vmatprep.mubr.bf16.mxu0 0
        %3664 = vmatmul.mubr.bf16.gmra.mrb[0].mxu0 %v3462
        %v3665 = vpop.f32.mrb[0].mxu0
        %v3666 = vadd.f32 0.0, %v3665
        %v3667 = vpop.f32.mrb[0].mxu0
        %v3668 = vpop.f32.mrb[0].mxu0
        %v3669 = vadd.f32 0.0, %v3668
        %v3670 = vpop.f32.mrb[0].mxu0
        %3671 = vmatprep.mubr.bf16.mxu0 0
        %3672 = vmatmul.mubr.bf16.gmra.mrb[0].mxu0 %v3465
        %v3673 = vpop.f32.mrb[0].mxu0
        %v3674 = vadd.f32 0.0, %v3673
        %v3675 = vpop.f32.mrb[0].mxu0
        %v3676 = vpop.f32.mrb[0].mxu0
        %v3677 = vadd.f32 0.0, %v3676
        %v3678 = vpop.f32.mrb[0].mxu0
        %3679 = vmatprep.mubr.bf16.mxu0 0
        %3680 = vmatmul.mubr.bf16.gmra.mrb[0].mxu0 %v3468
        %v3681 = vpop.f32.mrb[0].mxu0
        %v3682 = vadd.f32 0.0, %v3681
        %v3683 = vpop.f32.mrb[0].mxu0
        %v3684 = vpop.f32.mrb[0].mxu0
        %v3685 = vadd.f32 0.0, %v3684
        %v3686 = vpop.f32.mrb[0].mxu0
        %3687 = vmatprep.mubr.bf16.mxu0 0
        %3688 = vmatmul.mubr.bf16.gmra.mrb[0].mxu0 %v3471
        %v3689 = vpop.f32.mrb[0].mxu0
        %v3690 = vadd.f32 0.0, %v3689
        %v3691 = vpop.f32.mrb[0].mxu0
        %v3692 = vpop.f32.mrb[0].mxu0
        %v3693 = vadd.f32 0.0, %v3692
        %v3694 = vpop.f32.mrb[0].mxu0
        %3695 = vmatprep.mubr.bf16.mxu0 0
        %3696 = vmatmul.mubr.bf16.gmra.mrb[0].mxu0 %v3474
        %v3697 = vpop.f32.mrb[0].mxu0
        %v3698 = vadd.f32 0.0, %v3697
        %v3699 = vpop.f32.mrb[0].mxu0
        %v3700 = vpop.f32.mrb[0].mxu0
        %v3701 = vadd.f32 0.0, %v3700
        %v3702 = vpop.f32.mrb[0].mxu0
        %3703 = vdwg.mxu0
        %v3704 = vld [vmem:[#allocation2] sm:$0xff]
        %v3705 = vld [vmem:[#allocation2 + $0x8] sm:$0xff]
        %v3706 = vld [vmem:[#allocation2 + $0x10] sm:$0xff]
        %v3707 = vld [vmem:[#allocation2 + $0x18] sm:$0xff]
        %v3708 = vld [vmem:[#allocation2 + $0x20] sm:$0xff]
        %v3709 = vld [vmem:[#allocation2 + $0x28] sm:$0xff]
        %v3710 = vld [vmem:[#allocation2 + $0x30] sm:$0xff]
        %v3711 = vld [vmem:[#allocation2 + $0x38] sm:$0xff]
        %v3712 = vld [vmem:[#allocation2 + $0x40] sm:$0xff]
        %v3713 = vld [vmem:[#allocation2 + $0x48] sm:$0xff]
        %v3714 = vld [vmem:[#allocation2 + $0x50] sm:$0xff]
        %v3715 = vld [vmem:[#allocation2 + $0x58] sm:$0xff]
        %v3716 = vld [vmem:[#allocation2 + $0x60] sm:$0xff]
        %v3717 = vld [vmem:[#allocation2 + $0x68] sm:$0xff]
        %v3718 = vld [vmem:[#allocation2 + $0x70] sm:$0xff]
        %v3719 = vld [vmem:[#allocation2 + $0x78] sm:$0xff]
        %v3720 = vld [vmem:[#allocation2 + $0x80] sm:$0xff]
        %v3721 = vld [vmem:[#allocation2 + $0x88] sm:$0xff]
        %v3722 = vld [vmem:[#allocation2 + $0x90] sm:$0xff]
        %v3723 = vld [vmem:[#allocation2 + $0x98] sm:$0xff]
        %v3724 = vld [vmem:[#allocation2 + $0xa0] sm:$0xff]
        %v3725 = vld [vmem:[#allocation2 + $0xa8] sm:$0xff]
        %v3726 = vld [vmem:[#allocation2 + $0xb0] sm:$0xff]
        %v3727 = vld [vmem:[#allocation2 + $0xb8] sm:$0xff]
        %v3728 = vld [vmem:[#allocation2 + $0xc0] sm:$0xff]
        %v3729 = vld [vmem:[#allocation2 + $0xc8] sm:$0xff]
        %v3730 = vld [vmem:[#allocation2 + $0xd0] sm:$0xff]
        %v3731 = vld [vmem:[#allocation2 + $0xd8] sm:$0xff]
        %v3732 = vld [vmem:[#allocation2 + $0xe0] sm:$0xff]
        %v3733 = vld [vmem:[#allocation2 + $0xe8] sm:$0xff]
        %v3734 = vld [vmem:[#allocation2 + $0xf0] sm:$0xff]
        %v3735 = vld [vmem:[#allocation2 + $0xf8] sm:$0xff]
        %v3736 = vld [vmem:[#allocation2 + $0x100] sm:$0xff]
        %v3737 = vld [vmem:[#allocation2 + $0x108] sm:$0xff]
        %v3738 = vld [vmem:[#allocation2 + $0x110] sm:$0xff]
        %v3739 = vld [vmem:[#allocation2 + $0x118] sm:$0xff]
        %v3740 = vld [vmem:[#allocation2 + $0x120] sm:$0xff]
        %v3741 = vld [vmem:[#allocation2 + $0x128] sm:$0xff]
        %v3742 = vld [vmem:[#allocation2 + $0x130] sm:$0xff]
        %v3743 = vld [vmem:[#allocation2 + $0x138] sm:$0xff]
        %v3744 = vld [vmem:[#allocation2 + $0x140] sm:$0xff]
        %v3745 = vld [vmem:[#allocation2 + $0x148] sm:$0xff]
        %v3746 = vld [vmem:[#allocation2 + $0x150] sm:$0xff]
        %v3747 = vld [vmem:[#allocation2 + $0x158] sm:$0xff]
        %v3748 = vld [vmem:[#allocation2 + $0x160] sm:$0xff]
        %v3749 = vld [vmem:[#allocation2 + $0x168] sm:$0xff]
        %v3750 = vld [vmem:[#allocation2 + $0x170] sm:$0xff]
        %v3751 = vld [vmem:[#allocation2 + $0x178] sm:$0xff]
        %v3752 = vadd.f32 %v3704, %v3514
        %v3753 = vadd.f32 %v3705, %v3517
        %v3754 = vadd.f32 %v3706, %v3522
        %v3755 = vadd.f32 %v3707, %v3525
        %v3756 = vadd.f32 %v3708, %v3530
        %v3757 = vadd.f32 %v3709, %v3533
        %v3758 = vadd.f32 %v3710, %v3538
        %v3759 = vadd.f32 %v3711, %v3541
        %v3760 = vadd.f32 %v3712, %v3546
        %v3761 = vadd.f32 %v3713, %v3549
        %v3762 = vadd.f32 %v3714, %v3554
        %v3763 = vadd.f32 %v3715, %v3557
        %v3764 = vadd.f32 %v3716, %v3562
        %v3765 = vadd.f32 %v3717, %v3565
        %v3766 = vadd.f32 %v3718, %v3570
        %v3767 = vadd.f32 %v3719, %v3573
        %v3768 = vadd.f32 %v3720, %v3578
        %v3769 = vadd.f32 %v3721, %v3581
        %v3770 = vadd.f32 %v3722, %v3586
        %v3771 = vadd.f32 %v3723, %v3589
        %v3772 = vadd.f32 %v3724, %v3594
        %v3773 = vadd.f32 %v3725, %v3597
        %v3774 = vadd.f32 %v3726, %v3602
        %v3775 = vadd.f32 %v3727, %v3605
        %v3776 = vadd.f32 %v3728, %v3610
        %v3777 = vadd.f32 %v3729, %v3613
        %v3778 = vadd.f32 %v3730, %v3618
        %v3779 = vadd.f32 %v3731, %v3621
        %v3780 = vadd.f32 %v3732, %v3626
        %v3781 = vadd.f32 %v3733, %v3629
        %v3782 = vadd.f32 %v3734, %v3634
        %v3783 = vadd.f32 %v3735, %v3637
        %v3784 = vadd.f32 %v3736, %v3642
        %v3785 = vadd.f32 %v3737, %v3645
        %v3786 = vadd.f32 %v3738, %v3650
        %v3787 = vadd.f32 %v3739, %v3653
        %v3788 = vadd.f32 %v3740, %v3658
        %v3789 = vadd.f32 %v3741, %v3661
        %v3790 = vadd.f32 %v3742, %v3666
        %v3791 = vadd.f32 %v3743, %v3669
        %v3792 = vadd.f32 %v3744, %v3674
        %v3793 = vadd.f32 %v3745, %v3677
        %v3794 = vadd.f32 %v3746, %v3682
        %v3795 = vadd.f32 %v3747, %v3685
        %v3796 = vadd.f32 %v3748, %v3690
        %v3797 = vadd.f32 %v3749, %v3693
        %v3798 = vadd.f32 %v3750, %v3698
        %v3799 = vadd.f32 %v3751, %v3701
        %3800 = vst [vmem:[#allocation2] sm:$0xff] %v3752
        %3801 = vst [vmem:[#allocation2 + $0x8] sm:$0xff] %v3753
        %3802 = vst [vmem:[#allocation2 + $0x10] sm:$0xff] %v3754
        %3803 = vst [vmem:[#allocation2 + $0x18] sm:$0xff] %v3755
        %3804 = vst [vmem:[#allocation2 + $0x20] sm:$0xff] %v3756
        %3805 = vst [vmem:[#allocation2 + $0x28] sm:$0xff] %v3757
        %3806 = vst [vmem:[#allocation2 + $0x30] sm:$0xff] %v3758
        %3807 = vst [vmem:[#allocation2 + $0x38] sm:$0xff] %v3759
        %3808 = vst [vmem:[#allocation2 + $0x40] sm:$0xff] %v3760
        %3809 = vst [vmem:[#allocation2 + $0x48] sm:$0xff] %v3761
        %3810 = vst [vmem:[#allocation2 + $0x50] sm:$0xff] %v3762
        %3811 = vst [vmem:[#allocation2 + $0x58] sm:$0xff] %v3763
        %3812 = vst [vmem:[#allocation2 + $0x60] sm:$0xff] %v3764
        %3813 = vst [vmem:[#allocation2 + $0x68] sm:$0xff] %v3765
        %3814 = vst [vmem:[#allocation2 + $0x70] sm:$0xff] %v3766
        %3815 = vst [vmem:[#allocation2 + $0x78] sm:$0xff] %v3767
        %3816 = vst [vmem:[#allocation2 + $0x80] sm:$0xff] %v3768
        %3817 = vst [vmem:[#allocation2 + $0x88] sm:$0xff] %v3769
        %3818 = vst [vmem:[#allocation2 + $0x90] sm:$0xff] %v3770
        %3819 = vst [vmem:[#allocation2 + $0x98] sm:$0xff] %v3771
        %3820 = vst [vmem:[#allocation2 + $0xa0] sm:$0xff] %v3772
        %3821 = vst [vmem:[#allocation2 + $0xa8] sm:$0xff] %v3773
        %3822 = vst [vmem:[#allocation2 + $0xb0] sm:$0xff] %v3774
        %3823 = vst [vmem:[#allocation2 + $0xb8] sm:$0xff] %v3775
        %3824 = vst [vmem:[#allocation2 + $0xc0] sm:$0xff] %v3776
        %3825 = vst [vmem:[#allocation2 + $0xc8] sm:$0xff] %v3777
        %3826 = vst [vmem:[#allocation2 + $0xd0] sm:$0xff] %v3778
        %3827 = vst [vmem:[#allocation2 + $0xd8] sm:$0xff] %v3779
        %3828 = vst [vmem:[#allocation2 + $0xe0] sm:$0xff] %v3780
        %3829 = vst [vmem:[#allocation2 + $0xe8] sm:$0xff] %v3781
        %3830 = vst [vmem:[#allocation2 + $0xf0] sm:$0xff] %v3782
        %3831 = vst [vmem:[#allocation2 + $0xf8] sm:$0xff] %v3783
        %3832 = vst [vmem:[#allocation2 + $0x100] sm:$0xff] %v3784
        %3833 = vst [vmem:[#allocation2 + $0x108] sm:$0xff] %v3785
        %3834 = vst [vmem:[#allocation2 + $0x110] sm:$0xff] %v3786
        %3835 = vst [vmem:[#allocation2 + $0x118] sm:$0xff] %v3787
        %3836 = vst [vmem:[#allocation2 + $0x120] sm:$0xff] %v3788
        %3837 = vst [vmem:[#allocation2 + $0x128] sm:$0xff] %v3789
        %3838 = vst [vmem:[#allocation2 + $0x130] sm:$0xff] %v3790
        %3839 = vst [vmem:[#allocation2 + $0x138] sm:$0xff] %v3791
        %3840 = vst [vmem:[#allocation2 + $0x140] sm:$0xff] %v3792
        %3841 = vst [vmem:[#allocation2 + $0x148] sm:$0xff] %v3793
        %3842 = vst [vmem:[#allocation2 + $0x150] sm:$0xff] %v3794
        %3843 = vst [vmem:[#allocation2 + $0x158] sm:$0xff] %v3795
        %3844 = vst [vmem:[#allocation2 + $0x160] sm:$0xff] %v3796
        %3845 = vst [vmem:[#allocation2 + $0x168] sm:$0xff] %v3797
        %3846 = vst [vmem:[#allocation2 + $0x170] sm:$0xff] %v3798
        %3847 = vst [vmem:[#allocation2 + $0x178] sm:$0xff] %v3799
        %s3848 = scalar_lea.vmem %s210, 14
        %v3849 = vld [vmem:[%s3848] sm:$0x3]
        %v3851 = vsel %vm457, %v3849, 0
        %3853 = vmatprep.subr.bf16.mxu0 0
        %3854 = vmatpush1.bf16.msra.mxu0 %v3851
        %3855 = vmatprep.subr.bf16.mxu0 0
        %3856 = vmatpush1.bf16.msra.mxu0 0
        %3857 = vmatprep.subr.bf16.mxu0 0
        %3858 = vmatpush1.bf16.msra.mxu0 0
        %3859 = vmatprep.subr.bf16.mxu0 0
        %3860 = vmatpush1.bf16.msra.mxu0 0
        %3861 = vmatprep.subr.bf16.mxu0 0
        %3862 = vmatpush1.bf16.msra.mxu0 0
        %3863 = vmatprep.subr.bf16.mxu0 0
        %3864 = vmatpush1.bf16.msra.mxu0 0
        %3865 = vmatprep.subr.bf16.mxu0 0
        %3866 = vmatpush1.bf16.msra.mxu0 0
        %3867 = vmatprep.subr.bf16.mxu0 0
        %3868 = vmatpush1.bf16.msra.mxu0 0
        %3869 = vmatprep.subr.bf16.mxu0 0
        %3870 = vmatpush1.bf16.msra.mxu0 0
        %3871 = vmatprep.subr.bf16.mxu0 0
        %3872 = vmatpush1.bf16.msra.mxu0 0
        %3873 = vmatprep.subr.bf16.mxu0 0
        %3874 = vmatpush1.bf16.msra.mxu0 0
        %3875 = vmatprep.subr.bf16.mxu0 0
        %3876 = vmatpush1.bf16.msra.mxu0 0
        %3877 = vmatprep.subr.bf16.mxu0 0
        %3878 = vmatpush1.bf16.msra.mxu0 0
        %3879 = vmatprep.subr.bf16.mxu0 0
        %3880 = vmatpush1.bf16.msra.mxu0 0
        %3881 = vmatprep.subr.bf16.mxu0 0
        %3882 = vmatpush1.bf16.msra.mxu0 0
        %3883 = vmatprep.subr.bf16.mxu0 0
        %3884 = vmatpush1.bf16.msra.mxu0 0
        %3885 = vmatprep.mubr.bf16.mxu0 0
        %3886 = vmatmul.mubr.bf16.gmra.mrb[0].mxu0 %v3405
        %v3887 = vpop.f32.mrb[0].mxu0
        %v3888 = vadd.f32 0.0, %v3887
        %v3889 = vpop.f32.mrb[0].mxu0
        %v3890 = vpop.f32.mrb[0].mxu0
        %v3891 = vadd.f32 0.0, %v3890
        %v3892 = vpop.f32.mrb[0].mxu0
        %3893 = vmatprep.mubr.bf16.mxu0 0
        %3894 = vmatmul.mubr.bf16.gmra.mrb[0].mxu0 %v3408
        %v3895 = vpop.f32.mrb[0].mxu0
        %v3896 = vadd.f32 0.0, %v3895
        %v3897 = vpop.f32.mrb[0].mxu0
        %v3898 = vpop.f32.mrb[0].mxu0
        %v3899 = vadd.f32 0.0, %v3898
        %v3900 = vpop.f32.mrb[0].mxu0
        %3901 = vmatprep.mubr.bf16.mxu0 0
        %3902 = vmatmul.mubr.bf16.gmra.mrb[0].mxu0 %v3411
        %v3903 = vpop.f32.mrb[0].mxu0
        %v3904 = vadd.f32 0.0, %v3903
        %v3905 = vpop.f32.mrb[0].mxu0
        %v3906 = vpop.f32.mrb[0].mxu0
        %v3907 = vadd.f32 0.0, %v3906
        %v3908 = vpop.f32.mrb[0].mxu0
        %3909 = vmatprep.mubr.bf16.mxu0 0
        %3910 = vmatmul.mubr.bf16.gmra.mrb[0].mxu0 %v3414
        %v3911 = vpop.f32.mrb[0].mxu0
        %v3912 = vadd.f32 0.0, %v3911
        %v3913 = vpop.f32.mrb[0].mxu0
        %v3914 = vpop.f32.mrb[0].mxu0
        %v3915 = vadd.f32 0.0, %v3914
        %v3916 = vpop.f32.mrb[0].mxu0
        %3917 = vmatprep.mubr.bf16.mxu0 0
        %3918 = vmatmul.mubr.bf16.gmra.mrb[0].mxu0 %v3417
        %v3919 = vpop.f32.mrb[0].mxu0
        %v3920 = vadd.f32 0.0, %v3919
        %v3921 = vpop.f32.mrb[0].mxu0
        %v3922 = vpop.f32.mrb[0].mxu0
        %v3923 = vadd.f32 0.0, %v3922
        %v3924 = vpop.f32.mrb[0].mxu0
        %3925 = vmatprep.mubr.bf16.mxu0 0
        %3926 = vmatmul.mubr.bf16.gmra.mrb[0].mxu0 %v3420
        %v3927 = vpop.f32.mrb[0].mxu0
        %v3928 = vadd.f32 0.0, %v3927
        %v3929 = vpop.f32.mrb[0].mxu0
        %v3930 = vpop.f32.mrb[0].mxu0
        %v3931 = vadd.f32 0.0, %v3930
        %v3932 = vpop.f32.mrb[0].mxu0
        %3933 = vmatprep.mubr.bf16.mxu0 0
        %3934 = vmatmul.mubr.bf16.gmra.mrb[0].mxu0 %v3423
        %v3935 = vpop.f32.mrb[0].mxu0
        %v3936 = vadd.f32 0.0, %v3935
        %v3937 = vpop.f32.mrb[0].mxu0
        %v3938 = vpop.f32.mrb[0].mxu0
        %v3939 = vadd.f32 0.0, %v3938
        %v3940 = vpop.f32.mrb[0].mxu0
        %3941 = vmatprep.mubr.bf16.mxu0 0
        %3942 = vmatmul.mubr.bf16.gmra.mrb[0].mxu0 %v3426
        %v3943 = vpop.f32.mrb[0].mxu0
        %v3944 = vadd.f32 0.0, %v3943
        %v3945 = vpop.f32.mrb[0].mxu0
        %v3946 = vpop.f32.mrb[0].mxu0
        %v3947 = vadd.f32 0.0, %v3946
        %v3948 = vpop.f32.mrb[0].mxu0
        %3949 = vmatprep.mubr.bf16.mxu0 0
        %3950 = vmatmul.mubr.bf16.gmra.mrb[0].mxu0 %v3429
        %v3951 = vpop.f32.mrb[0].mxu0
        %v3952 = vadd.f32 0.0, %v3951
        %v3953 = vpop.f32.mrb[0].mxu0
        %v3954 = vpop.f32.mrb[0].mxu0
        %v3955 = vadd.f32 0.0, %v3954
        %v3956 = vpop.f32.mrb[0].mxu0
        %3957 = vmatprep.mubr.bf16.mxu0 0
        %3958 = vmatmul.mubr.bf16.gmra.mrb[0].mxu0 %v3432
        %v3959 = vpop.f32.mrb[0].mxu0
        %v3960 = vadd.f32 0.0, %v3959
        %v3961 = vpop.f32.mrb[0].mxu0
        %v3962 = vpop.f32.mrb[0].mxu0
        %v3963 = vadd.f32 0.0, %v3962
        %v3964 = vpop.f32.mrb[0].mxu0
        %3965 = vmatprep.mubr.bf16.mxu0 0
        %3966 = vmatmul.mubr.bf16.gmra.mrb[0].mxu0 %v3435
        %v3967 = vpop.f32.mrb[0].mxu0
        %v3968 = vadd.f32 0.0, %v3967
        %v3969 = vpop.f32.mrb[0].mxu0
        %v3970 = vpop.f32.mrb[0].mxu0
        %v3971 = vadd.f32 0.0, %v3970
        %v3972 = vpop.f32.mrb[0].mxu0
        %3973 = vmatprep.mubr.bf16.mxu0 0
        %3974 = vmatmul.mubr.bf16.gmra.mrb[0].mxu0 %v3438
        %v3975 = vpop.f32.mrb[0].mxu0
        %v3976 = vadd.f32 0.0, %v3975
        %v3977 = vpop.f32.mrb[0].mxu0
        %v3978 = vpop.f32.mrb[0].mxu0
        %v3979 = vadd.f32 0.0, %v3978
        %v3980 = vpop.f32.mrb[0].mxu0
        %3981 = vmatprep.mubr.bf16.mxu0 0
        %3982 = vmatmul.mubr.bf16.gmra.mrb[0].mxu0 %v3441
        %v3983 = vpop.f32.mrb[0].mxu0
        %v3984 = vadd.f32 0.0, %v3983
        %v3985 = vpop.f32.mrb[0].mxu0
        %v3986 = vpop.f32.mrb[0].mxu0
        %v3987 = vadd.f32 0.0, %v3986
        %v3988 = vpop.f32.mrb[0].mxu0
        %3989 = vmatprep.mubr.bf16.mxu0 0
        %3990 = vmatmul.mubr.bf16.gmra.mrb[0].mxu0 %v3444
        %v3991 = vpop.f32.mrb[0].mxu0
        %v3992 = vadd.f32 0.0, %v3991
        %v3993 = vpop.f32.mrb[0].mxu0
        %v3994 = vpop.f32.mrb[0].mxu0
        %v3995 = vadd.f32 0.0, %v3994
        %v3996 = vpop.f32.mrb[0].mxu0
        %3997 = vmatprep.mubr.bf16.mxu0 0
        %3998 = vmatmul.mubr.bf16.gmra.mrb[0].mxu0 %v3447
        %v3999 = vpop.f32.mrb[0].mxu0
        %v4000 = vadd.f32 0.0, %v3999
        %v4001 = vpop.f32.mrb[0].mxu0
        %v4002 = vpop.f32.mrb[0].mxu0
        %v4003 = vadd.f32 0.0, %v4002
        %v4004 = vpop.f32.mrb[0].mxu0
        %4005 = vmatprep.mubr.bf16.mxu0 0
        %4006 = vmatmul.mubr.bf16.gmra.mrb[0].mxu0 %v3450
        %v4007 = vpop.f32.mrb[0].mxu0
        %v4008 = vadd.f32 0.0, %v4007
        %v4009 = vpop.f32.mrb[0].mxu0
        %v4010 = vpop.f32.mrb[0].mxu0
        %v4011 = vadd.f32 0.0, %v4010
        %v4012 = vpop.f32.mrb[0].mxu0
        %4013 = vmatprep.mubr.bf16.mxu0 0
        %4014 = vmatmul.mubr.bf16.gmra.mrb[0].mxu0 %v3453
        %v4015 = vpop.f32.mrb[0].mxu0
        %v4016 = vadd.f32 0.0, %v4015
        %v4017 = vpop.f32.mrb[0].mxu0
        %v4018 = vpop.f32.mrb[0].mxu0
        %v4019 = vadd.f32 0.0, %v4018
        %v4020 = vpop.f32.mrb[0].mxu0
        %4021 = vmatprep.mubr.bf16.mxu0 0
        %4022 = vmatmul.mubr.bf16.gmra.mrb[0].mxu0 %v3456
        %v4023 = vpop.f32.mrb[0].mxu0
        %v4024 = vadd.f32 0.0, %v4023
        %v4025 = vpop.f32.mrb[0].mxu0
        %v4026 = vpop.f32.mrb[0].mxu0
        %v4027 = vadd.f32 0.0, %v4026
        %v4028 = vpop.f32.mrb[0].mxu0
        %4029 = vmatprep.mubr.bf16.mxu0 0
        %4030 = vmatmul.mubr.bf16.gmra.mrb[0].mxu0 %v3459
        %v4031 = vpop.f32.mrb[0].mxu0
        %v4032 = vadd.f32 0.0, %v4031
        %v4033 = vpop.f32.mrb[0].mxu0
        %v4034 = vpop.f32.mrb[0].mxu0
        %v4035 = vadd.f32 0.0, %v4034
        %v4036 = vpop.f32.mrb[0].mxu0
        %4037 = vmatprep.mubr.bf16.mxu0 0
        %4038 = vmatmul.mubr.bf16.gmra.mrb[0].mxu0 %v3462
        %v4039 = vpop.f32.mrb[0].mxu0
        %v4040 = vadd.f32 0.0, %v4039
        %v4041 = vpop.f32.mrb[0].mxu0
        %v4042 = vpop.f32.mrb[0].mxu0
        %v4043 = vadd.f32 0.0, %v4042
        %v4044 = vpop.f32.mrb[0].mxu0
        %4045 = vmatprep.mubr.bf16.mxu0 0
        %4046 = vmatmul.mubr.bf16.gmra.mrb[0].mxu0 %v3465
        %v4047 = vpop.f32.mrb[0].mxu0
        %v4048 = vadd.f32 0.0, %v4047
        %v4049 = vpop.f32.mrb[0].mxu0
        %v4050 = vpop.f32.mrb[0].mxu0
        %v4051 = vadd.f32 0.0, %v4050
        %v4052 = vpop.f32.mrb[0].mxu0
        %4053 = vmatprep.mubr.bf16.mxu0 0
        %4054 = vmatmul.mubr.bf16.gmra.mrb[0].mxu0 %v3468
        %v4055 = vpop.f32.mrb[0].mxu0
        %v4056 = vadd.f32 0.0, %v4055
        %v4057 = vpop.f32.mrb[0].mxu0
        %v4058 = vpop.f32.mrb[0].mxu0
        %v4059 = vadd.f32 0.0, %v4058
        %v4060 = vpop.f32.mrb[0].mxu0
        %4061 = vmatprep.mubr.bf16.mxu0 0
        %4062 = vmatmul.mubr.bf16.gmra.mrb[0].mxu0 %v3471
        %v4063 = vpop.f32.mrb[0].mxu0
        %v4064 = vadd.f32 0.0, %v4063
        %v4065 = vpop.f32.mrb[0].mxu0
        %v4066 = vpop.f32.mrb[0].mxu0
        %v4067 = vadd.f32 0.0, %v4066
        %v4068 = vpop.f32.mrb[0].mxu0
        %4069 = vmatprep.mubr.bf16.mxu0 0
        %4070 = vmatmul.mubr.bf16.gmra.mrb[0].mxu0 %v3474
        %v4071 = vpop.f32.mrb[0].mxu0
        %v4072 = vadd.f32 0.0, %v4071
        %v4073 = vpop.f32.mrb[0].mxu0
        %v4074 = vpop.f32.mrb[0].mxu0
        %v4075 = vadd.f32 0.0, %v4074
        %v4076 = vpop.f32.mrb[0].mxu0
        %4077 = vdwg.mxu0
        %v4078 = vrot.slane %v3888, 1
        %v4079 = vrot.slane %v3891, 1
        %v4080 = vrot.slane %v3896, 1
        %v4081 = vrot.slane %v3899, 1
        %v4082 = vrot.slane %v3904, 1
        %v4083 = vrot.slane %v3907, 1
        %v4084 = vrot.slane %v3912, 1
        %v4085 = vrot.slane %v3915, 1
        %v4086 = vrot.slane %v3920, 1
        %v4087 = vrot.slane %v3923, 1
        %v4088 = vrot.slane %v3928, 1
        %v4089 = vrot.slane %v3931, 1
        %v4090 = vrot.slane %v3936, 1
        %v4091 = vrot.slane %v3939, 1
        %v4092 = vrot.slane %v3944, 1
        %v4093 = vrot.slane %v3947, 1
        %v4094 = vrot.slane %v3952, 1
        %v4095 = vrot.slane %v3955, 1
        %v4096 = vrot.slane %v3960, 1
        %v4097 = vrot.slane %v3963, 1
        %v4098 = vrot.slane %v3968, 1
        %v4099 = vrot.slane %v3971, 1
        %v4100 = vrot.slane %v3976, 1
        %v4101 = vrot.slane %v3979, 1
        %v4102 = vrot.slane %v3984, 1
        %v4103 = vrot.slane %v3987, 1
        %v4104 = vrot.slane %v3992, 1
        %v4105 = vrot.slane %v3995, 1
        %v4106 = vrot.slane %v4000, 1
        %v4107 = vrot.slane %v4003, 1
        %v4108 = vrot.slane %v4008, 1
        %v4109 = vrot.slane %v4011, 1
        %v4110 = vrot.slane %v4016, 1
        %v4111 = vrot.slane %v4019, 1
        %v4112 = vrot.slane %v4024, 1
        %v4113 = vrot.slane %v4027, 1
        %v4114 = vrot.slane %v4032, 1
        %v4115 = vrot.slane %v4035, 1
        %v4116 = vrot.slane %v4040, 1
        %v4117 = vrot.slane %v4043, 1
        %v4118 = vrot.slane %v4048, 1
        %v4119 = vrot.slane %v4051, 1
        %v4120 = vrot.slane %v4056, 1
        %v4121 = vrot.slane %v4059, 1
        %v4122 = vrot.slane %v4064, 1
        %v4123 = vrot.slane %v4067, 1
        %v4124 = vrot.slane %v4072, 1
        %v4125 = vrot.slane %v4075, 1
        %v4126 = vsel %vm1014, %v4124, %v4125
        %v4127 = vsel %vm1014, %v4123, %v4124
        %v4128 = vsel %vm1014, %v4122, %v4123
        %v4129 = vsel %vm1014, %v4121, %v4122
        %v4130 = vsel %vm1014, %v4120, %v4121
        %v4131 = vsel %vm1014, %v4119, %v4120
        %v4132 = vsel %vm1014, %v4118, %v4119
        %v4133 = vsel %vm1014, %v4117, %v4118
        %v4134 = vsel %vm1014, %v4116, %v4117
        %v4135 = vsel %vm1014, %v4115, %v4116
        %v4136 = vsel %vm1014, %v4114, %v4115
        %v4137 = vsel %vm1014, %v4113, %v4114
        %v4138 = vsel %vm1014, %v4112, %v4113
        %v4139 = vsel %vm1014, %v4111, %v4112
        %v4140 = vsel %vm1014, %v4110, %v4111
        %v4141 = vsel %vm1014, %v4109, %v4110
        %v4142 = vsel %vm1014, %v4108, %v4109
        %v4143 = vsel %vm1014, %v4107, %v4108
        %v4144 = vsel %vm1014, %v4106, %v4107
        %v4145 = vsel %vm1014, %v4105, %v4106
        %v4146 = vsel %vm1014, %v4104, %v4105
        %v4147 = vsel %vm1014, %v4103, %v4104
        %v4148 = vsel %vm1014, %v4102, %v4103
        %v4149 = vsel %vm1014, %v4101, %v4102
        %v4150 = vsel %vm1014, %v4100, %v4101
        %v4151 = vsel %vm1014, %v4099, %v4100
        %v4152 = vsel %vm1014, %v4098, %v4099
        %v4153 = vsel %vm1014, %v4097, %v4098
        %v4154 = vsel %vm1014, %v4096, %v4097
        %v4155 = vsel %vm1014, %v4095, %v4096
        %v4156 = vsel %vm1014, %v4094, %v4095
        %v4157 = vsel %vm1014, %v4093, %v4094
        %v4158 = vsel %vm1014, %v4092, %v4093
        %v4159 = vsel %vm1014, %v4091, %v4092
        %v4160 = vsel %vm1014, %v4090, %v4091
        %v4161 = vsel %vm1014, %v4089, %v4090
        %v4162 = vsel %vm1014, %v4088, %v4089
        %v4163 = vsel %vm1014, %v4087, %v4088
        %v4164 = vsel %vm1014, %v4086, %v4087
        %v4165 = vsel %vm1014, %v4085, %v4086
        %v4166 = vsel %vm1014, %v4084, %v4085
        %v4167 = vsel %vm1014, %v4083, %v4084
        %v4168 = vsel %vm1014, %v4082, %v4083
        %v4169 = vsel %vm1014, %v4081, %v4082
        %v4170 = vsel %vm1014, %v4080, %v4081
        %v4171 = vsel %vm1014, %v4079, %v4080
        %v4172 = vsel %vm1014, %v4078, %v4079
        %v4173 = vsel %vm1014, %v4125, %v4078
        %v4174 = vld [vmem:[#allocation2] sm:$0xff]
        %v4175 = vld [vmem:[#allocation2 + $0x8] sm:$0xff]
        %v4176 = vld [vmem:[#allocation2 + $0x10] sm:$0xff]
        %v4177 = vld [vmem:[#allocation2 + $0x18] sm:$0xff]
        %v4178 = vld [vmem:[#allocation2 + $0x20] sm:$0xff]
        %v4179 = vld [vmem:[#allocation2 + $0x28] sm:$0xff]
        %v4180 = vld [vmem:[#allocation2 + $0x30] sm:$0xff]
        %v4181 = vld [vmem:[#allocation2 + $0x38] sm:$0xff]
        %v4182 = vld [vmem:[#allocation2 + $0x40] sm:$0xff]
        %v4183 = vld [vmem:[#allocation2 + $0x48] sm:$0xff]
        %v4184 = vld [vmem:[#allocation2 + $0x50] sm:$0xff]
        %v4185 = vld [vmem:[#allocation2 + $0x58] sm:$0xff]
        %v4186 = vld [vmem:[#allocation2 + $0x60] sm:$0xff]
        %v4187 = vld [vmem:[#allocation2 + $0x68] sm:$0xff]
        %v4188 = vld [vmem:[#allocation2 + $0x70] sm:$0xff]
        %v4189 = vld [vmem:[#allocation2 + $0x78] sm:$0xff]
        %v4190 = vld [vmem:[#allocation2 + $0x80] sm:$0xff]
        %v4191 = vld [vmem:[#allocation2 + $0x88] sm:$0xff]
        %v4192 = vld [vmem:[#allocation2 + $0x90] sm:$0xff]
        %v4193 = vld [vmem:[#allocation2 + $0x98] sm:$0xff]
        %v4194 = vld [vmem:[#allocation2 + $0xa0] sm:$0xff]
        %v4195 = vld [vmem:[#allocation2 + $0xa8] sm:$0xff]
        %v4196 = vld [vmem:[#allocation2 + $0xb0] sm:$0xff]
        %v4197 = vld [vmem:[#allocation2 + $0xb8] sm:$0xff]
        %v4198 = vld [vmem:[#allocation2 + $0xc0] sm:$0xff]
        %v4199 = vld [vmem:[#allocation2 + $0xc8] sm:$0xff]
        %v4200 = vld [vmem:[#allocation2 + $0xd0] sm:$0xff]
        %v4201 = vld [vmem:[#allocation2 + $0xd8] sm:$0xff]
        %v4202 = vld [vmem:[#allocation2 + $0xe0] sm:$0xff]
        %v4203 = vld [vmem:[#allocation2 + $0xe8] sm:$0xff]
        %v4204 = vld [vmem:[#allocation2 + $0xf0] sm:$0xff]
        %v4205 = vld [vmem:[#allocation2 + $0xf8] sm:$0xff]
        %v4206 = vld [vmem:[#allocation2 + $0x100] sm:$0xff]
        %v4207 = vld [vmem:[#allocation2 + $0x108] sm:$0xff]
        %v4208 = vld [vmem:[#allocation2 + $0x110] sm:$0xff]
        %v4209 = vld [vmem:[#allocation2 + $0x118] sm:$0xff]
        %v4210 = vld [vmem:[#allocation2 + $0x120] sm:$0xff]
        %v4211 = vld [vmem:[#allocation2 + $0x128] sm:$0xff]
        %v4212 = vld [vmem:[#allocation2 + $0x130] sm:$0xff]
        %v4213 = vld [vmem:[#allocation2 + $0x138] sm:$0xff]
        %v4214 = vld [vmem:[#allocation2 + $0x140] sm:$0xff]
        %v4215 = vld [vmem:[#allocation2 + $0x148] sm:$0xff]
        %v4216 = vld [vmem:[#allocation2 + $0x150] sm:$0xff]
        %v4217 = vld [vmem:[#allocation2 + $0x158] sm:$0xff]
        %v4218 = vld [vmem:[#allocation2 + $0x160] sm:$0xff]
        %v4219 = vld [vmem:[#allocation2 + $0x168] sm:$0xff]
        %v4220 = vld [vmem:[#allocation2 + $0x170] sm:$0xff]
        %v4221 = vld [vmem:[#allocation2 + $0x178] sm:$0xff]
        %v4222 = vadd.f32 %v4174, %v4172
        %v4223 = vadd.f32 %v4175, %v4171
        %v4224 = vadd.f32 %v4176, %v4170
        %v4225 = vadd.f32 %v4177, %v4169
        %v4226 = vadd.f32 %v4178, %v4168
        %v4227 = vadd.f32 %v4179, %v4167
        %v4228 = vadd.f32 %v4180, %v4166
        %v4229 = vadd.f32 %v4181, %v4165
        %v4230 = vadd.f32 %v4182, %v4164
        %v4231 = vadd.f32 %v4183, %v4163
        %v4232 = vadd.f32 %v4184, %v4162
        %v4233 = vadd.f32 %v4185, %v4161
        %v4234 = vadd.f32 %v4186, %v4160
        %v4235 = vadd.f32 %v4187, %v4159
        %v4236 = vadd.f32 %v4188, %v4158
        %v4237 = vadd.f32 %v4189, %v4157
        %v4238 = vadd.f32 %v4190, %v4156
        %v4239 = vadd.f32 %v4191, %v4155
        %v4240 = vadd.f32 %v4192, %v4154
        %v4241 = vadd.f32 %v4193, %v4153
        %v4242 = vadd.f32 %v4194, %v4152
        %v4243 = vadd.f32 %v4195, %v4151
        %v4244 = vadd.f32 %v4196, %v4150
        %v4245 = vadd.f32 %v4197, %v4149
        %v4246 = vadd.f32 %v4198, %v4148
        %v4247 = vadd.f32 %v4199, %v4147
        %v4248 = vadd.f32 %v4200, %v4146
        %v4249 = vadd.f32 %v4201, %v4145
        %v4250 = vadd.f32 %v4202, %v4144
        %v4251 = vadd.f32 %v4203, %v4143
        %v4252 = vadd.f32 %v4204, %v4142
        %v4253 = vadd.f32 %v4205, %v4141
        %v4254 = vadd.f32 %v4206, %v4140
        %v4255 = vadd.f32 %v4207, %v4139
        %v4256 = vadd.f32 %v4208, %v4138
        %v4257 = vadd.f32 %v4209, %v4137
        %v4258 = vadd.f32 %v4210, %v4136
        %v4259 = vadd.f32 %v4211, %v4135
        %v4260 = vadd.f32 %v4212, %v4134
        %v4261 = vadd.f32 %v4213, %v4133
        %v4262 = vadd.f32 %v4214, %v4132
        %v4263 = vadd.f32 %v4215, %v4131
        %v4264 = vadd.f32 %v4216, %v4130
        %v4265 = vadd.f32 %v4217, %v4129
        %v4266 = vadd.f32 %v4218, %v4128
        %v4267 = vadd.f32 %v4219, %v4127
        %v4268 = vadd.f32 %v4220, %v4126
        %v4269 = vadd.f32 %v4221, %v4173
        %4270 = vst [vmem:[#allocation2] sm:$0xff] %v4222
        %4271 = vst [vmem:[#allocation2 + $0x8] sm:$0xff] %v4223
        %4272 = vst [vmem:[#allocation2 + $0x10] sm:$0xff] %v4224
        %4273 = vst [vmem:[#allocation2 + $0x18] sm:$0xff] %v4225
        %4274 = vst [vmem:[#allocation2 + $0x20] sm:$0xff] %v4226
        %4275 = vst [vmem:[#allocation2 + $0x28] sm:$0xff] %v4227
        %4276 = vst [vmem:[#allocation2 + $0x30] sm:$0xff] %v4228
        %4277 = vst [vmem:[#allocation2 + $0x38] sm:$0xff] %v4229
        %4278 = vst [vmem:[#allocation2 + $0x40] sm:$0xff] %v4230
        %4279 = vst [vmem:[#allocation2 + $0x48] sm:$0xff] %v4231
        %4280 = vst [vmem:[#allocation2 + $0x50] sm:$0xff] %v4232
        %4281 = vst [vmem:[#allocation2 + $0x58] sm:$0xff] %v4233
        %4282 = vst [vmem:[#allocation2 + $0x60] sm:$0xff] %v4234
        %4283 = vst [vmem:[#allocation2 + $0x68] sm:$0xff] %v4235
        %4284 = vst [vmem:[#allocation2 + $0x70] sm:$0xff] %v4236
        %4285 = vst [vmem:[#allocation2 + $0x78] sm:$0xff] %v4237
        %4286 = vst [vmem:[#allocation2 + $0x80] sm:$0xff] %v4238
        %4287 = vst [vmem:[#allocation2 + $0x88] sm:$0xff] %v4239
        %4288 = vst [vmem:[#allocation2 + $0x90] sm:$0xff] %v4240
        %4289 = vst [vmem:[#allocation2 + $0x98] sm:$0xff] %v4241
        %4290 = vst [vmem:[#allocation2 + $0xa0] sm:$0xff] %v4242
        %4291 = vst [vmem:[#allocation2 + $0xa8] sm:$0xff] %v4243
        %4292 = vst [vmem:[#allocation2 + $0xb0] sm:$0xff] %v4244
        %4293 = vst [vmem:[#allocation2 + $0xb8] sm:$0xff] %v4245
        %4294 = vst [vmem:[#allocation2 + $0xc0] sm:$0xff] %v4246
        %4295 = vst [vmem:[#allocation2 + $0xc8] sm:$0xff] %v4247
        %4296 = vst [vmem:[#allocation2 + $0xd0] sm:$0xff] %v4248
        %4297 = vst [vmem:[#allocation2 + $0xd8] sm:$0xff] %v4249
        %4298 = vst [vmem:[#allocation2 + $0xe0] sm:$0xff] %v4250
        %4299 = vst [vmem:[#allocation2 + $0xe8] sm:$0xff] %v4251
        %4300 = vst [vmem:[#allocation2 + $0xf0] sm:$0xff] %v4252
        %4301 = vst [vmem:[#allocation2 + $0xf8] sm:$0xff] %v4253
        %4302 = vst [vmem:[#allocation2 + $0x100] sm:$0xff] %v4254
        %4303 = vst [vmem:[#allocation2 + $0x108] sm:$0xff] %v4255
        %4304 = vst [vmem:[#allocation2 + $0x110] sm:$0xff] %v4256
        %4305 = vst [vmem:[#allocation2 + $0x118] sm:$0xff] %v4257
        %4306 = vst [vmem:[#allocation2 + $0x120] sm:$0xff] %v4258
        %4307 = vst [vmem:[#allocation2 + $0x128] sm:$0xff] %v4259
        %4308 = vst [vmem:[#allocation2 + $0x130] sm:$0xff] %v4260
        %4309 = vst [vmem:[#allocation2 + $0x138] sm:$0xff] %v4261
        %4310 = vst [vmem:[#allocation2 + $0x140] sm:$0xff] %v4262
        %4311 = vst [vmem:[#allocation2 + $0x148] sm:$0xff] %v4263
        %4312 = vst [vmem:[#allocation2 + $0x150] sm:$0xff] %v4264
        %4313 = vst [vmem:[#allocation2 + $0x158] sm:$0xff] %v4265
        %4314 = vst [vmem:[#allocation2 + $0x160] sm:$0xff] %v4266
        %4315 = vst [vmem:[#allocation2 + $0x168] sm:$0xff] %v4267
        %4316 = vst [vmem:[#allocation2 + $0x170] sm:$0xff] %v4268
        %4317 = vst [vmem:[#allocation2 + $0x178] sm:$0xff] %v4269
        %s4318 = scalar_lea.vmem %s210, 16
        %v4319 = vld [vmem:[%s4318] sm:$0x3]
        %v4321 = vsel %vm457, %v4319, 0
        %4323 = vmatprep.subr.bf16.mxu0 0
        %4324 = vmatpush1.bf16.msra.mxu0 %v4321
        %4325 = vmatprep.subr.bf16.mxu0 0
        %4326 = vmatpush1.bf16.msra.mxu0 0
        %4327 = vmatprep.subr.bf16.mxu0 0
        %4328 = vmatpush1.bf16.msra.mxu0 0
        %4329 = vmatprep.subr.bf16.mxu0 0
        %4330 = vmatpush1.bf16.msra.mxu0 0
        %4331 = vmatprep.subr.bf16.mxu0 0
        %4332 = vmatpush1.bf16.msra.mxu0 0
        %4333 = vmatprep.subr.bf16.mxu0 0
        %4334 = vmatpush1.bf16.msra.mxu0 0
        %4335 = vmatprep.subr.bf16.mxu0 0
        %4336 = vmatpush1.bf16.msra.mxu0 0
        %4337 = vmatprep.subr.bf16.mxu0 0
        %4338 = vmatpush1.bf16.msra.mxu0 0
        %4339 = vmatprep.subr.bf16.mxu0 0
        %4340 = vmatpush1.bf16.msra.mxu0 0
        %4341 = vmatprep.subr.bf16.mxu0 0
        %4342 = vmatpush1.bf16.msra.mxu0 0
        %4343 = vmatprep.subr.bf16.mxu0 0
        %4344 = vmatpush1.bf16.msra.mxu0 0
        %4345 = vmatprep.subr.bf16.mxu0 0
        %4346 = vmatpush1.bf16.msra.mxu0 0
        %4347 = vmatprep.subr.bf16.mxu0 0
        %4348 = vmatpush1.bf16.msra.mxu0 0
        %4349 = vmatprep.subr.bf16.mxu0 0
        %4350 = vmatpush1.bf16.msra.mxu0 0
        %4351 = vmatprep.subr.bf16.mxu0 0
        %4352 = vmatpush1.bf16.msra.mxu0 0
        %4353 = vmatprep.subr.bf16.mxu0 0
        %4354 = vmatpush1.bf16.msra.mxu0 0
        %4355 = vmatprep.mubr.bf16.mxu0 0
        %4356 = vmatmul.mubr.bf16.gmra.mrb[0].mxu0 %v3405
        %v4357 = vpop.f32.mrb[0].mxu0
        %v4358 = vadd.f32 0.0, %v4357
        %v4359 = vpop.f32.mrb[0].mxu0
        %v4360 = vpop.f32.mrb[0].mxu0
        %v4361 = vadd.f32 0.0, %v4360
        %v4362 = vpop.f32.mrb[0].mxu0
        %4363 = vmatprep.mubr.bf16.mxu0 0
        %4364 = vmatmul.mubr.bf16.gmra.mrb[0].mxu0 %v3408
        %v4365 = vpop.f32.mrb[0].mxu0
        %v4366 = vadd.f32 0.0, %v4365
        %v4367 = vpop.f32.mrb[0].mxu0
        %v4368 = vpop.f32.mrb[0].mxu0
        %v4369 = vadd.f32 0.0, %v4368
        %v4370 = vpop.f32.mrb[0].mxu0
        %4371 = vmatprep.mubr.bf16.mxu0 0
        %4372 = vmatmul.mubr.bf16.gmra.mrb[0].mxu0 %v3411
        %v4373 = vpop.f32.mrb[0].mxu0
        %v4374 = vadd.f32 0.0, %v4373
        %v4375 = vpop.f32.mrb[0].mxu0
        %v4376 = vpop.f32.mrb[0].mxu0
        %v4377 = vadd.f32 0.0, %v4376
        %v4378 = vpop.f32.mrb[0].mxu0
        %4379 = vmatprep.mubr.bf16.mxu0 0
        %4380 = vmatmul.mubr.bf16.gmra.mrb[0].mxu0 %v3414
        %v4381 = vpop.f32.mrb[0].mxu0
        %v4382 = vadd.f32 0.0, %v4381
        %v4383 = vpop.f32.mrb[0].mxu0
        %v4384 = vpop.f32.mrb[0].mxu0
        %v4385 = vadd.f32 0.0, %v4384
        %v4386 = vpop.f32.mrb[0].mxu0
        %4387 = vmatprep.mubr.bf16.mxu0 0
        %4388 = vmatmul.mubr.bf16.gmra.mrb[0].mxu0 %v3417
        %v4389 = vpop.f32.mrb[0].mxu0
        %v4390 = vadd.f32 0.0, %v4389
        %v4391 = vpop.f32.mrb[0].mxu0
        %v4392 = vpop.f32.mrb[0].mxu0
        %v4393 = vadd.f32 0.0, %v4392
        %v4394 = vpop.f32.mrb[0].mxu0
        %4395 = vmatprep.mubr.bf16.mxu0 0
        %4396 = vmatmul.mubr.bf16.gmra.mrb[0].mxu0 %v3420
        %v4397 = vpop.f32.mrb[0].mxu0
        %v4398 = vadd.f32 0.0, %v4397
        %v4399 = vpop.f32.mrb[0].mxu0
        %v4400 = vpop.f32.mrb[0].mxu0
        %v4401 = vadd.f32 0.0, %v4400
        %v4402 = vpop.f32.mrb[0].mxu0
        %4403 = vmatprep.mubr.bf16.mxu0 0
        %4404 = vmatmul.mubr.bf16.gmra.mrb[0].mxu0 %v3423
        %v4405 = vpop.f32.mrb[0].mxu0
        %v4406 = vadd.f32 0.0, %v4405
        %v4407 = vpop.f32.mrb[0].mxu0
        %v4408 = vpop.f32.mrb[0].mxu0
        %v4409 = vadd.f32 0.0, %v4408
        %v4410 = vpop.f32.mrb[0].mxu0
        %4411 = vmatprep.mubr.bf16.mxu0 0
        %4412 = vmatmul.mubr.bf16.gmra.mrb[0].mxu0 %v3426
        %v4413 = vpop.f32.mrb[0].mxu0
        %v4414 = vadd.f32 0.0, %v4413
        %v4415 = vpop.f32.mrb[0].mxu0
        %v4416 = vpop.f32.mrb[0].mxu0
        %v4417 = vadd.f32 0.0, %v4416
        %v4418 = vpop.f32.mrb[0].mxu0
        %4419 = vmatprep.mubr.bf16.mxu0 0
        %4420 = vmatmul.mubr.bf16.gmra.mrb[0].mxu0 %v3429
        %v4421 = vpop.f32.mrb[0].mxu0
        %v4422 = vadd.f32 0.0, %v4421
        %v4423 = vpop.f32.mrb[0].mxu0
        %v4424 = vpop.f32.mrb[0].mxu0
        %v4425 = vadd.f32 0.0, %v4424
        %v4426 = vpop.f32.mrb[0].mxu0
        %4427 = vmatprep.mubr.bf16.mxu0 0
        %4428 = vmatmul.mubr.bf16.gmra.mrb[0].mxu0 %v3432
        %v4429 = vpop.f32.mrb[0].mxu0
        %v4430 = vadd.f32 0.0, %v4429
        %v4431 = vpop.f32.mrb[0].mxu0
        %v4432 = vpop.f32.mrb[0].mxu0
        %v4433 = vadd.f32 0.0, %v4432
        %v4434 = vpop.f32.mrb[0].mxu0
        %4435 = vmatprep.mubr.bf16.mxu0 0
        %4436 = vmatmul.mubr.bf16.gmra.mrb[0].mxu0 %v3435
        %v4437 = vpop.f32.mrb[0].mxu0
        %v4438 = vadd.f32 0.0, %v4437
        %v4439 = vpop.f32.mrb[0].mxu0
        %v4440 = vpop.f32.mrb[0].mxu0
        %v4441 = vadd.f32 0.0, %v4440
        %v4442 = vpop.f32.mrb[0].mxu0
        %4443 = vmatprep.mubr.bf16.mxu0 0
        %4444 = vmatmul.mubr.bf16.gmra.mrb[0].mxu0 %v3438
        %v4445 = vpop.f32.mrb[0].mxu0
        %v4446 = vadd.f32 0.0, %v4445
        %v4447 = vpop.f32.mrb[0].mxu0
        %v4448 = vpop.f32.mrb[0].mxu0
        %v4449 = vadd.f32 0.0, %v4448
        %v4450 = vpop.f32.mrb[0].mxu0
        %4451 = vmatprep.mubr.bf16.mxu0 0
        %4452 = vmatmul.mubr.bf16.gmra.mrb[0].mxu0 %v3441
        %v4453 = vpop.f32.mrb[0].mxu0
        %v4454 = vadd.f32 0.0, %v4453
        %v4455 = vpop.f32.mrb[0].mxu0
        %v4456 = vpop.f32.mrb[0].mxu0
        %v4457 = vadd.f32 0.0, %v4456
        %v4458 = vpop.f32.mrb[0].mxu0
        %4459 = vmatprep.mubr.bf16.mxu0 0
        %4460 = vmatmul.mubr.bf16.gmra.mrb[0].mxu0 %v3444
        %v4461 = vpop.f32.mrb[0].mxu0
        %v4462 = vadd.f32 0.0, %v4461
        %v4463 = vpop.f32.mrb[0].mxu0
        %v4464 = vpop.f32.mrb[0].mxu0
        %v4465 = vadd.f32 0.0, %v4464
        %v4466 = vpop.f32.mrb[0].mxu0
        %4467 = vmatprep.mubr.bf16.mxu0 0
        %4468 = vmatmul.mubr.bf16.gmra.mrb[0].mxu0 %v3447
        %v4469 = vpop.f32.mrb[0].mxu0
        %v4470 = vadd.f32 0.0, %v4469
        %v4471 = vpop.f32.mrb[0].mxu0
        %v4472 = vpop.f32.mrb[0].mxu0
        %v4473 = vadd.f32 0.0, %v4472
        %v4474 = vpop.f32.mrb[0].mxu0
        %4475 = vmatprep.mubr.bf16.mxu0 0
        %4476 = vmatmul.mubr.bf16.gmra.mrb[0].mxu0 %v3450
        %v4477 = vpop.f32.mrb[0].mxu0
        %v4478 = vadd.f32 0.0, %v4477
        %v4479 = vpop.f32.mrb[0].mxu0
        %v4480 = vpop.f32.mrb[0].mxu0
        %v4481 = vadd.f32 0.0, %v4480
        %v4482 = vpop.f32.mrb[0].mxu0
        %4483 = vmatprep.mubr.bf16.mxu0 0
        %4484 = vmatmul.mubr.bf16.gmra.mrb[0].mxu0 %v3453
        %v4485 = vpop.f32.mrb[0].mxu0
        %v4486 = vadd.f32 0.0, %v4485
        %v4487 = vpop.f32.mrb[0].mxu0
        %v4488 = vpop.f32.mrb[0].mxu0
        %v4489 = vadd.f32 0.0, %v4488
        %v4490 = vpop.f32.mrb[0].mxu0
        %4491 = vmatprep.mubr.bf16.mxu0 0
        %4492 = vmatmul.mubr.bf16.gmra.mrb[0].mxu0 %v3456
        %v4493 = vpop.f32.mrb[0].mxu0
        %v4494 = vadd.f32 0.0, %v4493
        %v4495 = vpop.f32.mrb[0].mxu0
        %v4496 = vpop.f32.mrb[0].mxu0
        %v4497 = vadd.f32 0.0, %v4496
        %v4498 = vpop.f32.mrb[0].mxu0
        %4499 = vmatprep.mubr.bf16.mxu0 0
        %4500 = vmatmul.mubr.bf16.gmra.mrb[0].mxu0 %v3459
        %v4501 = vpop.f32.mrb[0].mxu0
        %v4502 = vadd.f32 0.0, %v4501
        %v4503 = vpop.f32.mrb[0].mxu0
        %v4504 = vpop.f32.mrb[0].mxu0
        %v4505 = vadd.f32 0.0, %v4504
        %v4506 = vpop.f32.mrb[0].mxu0
        %4507 = vmatprep.mubr.bf16.mxu0 0
        %4508 = vmatmul.mubr.bf16.gmra.mrb[0].mxu0 %v3462
        %v4509 = vpop.f32.mrb[0].mxu0
        %v4510 = vadd.f32 0.0, %v4509
        %v4511 = vpop.f32.mrb[0].mxu0
        %v4512 = vpop.f32.mrb[0].mxu0
        %v4513 = vadd.f32 0.0, %v4512
        %v4514 = vpop.f32.mrb[0].mxu0
        %4515 = vmatprep.mubr.bf16.mxu0 0
        %4516 = vmatmul.mubr.bf16.gmra.mrb[0].mxu0 %v3465
        %v4517 = vpop.f32.mrb[0].mxu0
        %v4518 = vadd.f32 0.0, %v4517
        %v4519 = vpop.f32.mrb[0].mxu0
        %v4520 = vpop.f32.mrb[0].mxu0
        %v4521 = vadd.f32 0.0, %v4520
        %v4522 = vpop.f32.mrb[0].mxu0
        %4523 = vmatprep.mubr.bf16.mxu0 0
        %4524 = vmatmul.mubr.bf16.gmra.mrb[0].mxu0 %v3468
        %v4525 = vpop.f32.mrb[0].mxu0
        %v4526 = vadd.f32 0.0, %v4525
        %v4527 = vpop.f32.mrb[0].mxu0
        %v4528 = vpop.f32.mrb[0].mxu0
        %v4529 = vadd.f32 0.0, %v4528
        %v4530 = vpop.f32.mrb[0].mxu0
        %4531 = vmatprep.mubr.bf16.mxu0 0
        %4532 = vmatmul.mubr.bf16.gmra.mrb[0].mxu0 %v3471
        %v4533 = vpop.f32.mrb[0].mxu0
        %v4534 = vadd.f32 0.0, %v4533
        %v4535 = vpop.f32.mrb[0].mxu0
        %v4536 = vpop.f32.mrb[0].mxu0
        %v4537 = vadd.f32 0.0, %v4536
        %v4538 = vpop.f32.mrb[0].mxu0
        %4539 = vmatprep.mubr.bf16.mxu0 0
        %4540 = vmatmul.mubr.bf16.gmra.mrb[0].mxu0 %v3474
        %v4541 = vpop.f32.mrb[0].mxu0
        %v4542 = vadd.f32 0.0, %v4541
        %v4543 = vpop.f32.mrb[0].mxu0
        %v4544 = vpop.f32.mrb[0].mxu0
        %v4545 = vadd.f32 0.0, %v4544
        %v4546 = vpop.f32.mrb[0].mxu0
        %4547 = vdwg.mxu0
        %v4548 = vrot.slane %v4358, 2
        %v4549 = vrot.slane %v4361, 2
        %v4550 = vrot.slane %v4366, 2
        %v4551 = vrot.slane %v4369, 2
        %v4552 = vrot.slane %v4374, 2
        %v4553 = vrot.slane %v4377, 2
        %v4554 = vrot.slane %v4382, 2
        %v4555 = vrot.slane %v4385, 2
        %v4556 = vrot.slane %v4390, 2
        %v4557 = vrot.slane %v4393, 2
        %v4558 = vrot.slane %v4398, 2
        %v4559 = vrot.slane %v4401, 2
        %v4560 = vrot.slane %v4406, 2
        %v4561 = vrot.slane %v4409, 2
        %v4562 = vrot.slane %v4414, 2
        %v4563 = vrot.slane %v4417, 2
        %v4564 = vrot.slane %v4422, 2
        %v4565 = vrot.slane %v4425, 2
        %v4566 = vrot.slane %v4430, 2
        %v4567 = vrot.slane %v4433, 2
        %v4568 = vrot.slane %v4438, 2
        %v4569 = vrot.slane %v4441, 2
        %v4570 = vrot.slane %v4446, 2
        %v4571 = vrot.slane %v4449, 2
        %v4572 = vrot.slane %v4454, 2
        %v4573 = vrot.slane %v4457, 2
        %v4574 = vrot.slane %v4462, 2
        %v4575 = vrot.slane %v4465, 2
        %v4576 = vrot.slane %v4470, 2
        %v4577 = vrot.slane %v4473, 2
        %v4578 = vrot.slane %v4478, 2
        %v4579 = vrot.slane %v4481, 2
        %v4580 = vrot.slane %v4486, 2
        %v4581 = vrot.slane %v4489, 2
        %v4582 = vrot.slane %v4494, 2
        %v4583 = vrot.slane %v4497, 2
        %v4584 = vrot.slane %v4502, 2
        %v4585 = vrot.slane %v4505, 2
        %v4586 = vrot.slane %v4510, 2
        %v4587 = vrot.slane %v4513, 2
        %v4588 = vrot.slane %v4518, 2
        %v4589 = vrot.slane %v4521, 2
        %v4590 = vrot.slane %v4526, 2
        %v4591 = vrot.slane %v4529, 2
        %v4592 = vrot.slane %v4534, 2
        %v4593 = vrot.slane %v4537, 2
        %v4594 = vrot.slane %v4542, 2
        %v4595 = vrot.slane %v4545, 2
        %v4596 = vsel %vm1485, %v4594, %v4595
        %v4597 = vsel %vm1485, %v4593, %v4594
        %v4598 = vsel %vm1485, %v4592, %v4593
        %v4599 = vsel %vm1485, %v4591, %v4592
        %v4600 = vsel %vm1485, %v4590, %v4591
        %v4601 = vsel %vm1485, %v4589, %v4590
        %v4602 = vsel %vm1485, %v4588, %v4589
        %v4603 = vsel %vm1485, %v4587, %v4588
        %v4604 = vsel %vm1485, %v4586, %v4587
        %v4605 = vsel %vm1485, %v4585, %v4586
        %v4606 = vsel %vm1485, %v4584, %v4585
        %v4607 = vsel %vm1485, %v4583, %v4584
        %v4608 = vsel %vm1485, %v4582, %v4583
        %v4609 = vsel %vm1485, %v4581, %v4582
        %v4610 = vsel %vm1485, %v4580, %v4581
        %v4611 = vsel %vm1485, %v4579, %v4580
        %v4612 = vsel %vm1485, %v4578, %v4579
        %v4613 = vsel %vm1485, %v4577, %v4578
        %v4614 = vsel %vm1485, %v4576, %v4577
        %v4615 = vsel %vm1485, %v4575, %v4576
        %v4616 = vsel %vm1485, %v4574, %v4575
        %v4617 = vsel %vm1485, %v4573, %v4574
        %v4618 = vsel %vm1485, %v4572, %v4573
        %v4619 = vsel %vm1485, %v4571, %v4572
        %v4620 = vsel %vm1485, %v4570, %v4571
        %v4621 = vsel %vm1485, %v4569, %v4570
        %v4622 = vsel %vm1485, %v4568, %v4569
        %v4623 = vsel %vm1485, %v4567, %v4568
        %v4624 = vsel %vm1485, %v4566, %v4567
        %v4625 = vsel %vm1485, %v4565, %v4566
        %v4626 = vsel %vm1485, %v4564, %v4565
        %v4627 = vsel %vm1485, %v4563, %v4564
        %v4628 = vsel %vm1485, %v4562, %v4563
        %v4629 = vsel %vm1485, %v4561, %v4562
        %v4630 = vsel %vm1485, %v4560, %v4561
        %v4631 = vsel %vm1485, %v4559, %v4560
        %v4632 = vsel %vm1485, %v4558, %v4559
        %v4633 = vsel %vm1485, %v4557, %v4558
        %v4634 = vsel %vm1485, %v4556, %v4557
        %v4635 = vsel %vm1485, %v4555, %v4556
        %v4636 = vsel %vm1485, %v4554, %v4555
        %v4637 = vsel %vm1485, %v4553, %v4554
        %v4638 = vsel %vm1485, %v4552, %v4553
        %v4639 = vsel %vm1485, %v4551, %v4552
        %v4640 = vsel %vm1485, %v4550, %v4551
        %v4641 = vsel %vm1485, %v4549, %v4550
        %v4642 = vsel %vm1485, %v4548, %v4549
        %v4643 = vsel %vm1485, %v4595, %v4548
        %v4644 = vld [vmem:[#allocation2] sm:$0xff]
        %v4645 = vld [vmem:[#allocation2 + $0x8] sm:$0xff]
        %v4646 = vld [vmem:[#allocation2 + $0x10] sm:$0xff]
        %v4647 = vld [vmem:[#allocation2 + $0x18] sm:$0xff]
        %v4648 = vld [vmem:[#allocation2 + $0x20] sm:$0xff]
        %v4649 = vld [vmem:[#allocation2 + $0x28] sm:$0xff]
        %v4650 = vld [vmem:[#allocation2 + $0x30] sm:$0xff]
        %v4651 = vld [vmem:[#allocation2 + $0x38] sm:$0xff]
        %v4652 = vld [vmem:[#allocation2 + $0x40] sm:$0xff]
        %v4653 = vld [vmem:[#allocation2 + $0x48] sm:$0xff]
        %v4654 = vld [vmem:[#allocation2 + $0x50] sm:$0xff]
        %v4655 = vld [vmem:[#allocation2 + $0x58] sm:$0xff]
        %v4656 = vld [vmem:[#allocation2 + $0x60] sm:$0xff]
        %v4657 = vld [vmem:[#allocation2 + $0x68] sm:$0xff]
        %v4658 = vld [vmem:[#allocation2 + $0x70] sm:$0xff]
        %v4659 = vld [vmem:[#allocation2 + $0x78] sm:$0xff]
        %v4660 = vld [vmem:[#allocation2 + $0x80] sm:$0xff]
        %v4661 = vld [vmem:[#allocation2 + $0x88] sm:$0xff]
        %v4662 = vld [vmem:[#allocation2 + $0x90] sm:$0xff]
        %v4663 = vld [vmem:[#allocation2 + $0x98] sm:$0xff]
        %v4664 = vld [vmem:[#allocation2 + $0xa0] sm:$0xff]
        %v4665 = vld [vmem:[#allocation2 + $0xa8] sm:$0xff]
        %v4666 = vld [vmem:[#allocation2 + $0xb0] sm:$0xff]
        %v4667 = vld [vmem:[#allocation2 + $0xb8] sm:$0xff]
        %v4668 = vld [vmem:[#allocation2 + $0xc0] sm:$0xff]
        %v4669 = vld [vmem:[#allocation2 + $0xc8] sm:$0xff]
        %v4670 = vld [vmem:[#allocation2 + $0xd0] sm:$0xff]
        %v4671 = vld [vmem:[#allocation2 + $0xd8] sm:$0xff]
        %v4672 = vld [vmem:[#allocation2 + $0xe0] sm:$0xff]
        %v4673 = vld [vmem:[#allocation2 + $0xe8] sm:$0xff]
        %v4674 = vld [vmem:[#allocation2 + $0xf0] sm:$0xff]
        %v4675 = vld [vmem:[#allocation2 + $0xf8] sm:$0xff]
        %v4676 = vld [vmem:[#allocation2 + $0x100] sm:$0xff]
        %v4677 = vld [vmem:[#allocation2 + $0x108] sm:$0xff]
        %v4678 = vld [vmem:[#allocation2 + $0x110] sm:$0xff]
        %v4679 = vld [vmem:[#allocation2 + $0x118] sm:$0xff]
        %v4680 = vld [vmem:[#allocation2 + $0x120] sm:$0xff]
        %v4681 = vld [vmem:[#allocation2 + $0x128] sm:$0xff]
        %v4682 = vld [vmem:[#allocation2 + $0x130] sm:$0xff]
        %v4683 = vld [vmem:[#allocation2 + $0x138] sm:$0xff]
        %v4684 = vld [vmem:[#allocation2 + $0x140] sm:$0xff]
        %v4685 = vld [vmem:[#allocation2 + $0x148] sm:$0xff]
        %v4686 = vld [vmem:[#allocation2 + $0x150] sm:$0xff]
        %v4687 = vld [vmem:[#allocation2 + $0x158] sm:$0xff]
        %v4688 = vld [vmem:[#allocation2 + $0x160] sm:$0xff]
        %v4689 = vld [vmem:[#allocation2 + $0x168] sm:$0xff]
        %v4690 = vld [vmem:[#allocation2 + $0x170] sm:$0xff]
        %v4691 = vld [vmem:[#allocation2 + $0x178] sm:$0xff]
        %v4692 = vadd.f32 %v4644, %v4642
        %v4693 = vadd.f32 %v4645, %v4641
        %v4694 = vadd.f32 %v4646, %v4640
        %v4695 = vadd.f32 %v4647, %v4639
        %v4696 = vadd.f32 %v4648, %v4638
        %v4697 = vadd.f32 %v4649, %v4637
        %v4698 = vadd.f32 %v4650, %v4636
        %v4699 = vadd.f32 %v4651, %v4635
        %v4700 = vadd.f32 %v4652, %v4634
        %v4701 = vadd.f32 %v4653, %v4633
        %v4702 = vadd.f32 %v4654, %v4632
        %v4703 = vadd.f32 %v4655, %v4631
        %v4704 = vadd.f32 %v4656, %v4630
        %v4705 = vadd.f32 %v4657, %v4629
        %v4706 = vadd.f32 %v4658, %v4628
        %v4707 = vadd.f32 %v4659, %v4627
        %v4708 = vadd.f32 %v4660, %v4626
        %v4709 = vadd.f32 %v4661, %v4625
        %v4710 = vadd.f32 %v4662, %v4624
        %v4711 = vadd.f32 %v4663, %v4623
        %v4712 = vadd.f32 %v4664, %v4622
        %v4713 = vadd.f32 %v4665, %v4621
        %v4714 = vadd.f32 %v4666, %v4620
        %v4715 = vadd.f32 %v4667, %v4619
        %v4716 = vadd.f32 %v4668, %v4618
        %v4717 = vadd.f32 %v4669, %v4617
        %v4718 = vadd.f32 %v4670, %v4616
        %v4719 = vadd.f32 %v4671, %v4615
        %v4720 = vadd.f32 %v4672, %v4614
        %v4721 = vadd.f32 %v4673, %v4613
        %v4722 = vadd.f32 %v4674, %v4612
        %v4723 = vadd.f32 %v4675, %v4611
        %v4724 = vadd.f32 %v4676, %v4610
        %v4725 = vadd.f32 %v4677, %v4609
        %v4726 = vadd.f32 %v4678, %v4608
        %v4727 = vadd.f32 %v4679, %v4607
        %v4728 = vadd.f32 %v4680, %v4606
        %v4729 = vadd.f32 %v4681, %v4605
        %v4730 = vadd.f32 %v4682, %v4604
        %v4731 = vadd.f32 %v4683, %v4603
        %v4732 = vadd.f32 %v4684, %v4602
        %v4733 = vadd.f32 %v4685, %v4601
        %v4734 = vadd.f32 %v4686, %v4600
        %v4735 = vadd.f32 %v4687, %v4599
        %v4736 = vadd.f32 %v4688, %v4598
        %v4737 = vadd.f32 %v4689, %v4597
        %v4738 = vadd.f32 %v4690, %v4596
        %v4739 = vadd.f32 %v4691, %v4643
        %4740 = vst [vmem:[#allocation2] sm:$0xff] %v4692
        %4741 = vst [vmem:[#allocation2 + $0x8] sm:$0xff] %v4693
        %4742 = vst [vmem:[#allocation2 + $0x10] sm:$0xff] %v4694
        %4743 = vst [vmem:[#allocation2 + $0x18] sm:$0xff] %v4695
        %4744 = vst [vmem:[#allocation2 + $0x20] sm:$0xff] %v4696
        %4745 = vst [vmem:[#allocation2 + $0x28] sm:$0xff] %v4697
        %4746 = vst [vmem:[#allocation2 + $0x30] sm:$0xff] %v4698
        %4747 = vst [vmem:[#allocation2 + $0x38] sm:$0xff] %v4699
        %4748 = vst [vmem:[#allocation2 + $0x40] sm:$0xff] %v4700
        %4749 = vst [vmem:[#allocation2 + $0x48] sm:$0xff] %v4701
        %4750 = vst [vmem:[#allocation2 + $0x50] sm:$0xff] %v4702
        %4751 = vst [vmem:[#allocation2 + $0x58] sm:$0xff] %v4703
        %4752 = vst [vmem:[#allocation2 + $0x60] sm:$0xff] %v4704
        %4753 = vst [vmem:[#allocation2 + $0x68] sm:$0xff] %v4705
        %4754 = vst [vmem:[#allocation2 + $0x70] sm:$0xff] %v4706
        %4755 = vst [vmem:[#allocation2 + $0x78] sm:$0xff] %v4707
        %4756 = vst [vmem:[#allocation2 + $0x80] sm:$0xff] %v4708
        %4757 = vst [vmem:[#allocation2 + $0x88] sm:$0xff] %v4709
        %4758 = vst [vmem:[#allocation2 + $0x90] sm:$0xff] %v4710
        %4759 = vst [vmem:[#allocation2 + $0x98] sm:$0xff] %v4711
        %4760 = vst [vmem:[#allocation2 + $0xa0] sm:$0xff] %v4712
        %4761 = vst [vmem:[#allocation2 + $0xa8] sm:$0xff] %v4713
        %4762 = vst [vmem:[#allocation2 + $0xb0] sm:$0xff] %v4714
        %4763 = vst [vmem:[#allocation2 + $0xb8] sm:$0xff] %v4715
        %4764 = vst [vmem:[#allocation2 + $0xc0] sm:$0xff] %v4716
        %4765 = vst [vmem:[#allocation2 + $0xc8] sm:$0xff] %v4717
        %4766 = vst [vmem:[#allocation2 + $0xd0] sm:$0xff] %v4718
        %4767 = vst [vmem:[#allocation2 + $0xd8] sm:$0xff] %v4719
        %4768 = vst [vmem:[#allocation2 + $0xe0] sm:$0xff] %v4720
        %4769 = vst [vmem:[#allocation2 + $0xe8] sm:$0xff] %v4721
        %4770 = vst [vmem:[#allocation2 + $0xf0] sm:$0xff] %v4722
        %4771 = vst [vmem:[#allocation2 + $0xf8] sm:$0xff] %v4723
        %4772 = vst [vmem:[#allocation2 + $0x100] sm:$0xff] %v4724
        %4773 = vst [vmem:[#allocation2 + $0x108] sm:$0xff] %v4725
        %4774 = vst [vmem:[#allocation2 + $0x110] sm:$0xff] %v4726
        %4775 = vst [vmem:[#allocation2 + $0x118] sm:$0xff] %v4727
        %4776 = vst [vmem:[#allocation2 + $0x120] sm:$0xff] %v4728
        %4777 = vst [vmem:[#allocation2 + $0x128] sm:$0xff] %v4729
        %4778 = vst [vmem:[#allocation2 + $0x130] sm:$0xff] %v4730
        %4779 = vst [vmem:[#allocation2 + $0x138] sm:$0xff] %v4731
        %4780 = vst [vmem:[#allocation2 + $0x140] sm:$0xff] %v4732
        %4781 = vst [vmem:[#allocation2 + $0x148] sm:$0xff] %v4733
        %4782 = vst [vmem:[#allocation2 + $0x150] sm:$0xff] %v4734
        %4783 = vst [vmem:[#allocation2 + $0x158] sm:$0xff] %v4735
        %4784 = vst [vmem:[#allocation2 + $0x160] sm:$0xff] %v4736
        %4785 = vst [vmem:[#allocation2 + $0x168] sm:$0xff] %v4737
        %4786 = vst [vmem:[#allocation2 + $0x170] sm:$0xff] %v4738
        %4787 = vst [vmem:[#allocation2 + $0x178] sm:$0xff] %v4739
        %v4788 = vld [vmem:[#allocation2] sm:$0xff]
        %v4789 = vld [vmem:[#allocation2 + $0x8] sm:$0xff]
        %v4790 = vld [vmem:[#allocation2 + $0x18] sm:$0xff]
        %v4791 = vld [vmem:[#allocation2 + $0x20] sm:$0xff]
        %v4792 = vld [vmem:[#allocation2 + $0x30] sm:$0xff]
        %v4793 = vld [vmem:[#allocation2 + $0x38] sm:$0xff]
        %v4794 = vld [vmem:[#allocation2 + $0x48] sm:$0xff]
        %v4795 = vld [vmem:[#allocation2 + $0x50] sm:$0xff]
        %v4796 = vld [vmem:[#allocation2 + $0x60] sm:$0xff]
        %v4797 = vld [vmem:[#allocation2 + $0x68] sm:$0xff]
        %v4798 = vld [vmem:[#allocation2 + $0x78] sm:$0xff]
        %v4799 = vld [vmem:[#allocation2 + $0x80] sm:$0xff]
        %v4800 = vld [vmem:[#allocation2 + $0x90] sm:$0xff]
        %v4801 = vld [vmem:[#allocation2 + $0x98] sm:$0xff]
        %v4802 = vld [vmem:[#allocation2 + $0xa8] sm:$0xff]
        %v4803 = vld [vmem:[#allocation2 + $0xb0] sm:$0xff]
        %v4804 = vld [vmem:[#allocation2 + $0xc0] sm:$0xff]
        %v4805 = vld [vmem:[#allocation2 + $0xc8] sm:$0xff]
        %v4806 = vld [vmem:[#allocation2 + $0xd8] sm:$0xff]
        %v4807 = vld [vmem:[#allocation2 + $0xe0] sm:$0xff]
        %v4808 = vld [vmem:[#allocation2 + $0xf0] sm:$0xff]
        %v4809 = vld [vmem:[#allocation2 + $0xf8] sm:$0xff]
        %v4810 = vld [vmem:[#allocation2 + $0x108] sm:$0xff]
        %v4811 = vld [vmem:[#allocation2 + $0x110] sm:$0xff]
        %v4812 = vld [vmem:[#allocation2 + $0x120] sm:$0xff]
        %v4813 = vld [vmem:[#allocation2 + $0x128] sm:$0xff]
        %v4814 = vld [vmem:[#allocation2 + $0x138] sm:$0xff]
        %v4815 = vld [vmem:[#allocation2 + $0x140] sm:$0xff]
        %v4816 = vld [vmem:[#allocation2 + $0x150] sm:$0xff]
        %v4817 = vld [vmem:[#allocation2 + $0x158] sm:$0xff]
        %v4818 = vld [vmem:[#allocation2 + $0x168] sm:$0xff]
        %v4819 = vld [vmem:[#allocation2 + $0x170] sm:$0xff]
        %v4820 = vld [vmem:[%s213] sm:$0x1]
        %v4822 = vlaneseq
        %v4823 = vshrl.u32 %v4822, 7
        %v4824 = vsub.s32 0, %v4823
        %v4825 = vrot.slane %v4820, %v4824
        %v4827 = vadd.f32 %v4788, %v4825
        %v4828 = vadd.f32 %v4789, %v4825
        %v4829 = vadd.f32 %v4790, %v4825
        %v4830 = vadd.f32 %v4791, %v4825
        %v4831 = vadd.f32 %v4792, %v4825
        %v4832 = vadd.f32 %v4793, %v4825
        %v4833 = vadd.f32 %v4794, %v4825
        %v4834 = vadd.f32 %v4795, %v4825
        %v4835 = vadd.f32 %v4796, %v4825
        %v4836 = vadd.f32 %v4797, %v4825
        %v4837 = vadd.f32 %v4798, %v4825
        %v4838 = vadd.f32 %v4799, %v4825
        %v4839 = vadd.f32 %v4800, %v4825
        %v4840 = vadd.f32 %v4801, %v4825
        %v4841 = vadd.f32 %v4802, %v4825
        %v4842 = vadd.f32 %v4803, %v4825
        %v4843 = vadd.f32 %v4804, %v4825
        %v4844 = vadd.f32 %v4805, %v4825
        %v4845 = vadd.f32 %v4806, %v4825
        %v4846 = vadd.f32 %v4807, %v4825
        %v4847 = vadd.f32 %v4808, %v4825
        %v4848 = vadd.f32 %v4809, %v4825
        %v4849 = vadd.f32 %v4810, %v4825
        %v4850 = vadd.f32 %v4811, %v4825
        %v4851 = vadd.f32 %v4812, %v4825
        %v4852 = vadd.f32 %v4813, %v4825
        %v4853 = vadd.f32 %v4814, %v4825
        %v4854 = vadd.f32 %v4815, %v4825
        %v4855 = vadd.f32 %v4816, %v4825
        %v4856 = vadd.f32 %v4817, %v4825
        %v4857 = vadd.f32 %v4818, %v4825
        %v4858 = vadd.f32 %v4819, %v4825
        %v4859 = vmax.f32 %v4827, 0.0
        %v4860 = vmax.f32 %v4828, 0.0
        %v4861 = vmax.f32 %v4829, 0.0
        %v4862 = vmax.f32 %v4830, 0.0
        %v4863 = vmax.f32 %v4831, 0.0
        %v4864 = vmax.f32 %v4832, 0.0
        %v4865 = vmax.f32 %v4833, 0.0
        %v4866 = vmax.f32 %v4834, 0.0
        %v4867 = vmax.f32 %v4835, 0.0
        %v4868 = vmax.f32 %v4836, 0.0
        %v4869 = vmax.f32 %v4837, 0.0
        %v4870 = vmax.f32 %v4838, 0.0
        %v4871 = vmax.f32 %v4839, 0.0
        %v4872 = vmax.f32 %v4840, 0.0
        %v4873 = vmax.f32 %v4841, 0.0
        %v4874 = vmax.f32 %v4842, 0.0
        %v4875 = vmax.f32 %v4843, 0.0
        %v4876 = vmax.f32 %v4844, 0.0
        %v4877 = vmax.f32 %v4845, 0.0
        %v4878 = vmax.f32 %v4846, 0.0
        %v4879 = vmax.f32 %v4847, 0.0
        %v4880 = vmax.f32 %v4848, 0.0
        %v4881 = vmax.f32 %v4849, 0.0
        %v4882 = vmax.f32 %v4850, 0.0
        %v4883 = vmax.f32 %v4851, 0.0
        %v4884 = vmax.f32 %v4852, 0.0
        %v4885 = vmax.f32 %v4853, 0.0
        %v4886 = vmax.f32 %v4854, 0.0
        %v4887 = vmax.f32 %v4855, 0.0
        %v4888 = vmax.f32 %v4856, 0.0
        %v4889 = vmax.f32 %v4857, 0.0
        %v4890 = vmax.f32 %v4858, 0.0
        %4891 = vst [vmem:[%s201] sm:$0xff] %v4859
        %4892 = vst [vmem:[%s201 + $0x8] sm:$0xff] %v4860
        %4893 = vst [vmem:[%s201 + $0x10] sm:$0xff] %v4861
        %4894 = vst [vmem:[%s201 + $0x18] sm:$0xff] %v4862
        %4895 = vst [vmem:[%s201 + $0x20] sm:$0xff] %v4863
        %4896 = vst [vmem:[%s201 + $0x28] sm:$0xff] %v4864
        %4897 = vst [vmem:[%s201 + $0x30] sm:$0xff] %v4865
        %4898 = vst [vmem:[%s201 + $0x38] sm:$0xff] %v4866
        %4899 = vst [vmem:[%s201 + $0x40] sm:$0xff] %v4867
        %4900 = vst [vmem:[%s201 + $0x48] sm:$0xff] %v4868
        %4901 = vst [vmem:[%s201 + $0x50] sm:$0xff] %v4869
        %4902 = vst [vmem:[%s201 + $0x58] sm:$0xff] %v4870
        %4903 = vst [vmem:[%s201 + $0x60] sm:$0xff] %v4871
        %4904 = vst [vmem:[%s201 + $0x68] sm:$0xff] %v4872
        %4905 = vst [vmem:[%s201 + $0x70] sm:$0xff] %v4873
        %4906 = vst [vmem:[%s201 + $0x78] sm:$0xff] %v4874
        %4907 = vst [vmem:[%s201 + $0x80] sm:$0xff] %v4875
        %4908 = vst [vmem:[%s201 + $0x88] sm:$0xff] %v4876
        %4909 = vst [vmem:[%s201 + $0x90] sm:$0xff] %v4877
        %4910 = vst [vmem:[%s201 + $0x98] sm:$0xff] %v4878
        %4911 = vst [vmem:[%s201 + $0xa0] sm:$0xff] %v4879
        %4912 = vst [vmem:[%s201 + $0xa8] sm:$0xff] %v4880
        %4913 = vst [vmem:[%s201 + $0xb0] sm:$0xff] %v4881
        %4914 = vst [vmem:[%s201 + $0xb8] sm:$0xff] %v4882
        %4915 = vst [vmem:[%s201 + $0xc0] sm:$0xff] %v4883
        %4916 = vst [vmem:[%s201 + $0xc8] sm:$0xff] %v4884
        %4917 = vst [vmem:[%s201 + $0xd0] sm:$0xff] %v4885
        %4918 = vst [vmem:[%s201 + $0xd8] sm:$0xff] %v4886
        %4919 = vst [vmem:[%s201 + $0xe0] sm:$0xff] %v4887
        %4920 = vst [vmem:[%s201 + $0xe8] sm:$0xff] %v4888
        %4921 = vst [vmem:[%s201 + $0xf0] sm:$0xff] %v4889
        %4922 = vst [vmem:[%s201 + $0xf8] sm:$0xff] %v4890
        %s4923 = sand.u32 %s117, 1
        %s4924 = scalar_lea.sflag [#allocation4], %s4923
        %s4925 = sand.u32 %s117, 1
        %s4926 = smul.addr %s4925, 256
        %s4927 = scalar_lea.vmem [#allocation3], %s4926
        // Predicated region
        $region33: #{tpu_custom_call.1} parent=31 // pred_check
          %p4928 = pneg %p127
        $region34: #{tpu_custom_call.1} parent=31 // pred_check_branch
          %4930 = sbr.rel (%p4928) target = $region36
        $region35: #{tpu_custom_call.1} parent=31 // pred_region
          %s4932 = ssub.s32 4096, 4096
          %4933 = vsyncadd %s4924, %s4932
          %s4934 = smul.addr %s22, 32
          %s4935 = sadd.s32 %s21, %s4934
          %s4936 = smul.addr %s4935, 128
          %s4937 = scalar_lea.hbm %s3, %s4936
          %s4938 = sshll.u32 %s4927, 4
          %s4939 = int_to_ptr.vmem [resolvable:$true] %s4938
          %4944 = dma.vmem_to_hbm [thread:$0]  %s4939, 4096, %s4937, %s4924, 128, 128, 8
        $region36: #{tpu_custom_call.1} parent=31 // pred_fallthru
          _
      $region32: #{tpu_custom_call.1} parent=5 // pred_fallthru
        _
      %p4945 = scmp.le.s32.totalorder 2, %s12
      // Predicated region
      $region37: #{tpu_custom_call.1} parent=5 // pred_check
        %p4946 = pneg %p4945
      $region38: #{tpu_custom_call.1} parent=5 // pred_check_branch
        %4948 = sbr.rel (%p4946) target = $region40
      $region39: #{tpu_custom_call.1} parent=5 // pred_region
        %s4949 = ssub.s32 %s12, 2
        // Predicated region
        $region41: #{tpu_custom_call.1} parent=39 // pred_check
          %p4950 = pneg %p133
        $region42: #{tpu_custom_call.1} parent=39 // pred_check_branch
          %4952 = sbr.rel (%p4950) target = $region44
        $region43: #{tpu_custom_call.1} parent=39 // pred_region
          %s4953 = sand.u32 %s118, 1
          %s4954 = scalar_lea.sflag [#allocation4], %s4953
          %s4955 = sand.u32 %s118, 1
          %s4956 = smul.addr %s4955, 256
          %s4957 = scalar_lea.vmem [#allocation3], %s4956
          %4958 = dma.done %s4954, 4096
        $region44: #{tpu_custom_call.1} parent=39 // pred_fallthru
          _
      $region40: #{tpu_custom_call.1} parent=5 // pred_fallthru
        _
    $region6: #{tpu_custom_call.1} parent=1 // loop_footer
      %s16 = sadd.s32 1, %s12
    $region7: #{tpu_custom_call.1} parent=1 // loop_footer_branch
      %11 = sbr.rel target = $region3
    $region8: #{tpu_custom_call.1} parent=1 // loop_exit
      _
    %4959 = vsyncpa [#allocation4], 1
    %s4960 = scalar_lea.sflag [#allocation4], 1
    %4961 = vsyncpa %s4960, 1

</llo_original>
